<compile_context>
chip_gen: v5e
topology: v5e:2x2
jax: 0.10.0
libtpu: 0.0.40
codegen_flags: <defaults>
</compile_context>

<pallas_src>
import numpy as np
import jax
import jax.numpy as jnp
from jax.experimental import pallas as pl
from jax.experimental.pallas import tpu as pltpu

EMBED = 1024
FRAMES = 16
NUM_CLASSES = 7
NC_PAD = 128          # pad class dim to a full lane width (dense, unmasked vst)
LN_EPS = 1e-5         # PyTorch nn.LayerNorm default


# ---------------------------------------------------------------------------
# Generation-gated tiling constants (decided once, at import time).
# ---------------------------------------------------------------------------
def _detect_vmem_bytes():
    try:
        return int(pltpu.get_tpu_info().vmem_capacity_bytes)
    except Exception:
        return 64 * 1024 * 1024   # conservative: assume the smallest (v7x)


_VMEM_CAP = _detect_vmem_bytes()
_SMALL_VMEM = _VMEM_CAP < 100 * 1024 * 1024          # v7x (64 MiB per TC)
_MAX_BT = 128 if _SMALL_VMEM else 256                # x tile: 8 MiB vs 16 MiB f32
_MIN_STEPS = 4 if _SMALL_VMEM else 2                 # >=2 steps per TC on v7x megacore
_VMEM_LIMIT = (32 if _SMALL_VMEM else 48) * 1024 * 1024


def _pick_bt(batch):
    """Batch tile: sublane multiple, capped at the generation-safe maximum,
    and chosen so the grid has >= _MIN_STEPS iterations whenever B allows it
    (keeps the x DMA double-buffered / overlapped on every TensorCore)."""
    bp8 = ((batch + 7) // 8) * 8
    if bp8 <= 8:
        return 8
    bt = min(_MAX_BT, max(8, (bp8 // _MIN_STEPS) // 8 * 8))
    return bt


# ---------------------------------------------------------------------------
# Kernel
# ---------------------------------------------------------------------------
def classifier_kernel(x_ref, w1_ref, b1_ref, w2_ref, b2_ref, o_ref):
    # x_ref: (BT, FRAMES, EMBED) f32 tile (last block may be ragged; rows are
    # independent, so garbage tail rows are harmless and masked on store).
    # Mean over frames FIRST (commutes with the linear fc1): (BT, EMBED) f32.
    x_mean = jnp.mean(x_ref[...], axis=1)

    # fc1 on the frame-mean: bf16 MXU operands, f32 accumulation, f32 bias.
    h = jnp.dot(x_mean.astype(jnp.bfloat16), w1_ref[...],
                preferred_element_type=jnp.float32) + b1_ref[...]

    # LayerNorm statistics (affine folded into fc2 weights), all f32.
    mu = jnp.mean(h, axis=-1, keepdims=True)
    var = jnp.mean((h - mu) ** 2, axis=-1, keepdims=True)
    hn = (h - mu) * jax.lax.rsqrt(var + LN_EPS)

    # fc2 (LN-affine folded in): bf16 operands, f32 accumulation + bias.
    out = jnp.dot(hn.astype(jnp.bfloat16), w2_ref[...],
                  preferred_element_type=jnp.float32) + b2_ref[...]
    o_ref[...] = out.astype(o_ref.dtype)


# ---------------------------------------------------------------------------
# Parameter preparation (one-time, OUTSIDE the jit): bf16 MXU weights,
# LayerNorm affine folded into fc2, class dim padded to a lane width.
# ---------------------------------------------------------------------------
def init_params(key):
    """Deterministic synthetic parameters (PyTorch-style fan-in uniform)."""
    k = jax.random.split(key, 6)
    bound1 = 1.0 / np.sqrt(EMBED)
    w1 = jax.random.uniform(k[0], (EMBED, EMBED), jnp.float32, -bound1, bound1)
    b1 = jax.random.uniform(k[1], (1, EMBED), jnp.float32, -bound1, bound1)
    gamma = jnp.ones((1, EMBED), jnp.float32)
    beta = jnp.zeros((1, EMBED), jnp.float32)
    w2 = jax.random.uniform(k[2], (EMBED, NUM_CLASSES), jnp.float32, -bound1, bound1)
    b2 = jax.random.uniform(k[3], (1, NUM_CLASSES), jnp.float32, -bound1, bound1)
    return dict(w1=w1, b1=b1, gamma=gamma, beta=beta, w2=w2, b2=b2)


def prepare_params(params):
    gamma = params["gamma"][0]                                   # (E,)
    beta = params["beta"][0]                                     # (E,)
    w2_fold = params["w2"] * gamma[:, None]                      # (E, NC) f32
    b2_fold = beta @ params["w2"] + params["b2"][0]              # (NC,)  f32
    w2_p = jnp.pad(w2_fold, ((0, 0), (0, NC_PAD - NUM_CLASSES))).astype(jnp.bfloat16)
    b2_p = jnp.pad(b2_fold, (0, NC_PAD - NUM_CLASSES)).reshape(1, NC_PAD)
    return dict(
        w1=params["w1"].astype(jnp.bfloat16),                    # (E, E) bf16
        b1=params["b1"].astype(jnp.float32),                     # (1, E) f32
        w2=w2_p,                                                 # (E, 128) bf16
        b2=b2_p,                                                 # (1, 128) f32
    )


# ---------------------------------------------------------------------------
# Wrapper
# ---------------------------------------------------------------------------
@jax.jit
def classifier_forward(x, w1_bf, b1, w2_bf, b2):
    # Equivalent of x.contiguous().view(-1, 16, 1024)
    x = x.reshape(-1, FRAMES, EMBED).astype(jnp.float32)
    B = x.shape[0]

    BT = _pick_bt(B)
    grid = (pl.cdiv(B, BT),)          # ragged last block; no jnp.pad of x

    out = pl.pallas_call(
        classifier_kernel,
        out_shape=jax.ShapeDtypeStruct((B, NC_PAD), jnp.float32),
        grid_spec=pltpu.PrefetchScalarGridSpec(
            num_scalar_prefetch=0,
            grid=grid,
            in_specs=[
                pl.BlockSpec((BT, FRAMES, EMBED), lambda i: (i, 0, 0)),   # x tile
                pl.BlockSpec((EMBED, EMBED), lambda i: (0, 0),            # w1 bf16,
                             pipeline_mode=pl.Buffered(1)),               #  resident
                pl.BlockSpec((1, EMBED), lambda i: (0, 0),                # b1 f32,
                             pipeline_mode=pl.Buffered(1)),               #  resident
                pl.BlockSpec((EMBED, NC_PAD), lambda i: (0, 0),           # w2 bf16,
                             pipeline_mode=pl.Buffered(1)),               #  resident
                pl.BlockSpec((1, NC_PAD), lambda i: (0, 0),               # b2 f32,
                             pipeline_mode=pl.Buffered(1)),               #  resident
            ],
            out_specs=pl.BlockSpec((BT, NC_PAD), lambda i: (i, 0)),
        ),
        compiler_params=pltpu.CompilerParams(
            dimension_semantics=("parallel",),
            vmem_limit_bytes=_VMEM_LIMIT,
        ),
    )(x, w1_bf, b1, w2_bf, b2)

    return out[:, :NUM_CLASSES]


# ---------------------------------------------------------------------------
# References
# ---------------------------------------------------------------------------
def reference_forward_f32(x, params):
    """Exact PyTorch op order, all f32: fc1 per frame -> mean -> LN -> fc2."""
    w1, b1 = params["w1"], params["b1"]
    gamma, beta = params["gamma"], params["beta"]
    w2, b2 = params["w2"], params["b2"]
    x = x.reshape(-1, FRAMES, EMBED).astype(jnp.float32)
    h = jnp.einsum("bfe,eo->bfo", x, w1) + b1[0]
    h = jnp.mean(h, axis=1)
    mu = jnp.mean(h, axis=-1, keepdims=True)
    var = jnp.mean((h - mu) ** 2, axis=-1, keepdims=True)
    hn = (h - mu) / jnp.sqrt(var + LN_EPS) * gamma[0] + beta[0]
    return hn @ w2 + b2[0]


def reference_forward_matched(x, prep):
    """Same math as the kernel (mean-first, bf16 MXU operands, folded affine)."""
    x = x.reshape(-1, FRAMES, EMBED).astype(jnp.float32)
    xm = jnp.mean(x, axis=1)
    h = jnp.dot(xm.astype(jnp.bfloat16), prep["w1"],
                preferred_element_type=jnp.float32) + prep["b1"]
    mu = jnp.mean(h, axis=-1, keepdims=True)
    var = jnp.mean((h - mu) ** 2, axis=-1, keepdims=True)
    hn = (h - mu) * jax.lax.rsqrt(var + LN_EPS)
    out = jnp.dot(hn.astype(jnp.bfloat16), prep["w2"],
                  preferred_element_type=jnp.float32) + prep["b2"]
    return out[:, :NUM_CLASSES]


# TODO(synk): if the upstream producer can emit x in bf16 (fused into its own
# epilogue), accept bf16 x and keep the frame-mean accumulation in f32 — it
# would halve the dominant HBM read; a standalone cast pass is a net loss.

if __name__ == "__main__":
    key = jax.random.PRNGKey(0)
    k_x, k_p = jax.random.split(key)

    # Small batch; frame/embed dims are fixed by the module's view(-1, 16, 1024).
    B = 2
    x = jax.random.normal(k_x, (B, FRAMES, EMBED), dtype=jnp.float32)
    params = init_params(k_p)
    prep = prepare_params(params)       # one-time bf16 cast / affine fold / pad

    out = classifier_forward(x, prep["w1"], prep["b1"], prep["w2"], prep["b2"])
    out = jax.block_until_ready(out)
    assert out.shape == (B, NUM_CLASSES)

    # Tight check against a JAX reference using identical (bf16-MXU, folded)
    # math — verifies the kernel plumbing itself.
    ref_matched = reference_forward_matched(x, prep)
    np.testing.assert_allclose(np.asarray(out), np.asarray(ref_matched),
                               rtol=1e-3, atol=1e-3)

    # Loose check against the exact f32 PyTorch op order — verifies semantic
    # fidelity; slack covers bf16 rounding and the mean/fc1 reassociation.
    ref_f32 = reference_forward_f32(x, params)
    np.testing.assert_allclose(np.asarray(out), np.asarray(ref_f32),
                               rtol=2e-2, atol=2e-2)

    print("KERNEL_OK")
</pallas_src>

<mosaic_0001>
module attributes {stable_mosaic.version = 11 : i64} {
  func.func @classifier_kernel(%arg0: i32, %arg1: memref<8x16x1024xf32, #tpu.memory_space<vmem>>, %arg2: memref<1024x1024xbf16, #tpu.memory_space<vmem>>, %arg3: memref<1x1024xf32, #tpu.memory_space<vmem>>, %arg4: memref<1024x128xbf16, #tpu.memory_space<vmem>>, %arg5: memref<1x128xf32, #tpu.memory_space<vmem>>, %arg6: memref<8x128xf32, #tpu.memory_space<vmem>>) attributes {dimension_semantics = [#tpu.dimension_semantics<parallel>], iteration_bounds = array<i64: 1>, scalar_prefetch = 0 : i64, scratch_operands = 0 : i64, tpu.core_type = #tpu.core_type<tc>, window_params = [{transform_indices = @transform_0, window_bounds = array<i64: 8, 16, 1024>}, {pipeline_mode = #tpu.pipeline_mode<synchronous>, transform_indices = @transform_1, window_bounds = array<i64: 1024, 1024>}, {pipeline_mode = #tpu.pipeline_mode<synchronous>, transform_indices = @transform_2, window_bounds = array<i64: 1, 1024>}, {pipeline_mode = #tpu.pipeline_mode<synchronous>, transform_indices = @transform_3, window_bounds = array<i64: 1024, 128>}, {pipeline_mode = #tpu.pipeline_mode<synchronous>, transform_indices = @transform_4, window_bounds = array<i64: 1, 128>}, {transform_indices = @transform_5, window_bounds = array<i64: 8, 128>}]} {
    %c0 = arith.constant 0 : index
    %c0_0 = arith.constant 0 : index
    %c0_1 = arith.constant 0 : index
    %0 = vector.load %arg1[%c0, %c0_0, %c0_1] : memref<8x16x1024xf32, #tpu.memory_space<vmem>>, vector<8x16x1024xf32>
    %cst = arith.constant dense<0.000000e+00> : vector<8x1024xf32>
    %1 = vector.multi_reduction <add>, %0, %cst [1] : vector<8x16x1024xf32> to vector<8x1024xf32>
    %cst_2 = arith.constant 1.600000e+01 : f32
    %2 = vector.broadcast %cst_2 : f32 to vector<8x1024xf32>
    %3 = arith.divf %1, %2 : vector<8x1024xf32>
    %4 = arith.truncf %3 : vector<8x1024xf32> to vector<8x1024xbf16>
    %c0_3 = arith.constant 0 : index
    %c0_4 = arith.constant 0 : index
    %5 = vector.load %arg2[%c0_3, %c0_4] : memref<1024x1024xbf16, #tpu.memory_space<vmem>>, vector<1024x1024xbf16>
    %cst_5 = arith.constant dense<0.000000e+00> : vector<8x1024xf32>
    %6 = tpu.matmul %4, %5, %cst_5 {dimension_numbers = #tpu.dot_dimension_numbers<[1], [0], [0], [1], [0, 0, 1, 1], [], []>} : vector<8x1024xbf16>, vector<1024x1024xbf16>, vector<8x1024xf32> -> vector<8x1024xf32>
    %c0_6 = arith.constant 0 : index
    %c0_7 = arith.constant 0 : index
    %7 = vector.load %arg3[%c0_6, %c0_7] : memref<1x1024xf32, #tpu.memory_space<vmem>>, vector<1x1024xf32>
    %8 = vector.broadcast %7 : vector<1x1024xf32> to vector<8x1024xf32>
    %9 = arith.addf %6, %8 : vector<8x1024xf32>
    %cst_8 = arith.constant dense<0.000000e+00> : vector<8xf32>
    %10 = vector.multi_reduction <add>, %9, %cst_8 [1] : vector<8x1024xf32> to vector<8xf32>
    %11 = vector.shape_cast %10 : vector<8xf32> to vector<8x1xf32>
    %cst_9 = arith.constant 1.024000e+03 : f32
    %12 = vector.broadcast %cst_9 : f32 to vector<8x1xf32>
    %13 = arith.divf %11, %12 : vector<8x1xf32>
    %14 = vector.broadcast %13 : vector<8x1xf32> to vector<8x1024xf32>
    %15 = arith.subf %9, %14 : vector<8x1024xf32>
    %16 = arith.mulf %15, %15 : vector<8x1024xf32>
    %cst_10 = arith.constant dense<0.000000e+00> : vector<8xf32>
    %17 = vector.multi_reduction <add>, %16, %cst_10 [1] : vector<8x1024xf32> to vector<8xf32>
    %18 = vector.shape_cast %17 : vector<8xf32> to vector<8x1xf32>
    %cst_11 = arith.constant 1.024000e+03 : f32
    %19 = vector.broadcast %cst_11 : f32 to vector<8x1xf32>
    %20 = arith.divf %18, %19 : vector<8x1xf32>
    %21 = vector.broadcast %13 : vector<8x1xf32> to vector<8x1024xf32>
    %22 = arith.subf %9, %21 : vector<8x1024xf32>
    %cst_12 = arith.constant 9.99999974E-6 : f32
    %23 = vector.broadcast %cst_12 : f32 to vector<8x1xf32>
    %24 = arith.addf %20, %23 : vector<8x1xf32>
    %25 = math.rsqrt %24 : vector<8x1xf32>
    %26 = vector.broadcast %25 : vector<8x1xf32> to vector<8x1024xf32>
    %27 = arith.mulf %22, %26 : vector<8x1024xf32>
    %28 = arith.truncf %27 : vector<8x1024xf32> to vector<8x1024xbf16>
    %c0_13 = arith.constant 0 : index
    %c0_14 = arith.constant 0 : index
    %29 = vector.load %arg4[%c0_13, %c0_14] : memref<1024x128xbf16, #tpu.memory_space<vmem>>, vector<1024x128xbf16>
    %cst_15 = arith.constant dense<0.000000e+00> : vector<8x128xf32>
    %30 = tpu.matmul %28, %29, %cst_15 {dimension_numbers = #tpu.dot_dimension_numbers<[1], [0], [0], [1], [0, 0, 1, 1], [], []>} : vector<8x1024xbf16>, vector<1024x128xbf16>, vector<8x128xf32> -> vector<8x128xf32>
    %c0_16 = arith.constant 0 : index
    %c0_17 = arith.constant 0 : index
    %31 = vector.load %arg5[%c0_16, %c0_17] : memref<1x128xf32, #tpu.memory_space<vmem>>, vector<1x128xf32>
    %32 = vector.broadcast %31 : vector<1x128xf32> to vector<8x128xf32>
    %33 = arith.addf %30, %32 : vector<8x128xf32>
    %c0_18 = arith.constant 0 : index
    %c0_19 = arith.constant 0 : index
    %34 = vector.load %arg6[%c0_18, %c0_19] : memref<8x128xf32, #tpu.memory_space<vmem>>, vector<8x128xf32>
    tpu.vector_store %arg6[%c0_18, %c0_19], %33 {strides = array<i32>} : memref<8x128xf32, #tpu.memory_space<vmem>>, vector<8x128xf32>,
    return
  }
  func.func @transform_0(%arg0: i32) -> (i32, i32, i32) {
    %c0_i32 = arith.constant 0 : i32
    %c0_i32_0 = arith.constant 0 : i32
    %c0_i32_1 = arith.constant 0 : i32
    return %arg0, %c0_i32, %c0_i32_0 : i32, i32, i32
  }
  func.func @transform_1(%arg0: i32) -> (i32, i32) {
    %c0_i32 = arith.constant 0 : i32
    %c0_i32_0 = arith.constant 0 : i32
    %c0_i32_1 = arith.constant 0 : i32
    return %c0_i32, %c0_i32_0 : i32, i32
  }
  func.func @transform_2(%arg0: i32) -> (i32, i32) {
    %c0_i32 = arith.constant 0 : i32
    %c0_i32_0 = arith.constant 0 : i32
    %c0_i32_1 = arith.constant 0 : i32
    return %c0_i32, %c0_i32_0 : i32, i32
  }
  func.func @transform_3(%arg0: i32) -> (i32, i32) {
    %c0_i32 = arith.constant 0 : i32
    %c0_i32_0 = arith.constant 0 : i32
    %c0_i32_1 = arith.constant 0 : i32
    return %c0_i32, %c0_i32_0 : i32, i32
  }
  func.func @transform_4(%arg0: i32) -> (i32, i32) {
    %c0_i32 = arith.constant 0 : i32
    %c0_i32_0 = arith.constant 0 : i32
    %c0_i32_1 = arith.constant 0 : i32
    return %c0_i32, %c0_i32_0 : i32, i32
  }
  func.func @transform_5(%arg0: i32) -> (i32, i32) {
    %c0_i32 = arith.constant 0 : i32
    %c0_i32_0 = arith.constant 0 : i32
    return %arg0, %c0_i32 : i32, i32
  }
}

</mosaic_0001>

<llo_original>
// kernel: classifier_forward.1
$region0: #{classifier_forward.1}
  #allocation0 [shape = 'u32[]', space=smem, size = 0x4, offset = 0x4, fixed_abs, tag = 'smem constant byte address 0x4 - core index']
  #allocation1 [shape = 'u32[72,128]{1,0:T(1,128)}', space=vmem, size = 0x9000, scoped, tag = 'internal scratch']
  %s0 = inlined_call_operand.hbm [shape: f32[2,16,1024], index: 0, kind: input, shape index: {}]
  %s1 = inlined_call_operand.hbm [shape: bf16[1024,1024], index: 1, kind: input, shape index: {}]
  %s2 = inlined_call_operand.hbm [shape: f32[1,1024], index: 2, kind: input, shape index: {}]
  %s3 = inlined_call_operand.hbm [shape: bf16[1024,128], index: 3, kind: input, shape index: {}]
  %s4 = inlined_call_operand.hbm [shape: f32[1,128], index: 4, kind: input, shape index: {}]
  %s5 = inlined_call_operand.hbm [shape: f32[2,128], index: 5, kind: output, shape index: {}]
  %s6 = sld [smem:[#allocation0]]
  $region50: #{classifier_forward.1} parent=0
    _
  %s8 = ssub.s32 1, %s6
  %s9 = scalar_select 0, %s8, %s6
  $region1: #{classifier_forward.1} parent=0
    #allocation2 [shape = 'u8[524288]{0}', space=vmem, size = 0x80000, scoped, tag = 'input window, operand 0, single buffered']
    #allocation3 [shape = 's32[1]{0}', space=sflag, size = 0x4, scoped, tag = 'scoped memory for classifier_forward.1']
    #allocation4 [shape = 's32[1]{0}', space=sflag, size = 0x4, scoped, tag = 'scoped memory for classifier_forward.1']
    #allocation5 [shape = 'u8[2097152]{0}', space=vmem, size = 0x200000, scoped, tag = 'input window, operand 1, single buffered']
    #allocation6 [shape = 's32[1]{0}', space=sflag, size = 0x4, scoped, tag = 'scoped memory for classifier_forward.1']
    #allocation7 [shape = 'u8[4096]{0}', space=vmem, size = 0x1000, scoped, tag = 'input window, operand 2, single buffered']
    #allocation8 [shape = 'u8[262144]{0}', space=vmem, size = 0x40000, scoped, tag = 'input window, operand 3, single buffered']
    #allocation9 [shape = 's32[1]{0}', space=sflag, size = 0x4, scoped, tag = 'scoped memory for classifier_forward.1']
    #allocation10 [shape = 'u8[512]{0}', space=vmem, size = 0x400, scoped, tag = 'input window, operand 4, single buffered']
    #allocation11 [shape = 'u8[4096]{0}', space=vmem, size = 0x1000, scoped, tag = 'output window, operand 0, single buffered']
    %10 = vsyncpa [#allocation3], 0
    %11 = vsyncpa [#allocation6], 0
    %12 = vsyncpa [#allocation9], 0
    %13 = vsyncpa [#allocation4], 0
    // Predicated region
    $region2: #{classifier_forward.1} parent=1 // pred_check
      _
    $region3: #{classifier_forward.1} parent=1 // pred_check_branch
      %15 = sbr.rel (0) target = $region5
    $region4: #{classifier_forward.1} parent=1 // pred_region
      %17 = vsyncadd [#allocation3], 12288
      %s18 = sshll.u32 %s0, 4
      %s19 = int_to_ptr.hbm [resolvable:$true] %s18
      %s20 = sshll.u32 [#allocation2], 4
      %s21 = int_to_ptr.vmem [resolvable:$true] %s20
      %26 = dma.hbm_to_vmem [thread:$0]  %s19, 4096, %s21, [#allocation3], 1024, 1024, 64
    $region5: #{classifier_forward.1} parent=1 // pred_fallthru
      _
    // Predicated region
    $region6: #{classifier_forward.1} parent=1 // pred_check
      _
    $region7: #{classifier_forward.1} parent=1 // pred_check_branch
      %28 = sbr.rel (0) target = $region9
    $region8: #{classifier_forward.1} parent=1 // pred_region
      %30 = vsyncadd [#allocation6], 0
      %s31 = sshll.u32 %s1, 4
      %s32 = int_to_ptr.hbm [resolvable:$true] %s31
      %s33 = sshll.u32 [#allocation5], 4
      %s34 = int_to_ptr.vmem [resolvable:$true] %s33
      %39 = dma.hbm_to_vmem [thread:$0]  %s32, 65536, %s34, [#allocation6], 512, 512, 32
    $region9: #{classifier_forward.1} parent=1 // pred_fallthru
      _
    // Predicated region
    $region10: #{classifier_forward.1} parent=1 // pred_check
      _
    $region11: #{classifier_forward.1} parent=1 // pred_check_branch
      %41 = sbr.rel (0) target = $region13
    $region12: #{classifier_forward.1} parent=1 // pred_region
      %43 = vsyncadd [#allocation6], 0
      %s45 = sshll.u32 %s2, 4
      %s46 = int_to_ptr.hbm [resolvable:$true] %s45
      %s47 = sshll.u32 [#allocation7], 4
      %s48 = int_to_ptr.vmem [resolvable:$true] %s47
      %50 = dma.hbm_to_vmem [thread:$0]  %s46, 128, %s48, [#allocation6]
    $region13: #{classifier_forward.1} parent=1 // pred_fallthru
      _
    // Predicated region
    $region14: #{classifier_forward.1} parent=1 // pred_check
      _
    $region15: #{classifier_forward.1} parent=1 // pred_check_branch
      %52 = sbr.rel (0) target = $region17
    $region16: #{classifier_forward.1} parent=1 // pred_region
      %54 = vsyncadd [#allocation9], 0
      %s55 = sshll.u32 %s3, 4
      %s56 = int_to_ptr.hbm [resolvable:$true] %s55
      %s57 = sshll.u32 [#allocation8], 4
      %s58 = int_to_ptr.vmem [resolvable:$true] %s57
      %63 = dma.hbm_to_vmem [thread:$0]  %s56, 8192, %s58, [#allocation9], 64, 64, 4
    $region17: #{classifier_forward.1} parent=1 // pred_fallthru
      _
    // Predicated region
    $region18: #{classifier_forward.1} parent=1 // pred_check
      _
    $region19: #{classifier_forward.1} parent=1 // pred_check_branch
      %65 = sbr.rel (0) target = $region21
    $region20: #{classifier_forward.1} parent=1 // pred_region
      %67 = vsyncadd [#allocation9], 0
      %s69 = sshll.u32 %s4, 4
      %s70 = int_to_ptr.hbm [resolvable:$true] %s69
      %s71 = sshll.u32 [#allocation10], 4
      %s72 = int_to_ptr.vmem [resolvable:$true] %s71
      %74 = dma.hbm_to_vmem [thread:$0]  %s70, 16, %s72, [#allocation9]
    $region21: #{classifier_forward.1} parent=1 // pred_fallthru
      _
    // Predicated region
    $region22: #{classifier_forward.1} parent=1 // pred_check
      _
    $region23: #{classifier_forward.1} parent=1 // pred_check_branch
      %76 = sbr.rel (0) target = $region25
    $region24: #{classifier_forward.1} parent=1 // pred_region
      %78 = dma.done [#allocation3], 16384
    $region25: #{classifier_forward.1} parent=1 // pred_fallthru
      _
    // Predicated region
    $region26: #{classifier_forward.1} parent=1 // pred_check
      _
    $region27: #{classifier_forward.1} parent=1 // pred_check_branch
      %80 = sbr.rel (0) target = $region29
    $region28: #{classifier_forward.1} parent=1 // pred_region
      %82 = dma.done [#allocation6], 65536
    $region29: #{classifier_forward.1} parent=1 // pred_fallthru
      _
    // Predicated region
    $region30: #{classifier_forward.1} parent=1 // pred_check
      _
    $region31: #{classifier_forward.1} parent=1 // pred_check_branch
      %84 = sbr.rel (0) target = $region33
    $region32: #{classifier_forward.1} parent=1 // pred_region
      %86 = dma.done [#allocation6], 128
    $region33: #{classifier_forward.1} parent=1 // pred_fallthru
      _
    // Predicated region
    $region34: #{classifier_forward.1} parent=1 // pred_check
      _
    $region35: #{classifier_forward.1} parent=1 // pred_check_branch
      %88 = sbr.rel (0) target = $region37
    $region36: #{classifier_forward.1} parent=1 // pred_region
      %90 = dma.done [#allocation9], 8192
    $region37: #{classifier_forward.1} parent=1 // pred_fallthru
      _
    // Predicated region
    $region38: #{classifier_forward.1} parent=1 // pred_check
      _
    $region39: #{classifier_forward.1} parent=1 // pred_check_branch
      %92 = sbr.rel (0) target = $region41
    $region40: #{classifier_forward.1} parent=1 // pred_region
      %94 = dma.done [#allocation9], 16
    $region41: #{classifier_forward.1} parent=1 // pred_fallthru
      _
    %v95 = vld [vmem:[#allocation2] sm:$0xff]
    %v96 = vld [vmem:[#allocation2 + $0x8] sm:$0xff]
    %v97 = vld [vmem:[#allocation2 + $0x10] sm:$0xff]
    %v98 = vld [vmem:[#allocation2 + $0x18] sm:$0xff]
    %v99 = vld [vmem:[#allocation2 + $0x20] sm:$0xff]
    %v100 = vld [vmem:[#allocation2 + $0x28] sm:$0xff]
    %v101 = vld [vmem:[#allocation2 + $0x30] sm:$0xff]
    %v102 = vld [vmem:[#allocation2 + $0x38] sm:$0xff]
    %v103 = vld [vmem:[#allocation2 + $0x40] sm:$0xff]
    %v104 = vld [vmem:[#allocation2 + $0x48] sm:$0xff]
    %v105 = vld [vmem:[#allocation2 + $0x50] sm:$0xff]
    %v106 = vld [vmem:[#allocation2 + $0x58] sm:$0xff]
    %v107 = vld [vmem:[#allocation2 + $0x60] sm:$0xff]
    %v108 = vld [vmem:[#allocation2 + $0x68] sm:$0xff]
    %v109 = vld [vmem:[#allocation2 + $0x70] sm:$0xff]
    %v110 = vld [vmem:[#allocation2 + $0x78] sm:$0xff]
    %v111 = vld [vmem:[#allocation2 + $0x80] sm:$0xff]
    %v112 = vld [vmem:[#allocation2 + $0x88] sm:$0xff]
    %v113 = vld [vmem:[#allocation2 + $0x90] sm:$0xff]
    %v114 = vld [vmem:[#allocation2 + $0x98] sm:$0xff]
    %v115 = vld [vmem:[#allocation2 + $0xa0] sm:$0xff]
    %v116 = vld [vmem:[#allocation2 + $0xa8] sm:$0xff]
    %v117 = vld [vmem:[#allocation2 + $0xb0] sm:$0xff]
    %v118 = vld [vmem:[#allocation2 + $0xb8] sm:$0xff]
    %v119 = vld [vmem:[#allocation2 + $0xc0] sm:$0xff]
    %v120 = vld [vmem:[#allocation2 + $0xc8] sm:$0xff]
    %v121 = vld [vmem:[#allocation2 + $0xd0] sm:$0xff]
    %v122 = vld [vmem:[#allocation2 + $0xd8] sm:$0xff]
    %v123 = vld [vmem:[#allocation2 + $0xe0] sm:$0xff]
    %v124 = vld [vmem:[#allocation2 + $0xe8] sm:$0xff]
    %v125 = vld [vmem:[#allocation2 + $0xf0] sm:$0xff]
    %v126 = vld [vmem:[#allocation2 + $0xf8] sm:$0xff]
    %v127 = vld [vmem:[#allocation2 + $0x100] sm:$0xff]
    %v128 = vld [vmem:[#allocation2 + $0x108] sm:$0xff]
    %v129 = vld [vmem:[#allocation2 + $0x110] sm:$0xff]
    %v130 = vld [vmem:[#allocation2 + $0x118] sm:$0xff]
    %v131 = vld [vmem:[#allocation2 + $0x120] sm:$0xff]
    %v132 = vld [vmem:[#allocation2 + $0x128] sm:$0xff]
    %v133 = vld [vmem:[#allocation2 + $0x130] sm:$0xff]
    %v134 = vld [vmem:[#allocation2 + $0x138] sm:$0xff]
    %v135 = vld [vmem:[#allocation2 + $0x140] sm:$0xff]
    %v136 = vld [vmem:[#allocation2 + $0x148] sm:$0xff]
    %v137 = vld [vmem:[#allocation2 + $0x150] sm:$0xff]
    %v138 = vld [vmem:[#allocation2 + $0x158] sm:$0xff]
    %v139 = vld [vmem:[#allocation2 + $0x160] sm:$0xff]
    %v140 = vld [vmem:[#allocation2 + $0x168] sm:$0xff]
    %v141 = vld [vmem:[#allocation2 + $0x170] sm:$0xff]
    %v142 = vld [vmem:[#allocation2 + $0x178] sm:$0xff]
    %v143 = vld [vmem:[#allocation2 + $0x180] sm:$0xff]
    %v144 = vld [vmem:[#allocation2 + $0x188] sm:$0xff]
    %v145 = vld [vmem:[#allocation2 + $0x190] sm:$0xff]
    %v146 = vld [vmem:[#allocation2 + $0x198] sm:$0xff]
    %v147 = vld [vmem:[#allocation2 + $0x1a0] sm:$0xff]
    %v148 = vld [vmem:[#allocation2 + $0x1a8] sm:$0xff]
    %v149 = vld [vmem:[#allocation2 + $0x1b0] sm:$0xff]
    %v150 = vld [vmem:[#allocation2 + $0x1b8] sm:$0xff]
    %v151 = vld [vmem:[#allocation2 + $0x1c0] sm:$0xff]
    %v152 = vld [vmem:[#allocation2 + $0x1c8] sm:$0xff]
    %v153 = vld [vmem:[#allocation2 + $0x1d0] sm:$0xff]
    %v154 = vld [vmem:[#allocation2 + $0x1d8] sm:$0xff]
    %v155 = vld [vmem:[#allocation2 + $0x1e0] sm:$0xff]
    %v156 = vld [vmem:[#allocation2 + $0x1e8] sm:$0xff]
    %v157 = vld [vmem:[#allocation2 + $0x1f0] sm:$0xff]
    %v158 = vld [vmem:[#allocation2 + $0x1f8] sm:$0xff]
    %v159 = vld [vmem:[#allocation2 + $0x200] sm:$0xff]
    %v160 = vld [vmem:[#allocation2 + $0x208] sm:$0xff]
    %v161 = vld [vmem:[#allocation2 + $0x210] sm:$0xff]
    %v162 = vld [vmem:[#allocation2 + $0x218] sm:$0xff]
    %v163 = vld [vmem:[#allocation2 + $0x220] sm:$0xff]
    %v164 = vld [vmem:[#allocation2 + $0x228] sm:$0xff]
    %v165 = vld [vmem:[#allocation2 + $0x230] sm:$0xff]
    %v166 = vld [vmem:[#allocation2 + $0x238] sm:$0xff]
    %v167 = vld [vmem:[#allocation2 + $0x240] sm:$0xff]
    %v168 = vld [vmem:[#allocation2 + $0x248] sm:$0xff]
    %v169 = vld [vmem:[#allocation2 + $0x250] sm:$0xff]
    %v170 = vld [vmem:[#allocation2 + $0x258] sm:$0xff]
    %v171 = vld [vmem:[#allocation2 + $0x260] sm:$0xff]
    %v172 = vld [vmem:[#allocation2 + $0x268] sm:$0xff]
    %v173 = vld [vmem:[#allocation2 + $0x270] sm:$0xff]
    %v174 = vld [vmem:[#allocation2 + $0x278] sm:$0xff]
    %v175 = vld [vmem:[#allocation2 + $0x280] sm:$0xff]
    %v176 = vld [vmem:[#allocation2 + $0x288] sm:$0xff]
    %v177 = vld [vmem:[#allocation2 + $0x290] sm:$0xff]
    %v178 = vld [vmem:[#allocation2 + $0x298] sm:$0xff]
    %v179 = vld [vmem:[#allocation2 + $0x2a0] sm:$0xff]
    %v180 = vld [vmem:[#allocation2 + $0x2a8] sm:$0xff]
    %v181 = vld [vmem:[#allocation2 + $0x2b0] sm:$0xff]
    %v182 = vld [vmem:[#allocation2 + $0x2b8] sm:$0xff]
    %v183 = vld [vmem:[#allocation2 + $0x2c0] sm:$0xff]
    %v184 = vld [vmem:[#allocation2 + $0x2c8] sm:$0xff]
    %v185 = vld [vmem:[#allocation2 + $0x2d0] sm:$0xff]
    %v186 = vld [vmem:[#allocation2 + $0x2d8] sm:$0xff]
    %v187 = vld [vmem:[#allocation2 + $0x2e0] sm:$0xff]
    %v188 = vld [vmem:[#allocation2 + $0x2e8] sm:$0xff]
    %v189 = vld [vmem:[#allocation2 + $0x2f0] sm:$0xff]
    %v190 = vld [vmem:[#allocation2 + $0x2f8] sm:$0xff]
    %v191 = vld [vmem:[#allocation2 + $0x300] sm:$0xff]
    %v192 = vld [vmem:[#allocation2 + $0x308] sm:$0xff]
    %v193 = vld [vmem:[#allocation2 + $0x310] sm:$0xff]
    %v194 = vld [vmem:[#allocation2 + $0x318] sm:$0xff]
    %v195 = vld [vmem:[#allocation2 + $0x320] sm:$0xff]
    %v196 = vld [vmem:[#allocation2 + $0x328] sm:$0xff]
    %v197 = vld [vmem:[#allocation2 + $0x330] sm:$0xff]
    %v198 = vld [vmem:[#allocation2 + $0x338] sm:$0xff]
    %v199 = vld [vmem:[#allocation2 + $0x340] sm:$0xff]
    %v200 = vld [vmem:[#allocation2 + $0x348] sm:$0xff]
    %v201 = vld [vmem:[#allocation2 + $0x350] sm:$0xff]
    %v202 = vld [vmem:[#allocation2 + $0x358] sm:$0xff]
    %v203 = vld [vmem:[#allocation2 + $0x360] sm:$0xff]
    %v204 = vld [vmem:[#allocation2 + $0x368] sm:$0xff]
    %v205 = vld [vmem:[#allocation2 + $0x370] sm:$0xff]
    %v206 = vld [vmem:[#allocation2 + $0x378] sm:$0xff]
    %v207 = vld [vmem:[#allocation2 + $0x380] sm:$0xff]
    %v208 = vld [vmem:[#allocation2 + $0x388] sm:$0xff]
    %v209 = vld [vmem:[#allocation2 + $0x390] sm:$0xff]
    %v210 = vld [vmem:[#allocation2 + $0x398] sm:$0xff]
    %v211 = vld [vmem:[#allocation2 + $0x3a0] sm:$0xff]
    %v212 = vld [vmem:[#allocation2 + $0x3a8] sm:$0xff]
    %v213 = vld [vmem:[#allocation2 + $0x3b0] sm:$0xff]
    %v214 = vld [vmem:[#allocation2 + $0x3b8] sm:$0xff]
    %v215 = vld [vmem:[#allocation2 + $0x3c0] sm:$0xff]
    %v216 = vld [vmem:[#allocation2 + $0x3c8] sm:$0xff]
    %v217 = vld [vmem:[#allocation2 + $0x3d0] sm:$0xff]
    %v218 = vld [vmem:[#allocation2 + $0x3d8] sm:$0xff]
    %v219 = vld [vmem:[#allocation2 + $0x3e0] sm:$0xff]
    %v220 = vld [vmem:[#allocation2 + $0x3e8] sm:$0xff]
    %v221 = vld [vmem:[#allocation2 + $0x3f0] sm:$0xff]
    %v222 = vld [vmem:[#allocation2 + $0x3f8] sm:$0xff]
    %v223 = vadd.f32 %v95, %v103
    %v224 = vrot.slane %v223, 4
    %v225 = vadd.f32 %v223, %v224
    %v226 = vrot.slane %v225, 2
    %v227 = vadd.f32 %v225, %v226
    %v228 = vrot.slane %v227, 1
    %v229 = vadd.f32 %v227, %v228
    %v230 = vadd.f32 %v96, %v104
    %v231 = vrot.slane %v230, 4
    %v232 = vadd.f32 %v230, %v231
    %v233 = vrot.slane %v232, 2
    %v234 = vadd.f32 %v232, %v233
    %v235 = vrot.slane %v234, 1
    %v236 = vadd.f32 %v234, %v235
    %v237 = vadd.f32 %v97, %v105
    %v238 = vrot.slane %v237, 4
    %v239 = vadd.f32 %v237, %v238
    %v240 = vrot.slane %v239, 2
    %v241 = vadd.f32 %v239, %v240
    %v242 = vrot.slane %v241, 1
    %v243 = vadd.f32 %v241, %v242
    %v244 = vadd.f32 %v98, %v106
    %v245 = vrot.slane %v244, 4
    %v246 = vadd.f32 %v244, %v245
    %v247 = vrot.slane %v246, 2
    %v248 = vadd.f32 %v246, %v247
    %v249 = vrot.slane %v248, 1
    %v250 = vadd.f32 %v248, %v249
    %v251 = vadd.f32 %v99, %v107
    %v252 = vrot.slane %v251, 4
    %v253 = vadd.f32 %v251, %v252
    %v254 = vrot.slane %v253, 2
    %v255 = vadd.f32 %v253, %v254
    %v256 = vrot.slane %v255, 1
    %v257 = vadd.f32 %v255, %v256
    %v258 = vadd.f32 %v100, %v108
    %v259 = vrot.slane %v258, 4
    %v260 = vadd.f32 %v258, %v259
    %v261 = vrot.slane %v260, 2
    %v262 = vadd.f32 %v260, %v261
    %v263 = vrot.slane %v262, 1
    %v264 = vadd.f32 %v262, %v263
    %v265 = vadd.f32 %v101, %v109
    %v266 = vrot.slane %v265, 4
    %v267 = vadd.f32 %v265, %v266
    %v268 = vrot.slane %v267, 2
    %v269 = vadd.f32 %v267, %v268
    %v270 = vrot.slane %v269, 1
    %v271 = vadd.f32 %v269, %v270
    %v272 = vadd.f32 %v102, %v110
    %v273 = vrot.slane %v272, 4
    %v274 = vadd.f32 %v272, %v273
    %v275 = vrot.slane %v274, 2
    %v276 = vadd.f32 %v274, %v275
    %v277 = vrot.slane %v276, 1
    %v278 = vadd.f32 %v276, %v277
    %v279 = vadd.f32 %v111, %v119
    %v280 = vrot.slane %v279, 4
    %v281 = vadd.f32 %v279, %v280
    %v282 = vrot.slane %v281, 2
    %v283 = vadd.f32 %v281, %v282
    %v284 = vrot.slane %v283, 1
    %v285 = vadd.f32 %v283, %v284
    %v286 = vadd.f32 %v112, %v120
    %v287 = vrot.slane %v286, 4
    %v288 = vadd.f32 %v286, %v287
    %v289 = vrot.slane %v288, 2
    %v290 = vadd.f32 %v288, %v289
    %v291 = vrot.slane %v290, 1
    %v292 = vadd.f32 %v290, %v291
    %v293 = vadd.f32 %v113, %v121
    %v294 = vrot.slane %v293, 4
    %v295 = vadd.f32 %v293, %v294
    %v296 = vrot.slane %v295, 2
    %v297 = vadd.f32 %v295, %v296
    %v298 = vrot.slane %v297, 1
    %v299 = vadd.f32 %v297, %v298
    %v300 = vadd.f32 %v114, %v122
    %v301 = vrot.slane %v300, 4
    %v302 = vadd.f32 %v300, %v301
    %v303 = vrot.slane %v302, 2
    %v304 = vadd.f32 %v302, %v303
    %v305 = vrot.slane %v304, 1
    %v306 = vadd.f32 %v304, %v305
    %v307 = vadd.f32 %v115, %v123
    %v308 = vrot.slane %v307, 4
    %v309 = vadd.f32 %v307, %v308
    %v310 = vrot.slane %v309, 2
    %v311 = vadd.f32 %v309, %v310
    %v312 = vrot.slane %v311, 1
    %v313 = vadd.f32 %v311, %v312
    %v314 = vadd.f32 %v116, %v124
    %v315 = vrot.slane %v314, 4
    %v316 = vadd.f32 %v314, %v315
    %v317 = vrot.slane %v316, 2
    %v318 = vadd.f32 %v316, %v317
    %v319 = vrot.slane %v318, 1
    %v320 = vadd.f32 %v318, %v319
    %v321 = vadd.f32 %v117, %v125
    %v322 = vrot.slane %v321, 4
    %v323 = vadd.f32 %v321, %v322
    %v324 = vrot.slane %v323, 2
    %v325 = vadd.f32 %v323, %v324
    %v326 = vrot.slane %v325, 1
    %v327 = vadd.f32 %v325, %v326
    %v328 = vadd.f32 %v118, %v126
    %v329 = vrot.slane %v328, 4
    %v330 = vadd.f32 %v328, %v329
    %v331 = vrot.slane %v330, 2
    %v332 = vadd.f32 %v330, %v331
    %v333 = vrot.slane %v332, 1
    %v334 = vadd.f32 %v332, %v333
    %v335 = vadd.f32 %v127, %v135
    %v336 = vrot.slane %v335, 4
    %v337 = vadd.f32 %v335, %v336
    %v338 = vrot.slane %v337, 2
    %v339 = vadd.f32 %v337, %v338
    %v340 = vrot.slane %v339, 1
    %v341 = vadd.f32 %v339, %v340
    %v342 = vadd.f32 %v128, %v136
    %v343 = vrot.slane %v342, 4
    %v344 = vadd.f32 %v342, %v343
    %v345 = vrot.slane %v344, 2
    %v346 = vadd.f32 %v344, %v345
    %v347 = vrot.slane %v346, 1
    %v348 = vadd.f32 %v346, %v347
    %v349 = vadd.f32 %v129, %v137
    %v350 = vrot.slane %v349, 4
    %v351 = vadd.f32 %v349, %v350
    %v352 = vrot.slane %v351, 2
    %v353 = vadd.f32 %v351, %v352
    %v354 = vrot.slane %v353, 1
    %v355 = vadd.f32 %v353, %v354
    %v356 = vadd.f32 %v130, %v138
    %v357 = vrot.slane %v356, 4
    %v358 = vadd.f32 %v356, %v357
    %v359 = vrot.slane %v358, 2
    %v360 = vadd.f32 %v358, %v359
    %v361 = vrot.slane %v360, 1
    %v362 = vadd.f32 %v360, %v361
    %v363 = vadd.f32 %v131, %v139
    %v364 = vrot.slane %v363, 4
    %v365 = vadd.f32 %v363, %v364
    %v366 = vrot.slane %v365, 2
    %v367 = vadd.f32 %v365, %v366
    %v368 = vrot.slane %v367, 1
    %v369 = vadd.f32 %v367, %v368
    %v370 = vadd.f32 %v132, %v140
    %v371 = vrot.slane %v370, 4
    %v372 = vadd.f32 %v370, %v371
    %v373 = vrot.slane %v372, 2
    %v374 = vadd.f32 %v372, %v373
    %v375 = vrot.slane %v374, 1
    %v376 = vadd.f32 %v374, %v375
    %v377 = vadd.f32 %v133, %v141
    %v378 = vrot.slane %v377, 4
    %v379 = vadd.f32 %v377, %v378
    %v380 = vrot.slane %v379, 2
    %v381 = vadd.f32 %v379, %v380
    %v382 = vrot.slane %v381, 1
    %v383 = vadd.f32 %v381, %v382
    %v384 = vadd.f32 %v134, %v142
    %v385 = vrot.slane %v384, 4
    %v386 = vadd.f32 %v384, %v385
    %v387 = vrot.slane %v386, 2
    %v388 = vadd.f32 %v386, %v387
    %v389 = vrot.slane %v388, 1
    %v390 = vadd.f32 %v388, %v389
    %v391 = vadd.f32 %v143, %v151
    %v392 = vrot.slane %v391, 4
    %v393 = vadd.f32 %v391, %v392
    %v394 = vrot.slane %v393, 2
    %v395 = vadd.f32 %v393, %v394
    %v396 = vrot.slane %v395, 1
    %v397 = vadd.f32 %v395, %v396
    %v398 = vadd.f32 %v144, %v152
    %v399 = vrot.slane %v398, 4
    %v400 = vadd.f32 %v398, %v399
    %v401 = vrot.slane %v400, 2
    %v402 = vadd.f32 %v400, %v401
    %v403 = vrot.slane %v402, 1
    %v404 = vadd.f32 %v402, %v403
    %v405 = vadd.f32 %v145, %v153
    %v406 = vrot.slane %v405, 4
    %v407 = vadd.f32 %v405, %v406
    %v408 = vrot.slane %v407, 2
    %v409 = vadd.f32 %v407, %v408
    %v410 = vrot.slane %v409, 1
    %v411 = vadd.f32 %v409, %v410
    %v412 = vadd.f32 %v146, %v154
    %v413 = vrot.slane %v412, 4
    %v414 = vadd.f32 %v412, %v413
    %v415 = vrot.slane %v414, 2
    %v416 = vadd.f32 %v414, %v415
    %v417 = vrot.slane %v416, 1
    %v418 = vadd.f32 %v416, %v417
    %v419 = vadd.f32 %v147, %v155
    %v420 = vrot.slane %v419, 4
    %v421 = vadd.f32 %v419, %v420
    %v422 = vrot.slane %v421, 2
    %v423 = vadd.f32 %v421, %v422
    %v424 = vrot.slane %v423, 1
    %v425 = vadd.f32 %v423, %v424
    %v426 = vadd.f32 %v148, %v156
    %v427 = vrot.slane %v426, 4
    %v428 = vadd.f32 %v426, %v427
    %v429 = vrot.slane %v428, 2
    %v430 = vadd.f32 %v428, %v429
    %v431 = vrot.slane %v430, 1
    %v432 = vadd.f32 %v430, %v431
    %v433 = vadd.f32 %v149, %v157
    %v434 = vrot.slane %v433, 4
    %v435 = vadd.f32 %v433, %v434
    %v436 = vrot.slane %v435, 2
    %v437 = vadd.f32 %v435, %v436
    %v438 = vrot.slane %v437, 1
    %v439 = vadd.f32 %v437, %v438
    %v440 = vadd.f32 %v150, %v158
    %v441 = vrot.slane %v440, 4
    %v442 = vadd.f32 %v440, %v441
    %v443 = vrot.slane %v442, 2
    %v444 = vadd.f32 %v442, %v443
    %v445 = vrot.slane %v444, 1
    %v446 = vadd.f32 %v444, %v445
    %v447 = vadd.f32 %v159, %v167
    %v448 = vrot.slane %v447, 4
    %v449 = vadd.f32 %v447, %v448
    %v450 = vrot.slane %v449, 2
    %v451 = vadd.f32 %v449, %v450
    %v452 = vrot.slane %v451, 1
    %v453 = vadd.f32 %v451, %v452
    %v454 = vadd.f32 %v160, %v168
    %v455 = vrot.slane %v454, 4
    %v456 = vadd.f32 %v454, %v455
    %v457 = vrot.slane %v456, 2
    %v458 = vadd.f32 %v456, %v457
    %v459 = vrot.slane %v458, 1
    %v460 = vadd.f32 %v458, %v459
    %v461 = vadd.f32 %v161, %v169
    %v462 = vrot.slane %v461, 4
    %v463 = vadd.f32 %v461, %v462
    %v464 = vrot.slane %v463, 2
    %v465 = vadd.f32 %v463, %v464
    %v466 = vrot.slane %v465, 1
    %v467 = vadd.f32 %v465, %v466
    %v468 = vadd.f32 %v162, %v170
    %v469 = vrot.slane %v468, 4
    %v470 = vadd.f32 %v468, %v469
    %v471 = vrot.slane %v470, 2
    %v472 = vadd.f32 %v470, %v471
    %v473 = vrot.slane %v472, 1
    %v474 = vadd.f32 %v472, %v473
    %v475 = vadd.f32 %v163, %v171
    %v476 = vrot.slane %v475, 4
    %v477 = vadd.f32 %v475, %v476
    %v478 = vrot.slane %v477, 2
    %v479 = vadd.f32 %v477, %v478
    %v480 = vrot.slane %v479, 1
    %v481 = vadd.f32 %v479, %v480
    %v482 = vadd.f32 %v164, %v172
    %v483 = vrot.slane %v482, 4
    %v484 = vadd.f32 %v482, %v483
    %v485 = vrot.slane %v484, 2
    %v486 = vadd.f32 %v484, %v485
    %v487 = vrot.slane %v486, 1
    %v488 = vadd.f32 %v486, %v487
    %v489 = vadd.f32 %v165, %v173
    %v490 = vrot.slane %v489, 4
    %v491 = vadd.f32 %v489, %v490
    %v492 = vrot.slane %v491, 2
    %v493 = vadd.f32 %v491, %v492
    %v494 = vrot.slane %v493, 1
    %v495 = vadd.f32 %v493, %v494
    %v496 = vadd.f32 %v166, %v174
    %v497 = vrot.slane %v496, 4
    %v498 = vadd.f32 %v496, %v497
    %v499 = vrot.slane %v498, 2
    %v500 = vadd.f32 %v498, %v499
    %v501 = vrot.slane %v500, 1
    %v502 = vadd.f32 %v500, %v501
    %v503 = vadd.f32 %v175, %v183
    %v504 = vrot.slane %v503, 4
    %v505 = vadd.f32 %v503, %v504
    %v506 = vrot.slane %v505, 2
    %v507 = vadd.f32 %v505, %v506
    %v508 = vrot.slane %v507, 1
    %v509 = vadd.f32 %v507, %v508
    %v510 = vadd.f32 %v176, %v184
    %v511 = vrot.slane %v510, 4
    %v512 = vadd.f32 %v510, %v511
    %v513 = vrot.slane %v512, 2
    %v514 = vadd.f32 %v512, %v513
    %v515 = vrot.slane %v514, 1
    %v516 = vadd.f32 %v514, %v515
    %v517 = vadd.f32 %v177, %v185
    %v518 = vrot.slane %v517, 4
    %v519 = vadd.f32 %v517, %v518
    %v520 = vrot.slane %v519, 2
    %v521 = vadd.f32 %v519, %v520
    %v522 = vrot.slane %v521, 1
    %v523 = vadd.f32 %v521, %v522
    %v524 = vadd.f32 %v178, %v186
    %v525 = vrot.slane %v524, 4
    %v526 = vadd.f32 %v524, %v525
    %v527 = vrot.slane %v526, 2
    %v528 = vadd.f32 %v526, %v527
    %v529 = vrot.slane %v528, 1
    %v530 = vadd.f32 %v528, %v529
    %v531 = vadd.f32 %v179, %v187
    %v532 = vrot.slane %v531, 4
    %v533 = vadd.f32 %v531, %v532
    %v534 = vrot.slane %v533, 2
    %v535 = vadd.f32 %v533, %v534
    %v536 = vrot.slane %v535, 1
    %v537 = vadd.f32 %v535, %v536
    %v538 = vadd.f32 %v180, %v188
    %v539 = vrot.slane %v538, 4
    %v540 = vadd.f32 %v538, %v539
    %v541 = vrot.slane %v540, 2
    %v542 = vadd.f32 %v540, %v541
    %v543 = vrot.slane %v542, 1
    %v544 = vadd.f32 %v542, %v543
    %v545 = vadd.f32 %v181, %v189
    %v546 = vrot.slane %v545, 4
    %v547 = vadd.f32 %v545, %v546
    %v548 = vrot.slane %v547, 2
    %v549 = vadd.f32 %v547, %v548
    %v550 = vrot.slane %v549, 1
    %v551 = vadd.f32 %v549, %v550
    %v552 = vadd.f32 %v182, %v190
    %v553 = vrot.slane %v552, 4
    %v554 = vadd.f32 %v552, %v553
    %v555 = vrot.slane %v554, 2
    %v556 = vadd.f32 %v554, %v555
    %v557 = vrot.slane %v556, 1
    %v558 = vadd.f32 %v556, %v557
    %v559 = vadd.f32 %v191, %v199
    %v560 = vrot.slane %v559, 4
    %v561 = vadd.f32 %v559, %v560
    %v562 = vrot.slane %v561, 2
    %v563 = vadd.f32 %v561, %v562
    %v564 = vrot.slane %v563, 1
    %v565 = vadd.f32 %v563, %v564
    %v566 = vadd.f32 %v192, %v200
    %v567 = vrot.slane %v566, 4
    %v568 = vadd.f32 %v566, %v567
    %v569 = vrot.slane %v568, 2
    %v570 = vadd.f32 %v568, %v569
    %v571 = vrot.slane %v570, 1
    %v572 = vadd.f32 %v570, %v571
    %v573 = vadd.f32 %v193, %v201
    %v574 = vrot.slane %v573, 4
    %v575 = vadd.f32 %v573, %v574
    %v576 = vrot.slane %v575, 2
    %v577 = vadd.f32 %v575, %v576
    %v578 = vrot.slane %v577, 1
    %v579 = vadd.f32 %v577, %v578
    %v580 = vadd.f32 %v194, %v202
    %v581 = vrot.slane %v580, 4
    %v582 = vadd.f32 %v580, %v581
    %v583 = vrot.slane %v582, 2
    %v584 = vadd.f32 %v582, %v583
    %v585 = vrot.slane %v584, 1
    %v586 = vadd.f32 %v584, %v585
    %v587 = vadd.f32 %v195, %v203
    %v588 = vrot.slane %v587, 4
    %v589 = vadd.f32 %v587, %v588
    %v590 = vrot.slane %v589, 2
    %v591 = vadd.f32 %v589, %v590
    %v592 = vrot.slane %v591, 1
    %v593 = vadd.f32 %v591, %v592
    %v594 = vadd.f32 %v196, %v204
    %v595 = vrot.slane %v594, 4
    %v596 = vadd.f32 %v594, %v595
    %v597 = vrot.slane %v596, 2
    %v598 = vadd.f32 %v596, %v597
    %v599 = vrot.slane %v598, 1
    %v600 = vadd.f32 %v598, %v599
    %v601 = vadd.f32 %v197, %v205
    %v602 = vrot.slane %v601, 4
    %v603 = vadd.f32 %v601, %v602
    %v604 = vrot.slane %v603, 2
    %v605 = vadd.f32 %v603, %v604
    %v606 = vrot.slane %v605, 1
    %v607 = vadd.f32 %v605, %v606
    %v608 = vadd.f32 %v198, %v206
    %v609 = vrot.slane %v608, 4
    %v610 = vadd.f32 %v608, %v609
    %v611 = vrot.slane %v610, 2
    %v612 = vadd.f32 %v610, %v611
    %v613 = vrot.slane %v612, 1
    %v614 = vadd.f32 %v612, %v613
    %v615 = vadd.f32 %v207, %v215
    %v616 = vrot.slane %v615, 4
    %v617 = vadd.f32 %v615, %v616
    %v618 = vrot.slane %v617, 2
    %v619 = vadd.f32 %v617, %v618
    %v620 = vrot.slane %v619, 1
    %v621 = vadd.f32 %v619, %v620
    %v622 = vadd.f32 %v208, %v216
    %v623 = vrot.slane %v622, 4
    %v624 = vadd.f32 %v622, %v623
    %v625 = vrot.slane %v624, 2
    %v626 = vadd.f32 %v624, %v625
    %v627 = vrot.slane %v626, 1
    %v628 = vadd.f32 %v626, %v627
    %v629 = vadd.f32 %v209, %v217
    %v630 = vrot.slane %v629, 4
    %v631 = vadd.f32 %v629, %v630
    %v632 = vrot.slane %v631, 2
    %v633 = vadd.f32 %v631, %v632
    %v634 = vrot.slane %v633, 1
    %v635 = vadd.f32 %v633, %v634
    %v636 = vadd.f32 %v210, %v218
    %v637 = vrot.slane %v636, 4
    %v638 = vadd.f32 %v636, %v637
    %v639 = vrot.slane %v638, 2
    %v640 = vadd.f32 %v638, %v639
    %v641 = vrot.slane %v640, 1
    %v642 = vadd.f32 %v640, %v641
    %v643 = vadd.f32 %v211, %v219
    %v644 = vrot.slane %v643, 4
    %v645 = vadd.f32 %v643, %v644
    %v646 = vrot.slane %v645, 2
    %v647 = vadd.f32 %v645, %v646
    %v648 = vrot.slane %v647, 1
    %v649 = vadd.f32 %v647, %v648
    %v650 = vadd.f32 %v212, %v220
    %v651 = vrot.slane %v650, 4
    %v652 = vadd.f32 %v650, %v651
    %v653 = vrot.slane %v652, 2
    %v654 = vadd.f32 %v652, %v653
    %v655 = vrot.slane %v654, 1
    %v656 = vadd.f32 %v654, %v655
    %v657 = vadd.f32 %v213, %v221
    %v658 = vrot.slane %v657, 4
    %v659 = vadd.f32 %v657, %v658
    %v660 = vrot.slane %v659, 2
    %v661 = vadd.f32 %v659, %v660
    %v662 = vrot.slane %v661, 1
    %v663 = vadd.f32 %v661, %v662
    %v664 = vadd.f32 %v214, %v222
    %v665 = vrot.slane %v664, 4
    %v666 = vadd.f32 %v664, %v665
    %v667 = vrot.slane %v666, 2
    %v668 = vadd.f32 %v666, %v667
    %v669 = vrot.slane %v668, 1
    %v670 = vadd.f32 %v668, %v669
    %v671 = vrcp.pop 16.0
    %v672 = vmul.f32 16.0, %v671
    %v673 = vsub.f32 1.0, %v672
    %v674 = vmul.f32 %v671, %v673
    %v675 = vadd.f32 %v671, %v674
    %vm676 = vweird.f32 %v671
    %v677 = vsel %vm676, %v671, %v675
    %v678 = vmul.f32 %v229, %v677
    %v679 = vmul.f32 %v236, %v677
    %v680 = vmul.f32 %v243, %v677
    %v681 = vmul.f32 %v250, %v677
    %v682 = vmul.f32 %v257, %v677
    %v683 = vmul.f32 %v264, %v677
    %v684 = vmul.f32 %v271, %v677
    %v685 = vmul.f32 %v278, %v677
    %v686 = vmul.f32 %v285, %v677
    %v687 = vmul.f32 %v292, %v677
    %v688 = vmul.f32 %v299, %v677
    %v689 = vmul.f32 %v306, %v677
    %v690 = vmul.f32 %v313, %v677
    %v691 = vmul.f32 %v320, %v677
    %v692 = vmul.f32 %v327, %v677
    %v693 = vmul.f32 %v334, %v677
    %v694 = vmul.f32 %v341, %v677
    %v695 = vmul.f32 %v348, %v677
    %v696 = vmul.f32 %v355, %v677
    %v697 = vmul.f32 %v362, %v677
    %v698 = vmul.f32 %v369, %v677
    %v699 = vmul.f32 %v376, %v677
    %v700 = vmul.f32 %v383, %v677
    %v701 = vmul.f32 %v390, %v677
    %v702 = vmul.f32 %v397, %v677
    %v703 = vmul.f32 %v404, %v677
    %v704 = vmul.f32 %v411, %v677
    %v705 = vmul.f32 %v418, %v677
    %v706 = vmul.f32 %v425, %v677
    %v707 = vmul.f32 %v432, %v677
    %v708 = vmul.f32 %v439, %v677
    %v709 = vmul.f32 %v446, %v677
    %v710 = vmul.f32 %v453, %v677
    %v711 = vmul.f32 %v460, %v677
    %v712 = vmul.f32 %v467, %v677
    %v713 = vmul.f32 %v474, %v677
    %v714 = vmul.f32 %v481, %v677
    %v715 = vmul.f32 %v488, %v677
    %v716 = vmul.f32 %v495, %v677
    %v717 = vmul.f32 %v502, %v677
    %v718 = vmul.f32 %v509, %v677
    %v719 = vmul.f32 %v516, %v677
    %v720 = vmul.f32 %v523, %v677
    %v721 = vmul.f32 %v530, %v677
    %v722 = vmul.f32 %v537, %v677
    %v723 = vmul.f32 %v544, %v677
    %v724 = vmul.f32 %v551, %v677
    %v725 = vmul.f32 %v558, %v677
    %v726 = vmul.f32 %v565, %v677
    %v727 = vmul.f32 %v572, %v677
    %v728 = vmul.f32 %v579, %v677
    %v729 = vmul.f32 %v586, %v677
    %v730 = vmul.f32 %v593, %v677
    %v731 = vmul.f32 %v600, %v677
    %v732 = vmul.f32 %v607, %v677
    %v733 = vmul.f32 %v614, %v677
    %v734 = vmul.f32 %v621, %v677
    %v735 = vmul.f32 %v628, %v677
    %v736 = vmul.f32 %v635, %v677
    %v737 = vmul.f32 %v642, %v677
    %v738 = vmul.f32 %v649, %v677
    %v739 = vmul.f32 %v656, %v677
    %v740 = vmul.f32 %v663, %v677
    %v741 = vmul.f32 %v670, %v677
    %v742 = vpack.c.bf16 %v678, %v678
    %v743 = vpack.c.bf16 %v679, %v679
    %v744 = vpack.c.bf16 %v680, %v680
    %v745 = vpack.c.bf16 %v681, %v681
    %v746 = vpack.c.bf16 %v682, %v682
    %v747 = vpack.c.bf16 %v683, %v683
    %v748 = vpack.c.bf16 %v684, %v684
    %v749 = vpack.c.bf16 %v685, %v685
    %v750 = vpack.c.bf16 %v686, %v686
    %v751 = vpack.c.bf16 %v687, %v687
    %v752 = vpack.c.bf16 %v688, %v688
    %v753 = vpack.c.bf16 %v689, %v689
    %v754 = vpack.c.bf16 %v690, %v690
    %v755 = vpack.c.bf16 %v691, %v691
    %v756 = vpack.c.bf16 %v692, %v692
    %v757 = vpack.c.bf16 %v693, %v693
    %v758 = vpack.c.bf16 %v694, %v694
    %v759 = vpack.c.bf16 %v695, %v695
    %v760 = vpack.c.bf16 %v696, %v696
    %v761 = vpack.c.bf16 %v697, %v697
    %v762 = vpack.c.bf16 %v698, %v698
    %v763 = vpack.c.bf16 %v699, %v699
    %v764 = vpack.c.bf16 %v700, %v700
    %v765 = vpack.c.bf16 %v701, %v701
    %v766 = vpack.c.bf16 %v702, %v702
    %v767 = vpack.c.bf16 %v703, %v703
    %v768 = vpack.c.bf16 %v704, %v704
    %v769 = vpack.c.bf16 %v705, %v705
    %v770 = vpack.c.bf16 %v706, %v706
    %v771 = vpack.c.bf16 %v707, %v707
    %v772 = vpack.c.bf16 %v708, %v708
    %v773 = vpack.c.bf16 %v709, %v709
    %v774 = vpack.c.bf16 %v710, %v710
    %v775 = vpack.c.bf16 %v711, %v711
    %v776 = vpack.c.bf16 %v712, %v712
    %v777 = vpack.c.bf16 %v713, %v713
    %v778 = vpack.c.bf16 %v714, %v714
    %v779 = vpack.c.bf16 %v715, %v715
    %v780 = vpack.c.bf16 %v716, %v716
    %v781 = vpack.c.bf16 %v717, %v717
    %v782 = vpack.c.bf16 %v718, %v718
    %v783 = vpack.c.bf16 %v719, %v719
    %v784 = vpack.c.bf16 %v720, %v720
    %v785 = vpack.c.bf16 %v721, %v721
    %v786 = vpack.c.bf16 %v722, %v722
    %v787 = vpack.c.bf16 %v723, %v723
    %v788 = vpack.c.bf16 %v724, %v724
    %v789 = vpack.c.bf16 %v725, %v725
    %v790 = vpack.c.bf16 %v726, %v726
    %v791 = vpack.c.bf16 %v727, %v727
    %v792 = vpack.c.bf16 %v728, %v728
    %v793 = vpack.c.bf16 %v729, %v729
    %v794 = vpack.c.bf16 %v730, %v730
    %v795 = vpack.c.bf16 %v731, %v731
    %v796 = vpack.c.bf16 %v732, %v732
    %v797 = vpack.c.bf16 %v733, %v733
    %v798 = vpack.c.bf16 %v734, %v734
    %v799 = vpack.c.bf16 %v735, %v735
    %v800 = vpack.c.bf16 %v736, %v736
    %v801 = vpack.c.bf16 %v737, %v737
    %v802 = vpack.c.bf16 %v738, %v738
    %v803 = vpack.c.bf16 %v739, %v739
    %v804 = vpack.c.bf16 %v740, %v740
    %v805 = vpack.c.bf16 %v741, %v741
    %v806 = vld [vmem:[#allocation5] sm:$0xff]
    %v807 = vld [vmem:[#allocation5 + $0x8] sm:$0xff]
    %v808 = vld [vmem:[#allocation5 + $0x10] sm:$0xff]
    %v809 = vld [vmem:[#allocation5 + $0x18] sm:$0xff]
    %v810 = vld [vmem:[#allocation5 + $0x20] sm:$0xff]
    %v811 = vld [vmem:[#allocation5 + $0x28] sm:$0xff]
    %v812 = vld [vmem:[#allocation5 + $0x30] sm:$0xff]
    %v813 = vld [vmem:[#allocation5 + $0x38] sm:$0xff]
    %v814 = vld [vmem:[#allocation5 + $0x40] sm:$0xff]
    %v815 = vld [vmem:[#allocation5 + $0x48] sm:$0xff]
    %v816 = vld [vmem:[#allocation5 + $0x50] sm:$0xff]
    %v817 = vld [vmem:[#allocation5 + $0x58] sm:$0xff]
    %v818 = vld [vmem:[#allocation5 + $0x60] sm:$0xff]
    %v819 = vld [vmem:[#allocation5 + $0x68] sm:$0xff]
    %v820 = vld [vmem:[#allocation5 + $0x70] sm:$0xff]
    %v821 = vld [vmem:[#allocation5 + $0x78] sm:$0xff]
    %v822 = vld [vmem:[#allocation5 + $0x80] sm:$0xff]
    %v823 = vld [vmem:[#allocation5 + $0x88] sm:$0xff]
    %v824 = vld [vmem:[#allocation5 + $0x90] sm:$0xff]
    %v825 = vld [vmem:[#allocation5 + $0x98] sm:$0xff]
    %v826 = vld [vmem:[#allocation5 + $0xa0] sm:$0xff]
    %v827 = vld [vmem:[#allocation5 + $0xa8] sm:$0xff]
    %v828 = vld [vmem:[#allocation5 + $0xb0] sm:$0xff]
    %v829 = vld [vmem:[#allocation5 + $0xb8] sm:$0xff]
    %v830 = vld [vmem:[#allocation5 + $0xc0] sm:$0xff]
    %v831 = vld [vmem:[#allocation5 + $0xc8] sm:$0xff]
    %v832 = vld [vmem:[#allocation5 + $0xd0] sm:$0xff]
    %v833 = vld [vmem:[#allocation5 + $0xd8] sm:$0xff]
    %v834 = vld [vmem:[#allocation5 + $0xe0] sm:$0xff]
    %v835 = vld [vmem:[#allocation5 + $0xe8] sm:$0xff]
    %v836 = vld [vmem:[#allocation5 + $0xf0] sm:$0xff]
    %v837 = vld [vmem:[#allocation5 + $0xf8] sm:$0xff]
    %v838 = vld [vmem:[#allocation5 + $0x100] sm:$0xff]
    %v839 = vld [vmem:[#allocation5 + $0x108] sm:$0xff]
    %v840 = vld [vmem:[#allocation5 + $0x110] sm:$0xff]
    %v841 = vld [vmem:[#allocation5 + $0x118] sm:$0xff]
    %v842 = vld [vmem:[#allocation5 + $0x120] sm:$0xff]
    %v843 = vld [vmem:[#allocation5 + $0x128] sm:$0xff]
    %v844 = vld [vmem:[#allocation5 + $0x130] sm:$0xff]
    %v845 = vld [vmem:[#allocation5 + $0x138] sm:$0xff]
    %v846 = vld [vmem:[#allocation5 + $0x140] sm:$0xff]
    %v847 = vld [vmem:[#allocation5 + $0x148] sm:$0xff]
    %v848 = vld [vmem:[#allocation5 + $0x150] sm:$0xff]
    %v849 = vld [vmem:[#allocation5 + $0x158] sm:$0xff]
    %v850 = vld [vmem:[#allocation5 + $0x160] sm:$0xff]
    %v851 = vld [vmem:[#allocation5 + $0x168] sm:$0xff]
    %v852 = vld [vmem:[#allocation5 + $0x170] sm:$0xff]
    %v853 = vld [vmem:[#allocation5 + $0x178] sm:$0xff]
    %v854 = vld [vmem:[#allocation5 + $0x180] sm:$0xff]
    %v855 = vld [vmem:[#allocation5 + $0x188] sm:$0xff]
    %v856 = vld [vmem:[#allocation5 + $0x190] sm:$0xff]
    %v857 = vld [vmem:[#allocation5 + $0x198] sm:$0xff]
    %v858 = vld [vmem:[#allocation5 + $0x1a0] sm:$0xff]
    %v859 = vld [vmem:[#allocation5 + $0x1a8] sm:$0xff]
    %v860 = vld [vmem:[#allocation5 + $0x1b0] sm:$0xff]
    %v861 = vld [vmem:[#allocation5 + $0x1b8] sm:$0xff]
    %v862 = vld [vmem:[#allocation5 + $0x1c0] sm:$0xff]
    %v863 = vld [vmem:[#allocation5 + $0x1c8] sm:$0xff]
    %v864 = vld [vmem:[#allocation5 + $0x1d0] sm:$0xff]
    %v865 = vld [vmem:[#allocation5 + $0x1d8] sm:$0xff]
    %v866 = vld [vmem:[#allocation5 + $0x1e0] sm:$0xff]
    %v867 = vld [vmem:[#allocation5 + $0x1e8] sm:$0xff]
    %v868 = vld [vmem:[#allocation5 + $0x1f0] sm:$0xff]
    %v869 = vld [vmem:[#allocation5 + $0x1f8] sm:$0xff]
    %v870 = vld [vmem:[#allocation5 + $0x200] sm:$0xff]
    %v871 = vld [vmem:[#allocation5 + $0x208] sm:$0xff]
    %v872 = vld [vmem:[#allocation5 + $0x210] sm:$0xff]
    %v873 = vld [vmem:[#allocation5 + $0x218] sm:$0xff]
    %v874 = vld [vmem:[#allocation5 + $0x220] sm:$0xff]
    %v875 = vld [vmem:[#allocation5 + $0x228] sm:$0xff]
    %v876 = vld [vmem:[#allocation5 + $0x230] sm:$0xff]
    %v877 = vld [vmem:[#allocation5 + $0x238] sm:$0xff]
    %v878 = vld [vmem:[#allocation5 + $0x240] sm:$0xff]
    %v879 = vld [vmem:[#allocation5 + $0x248] sm:$0xff]
    %v880 = vld [vmem:[#allocation5 + $0x250] sm:$0xff]
    %v881 = vld [vmem:[#allocation5 + $0x258] sm:$0xff]
    %v882 = vld [vmem:[#allocation5 + $0x260] sm:$0xff]
    %v883 = vld [vmem:[#allocation5 + $0x268] sm:$0xff]
    %v884 = vld [vmem:[#allocation5 + $0x270] sm:$0xff]
    %v885 = vld [vmem:[#allocation5 + $0x278] sm:$0xff]
    %v886 = vld [vmem:[#allocation5 + $0x280] sm:$0xff]
    %v887 = vld [vmem:[#allocation5 + $0x288] sm:$0xff]
    %v888 = vld [vmem:[#allocation5 + $0x290] sm:$0xff]
    %v889 = vld [vmem:[#allocation5 + $0x298] sm:$0xff]
    %v890 = vld [vmem:[#allocation5 + $0x2a0] sm:$0xff]
    %v891 = vld [vmem:[#allocation5 + $0x2a8] sm:$0xff]
    %v892 = vld [vmem:[#allocation5 + $0x2b0] sm:$0xff]
    %v893 = vld [vmem:[#allocation5 + $0x2b8] sm:$0xff]
    %v894 = vld [vmem:[#allocation5 + $0x2c0] sm:$0xff]
    %v895 = vld [vmem:[#allocation5 + $0x2c8] sm:$0xff]
    %v896 = vld [vmem:[#allocation5 + $0x2d0] sm:$0xff]
    %v897 = vld [vmem:[#allocation5 + $0x2d8] sm:$0xff]
    %v898 = vld [vmem:[#allocation5 + $0x2e0] sm:$0xff]
    %v899 = vld [vmem:[#allocation5 + $0x2e8] sm:$0xff]
    %v900 = vld [vmem:[#allocation5 + $0x2f0] sm:$0xff]
    %v901 = vld [vmem:[#allocation5 + $0x2f8] sm:$0xff]
    %v902 = vld [vmem:[#allocation5 + $0x300] sm:$0xff]
    %v903 = vld [vmem:[#allocation5 + $0x308] sm:$0xff]
    %v904 = vld [vmem:[#allocation5 + $0x310] sm:$0xff]
    %v905 = vld [vmem:[#allocation5 + $0x318] sm:$0xff]
    %v906 = vld [vmem:[#allocation5 + $0x320] sm:$0xff]
    %v907 = vld [vmem:[#allocation5 + $0x328] sm:$0xff]
    %v908 = vld [vmem:[#allocation5 + $0x330] sm:$0xff]
    %v909 = vld [vmem:[#allocation5 + $0x338] sm:$0xff]
    %v910 = vld [vmem:[#allocation5 + $0x340] sm:$0xff]
    %v911 = vld [vmem:[#allocation5 + $0x348] sm:$0xff]
    %v912 = vld [vmem:[#allocation5 + $0x350] sm:$0xff]
    %v913 = vld [vmem:[#allocation5 + $0x358] sm:$0xff]
    %v914 = vld [vmem:[#allocation5 + $0x360] sm:$0xff]
    %v915 = vld [vmem:[#allocation5 + $0x368] sm:$0xff]
    %v916 = vld [vmem:[#allocation5 + $0x370] sm:$0xff]
    %v917 = vld [vmem:[#allocation5 + $0x378] sm:$0xff]
    %v918 = vld [vmem:[#allocation5 + $0x380] sm:$0xff]
    %v919 = vld [vmem:[#allocation5 + $0x388] sm:$0xff]
    %v920 = vld [vmem:[#allocation5 + $0x390] sm:$0xff]
    %v921 = vld [vmem:[#allocation5 + $0x398] sm:$0xff]
    %v922 = vld [vmem:[#allocation5 + $0x3a0] sm:$0xff]
    %v923 = vld [vmem:[#allocation5 + $0x3a8] sm:$0xff]
    %v924 = vld [vmem:[#allocation5 + $0x3b0] sm:$0xff]
    %v925 = vld [vmem:[#allocation5 + $0x3b8] sm:$0xff]
    %v926 = vld [vmem:[#allocation5 + $0x3c0] sm:$0xff]
    %v927 = vld [vmem:[#allocation5 + $0x3c8] sm:$0xff]
    %v928 = vld [vmem:[#allocation5 + $0x3d0] sm:$0xff]
    %v929 = vld [vmem:[#allocation5 + $0x3d8] sm:$0xff]
    %v930 = vld [vmem:[#allocation5 + $0x3e0] sm:$0xff]
    %v931 = vld [vmem:[#allocation5 + $0x3e8] sm:$0xff]
    %v932 = vld [vmem:[#allocation5 + $0x3f0] sm:$0xff]
    %v933 = vld [vmem:[#allocation5 + $0x3f8] sm:$0xff]
    %v934 = vld [vmem:[#allocation5 + $0x400] sm:$0xff]
    %v935 = vld [vmem:[#allocation5 + $0x408] sm:$0xff]
    %v936 = vld [vmem:[#allocation5 + $0x410] sm:$0xff]
    %v937 = vld [vmem:[#allocation5 + $0x418] sm:$0xff]
    %v938 = vld [vmem:[#allocation5 + $0x420] sm:$0xff]
    %v939 = vld [vmem:[#allocation5 + $0x428] sm:$0xff]
    %v940 = vld [vmem:[#allocation5 + $0x430] sm:$0xff]
    %v941 = vld [vmem:[#allocation5 + $0x438] sm:$0xff]
    %v942 = vld [vmem:[#allocation5 + $0x440] sm:$0xff]
    %v943 = vld [vmem:[#allocation5 + $0x448] sm:$0xff]
    %v944 = vld [vmem:[#allocation5 + $0x450] sm:$0xff]
    %v945 = vld [vmem:[#allocation5 + $0x458] sm:$0xff]
    %v946 = vld [vmem:[#allocation5 + $0x460] sm:$0xff]
    %v947 = vld [vmem:[#allocation5 + $0x468] sm:$0xff]
    %v948 = vld [vmem:[#allocation5 + $0x470] sm:$0xff]
    %v949 = vld [vmem:[#allocation5 + $0x478] sm:$0xff]
    %v950 = vld [vmem:[#allocation5 + $0x480] sm:$0xff]
    %v951 = vld [vmem:[#allocation5 + $0x488] sm:$0xff]
    %v952 = vld [vmem:[#allocation5 + $0x490] sm:$0xff]
    %v953 = vld [vmem:[#allocation5 + $0x498] sm:$0xff]
    %v954 = vld [vmem:[#allocation5 + $0x4a0] sm:$0xff]
    %v955 = vld [vmem:[#allocation5 + $0x4a8] sm:$0xff]
    %v956 = vld [vmem:[#allocation5 + $0x4b0] sm:$0xff]
    %v957 = vld [vmem:[#allocation5 + $0x4b8] sm:$0xff]
    %v958 = vld [vmem:[#allocation5 + $0x4c0] sm:$0xff]
    %v959 = vld [vmem:[#allocation5 + $0x4c8] sm:$0xff]
    %v960 = vld [vmem:[#allocation5 + $0x4d0] sm:$0xff]
    %v961 = vld [vmem:[#allocation5 + $0x4d8] sm:$0xff]
    %v962 = vld [vmem:[#allocation5 + $0x4e0] sm:$0xff]
    %v963 = vld [vmem:[#allocation5 + $0x4e8] sm:$0xff]
    %v964 = vld [vmem:[#allocation5 + $0x4f0] sm:$0xff]
    %v965 = vld [vmem:[#allocation5 + $0x4f8] sm:$0xff]
    %v966 = vld [vmem:[#allocation5 + $0x500] sm:$0xff]
    %v967 = vld [vmem:[#allocation5 + $0x508] sm:$0xff]
    %v968 = vld [vmem:[#allocation5 + $0x510] sm:$0xff]
    %v969 = vld [vmem:[#allocation5 + $0x518] sm:$0xff]
    %v970 = vld [vmem:[#allocation5 + $0x520] sm:$0xff]
    %v971 = vld [vmem:[#allocation5 + $0x528] sm:$0xff]
    %v972 = vld [vmem:[#allocation5 + $0x530] sm:$0xff]
    %v973 = vld [vmem:[#allocation5 + $0x538] sm:$0xff]
    %v974 = vld [vmem:[#allocation5 + $0x540] sm:$0xff]
    %v975 = vld [vmem:[#allocation5 + $0x548] sm:$0xff]
    %v976 = vld [vmem:[#allocation5 + $0x550] sm:$0xff]
    %v977 = vld [vmem:[#allocation5 + $0x558] sm:$0xff]
    %v978 = vld [vmem:[#allocation5 + $0x560] sm:$0xff]
    %v979 = vld [vmem:[#allocation5 + $0x568] sm:$0xff]
    %v980 = vld [vmem:[#allocation5 + $0x570] sm:$0xff]
    %v981 = vld [vmem:[#allocation5 + $0x578] sm:$0xff]
    %v982 = vld [vmem:[#allocation5 + $0x580] sm:$0xff]
    %v983 = vld [vmem:[#allocation5 + $0x588] sm:$0xff]
    %v984 = vld [vmem:[#allocation5 + $0x590] sm:$0xff]
    %v985 = vld [vmem:[#allocation5 + $0x598] sm:$0xff]
    %v986 = vld [vmem:[#allocation5 + $0x5a0] sm:$0xff]
    %v987 = vld [vmem:[#allocation5 + $0x5a8] sm:$0xff]
    %v988 = vld [vmem:[#allocation5 + $0x5b0] sm:$0xff]
    %v989 = vld [vmem:[#allocation5 + $0x5b8] sm:$0xff]
    %v990 = vld [vmem:[#allocation5 + $0x5c0] sm:$0xff]
    %v991 = vld [vmem:[#allocation5 + $0x5c8] sm:$0xff]
    %v992 = vld [vmem:[#allocation5 + $0x5d0] sm:$0xff]
    %v993 = vld [vmem:[#allocation5 + $0x5d8] sm:$0xff]
    %v994 = vld [vmem:[#allocation5 + $0x5e0] sm:$0xff]
    %v995 = vld [vmem:[#allocation5 + $0x5e8] sm:$0xff]
    %v996 = vld [vmem:[#allocation5 + $0x5f0] sm:$0xff]
    %v997 = vld [vmem:[#allocation5 + $0x5f8] sm:$0xff]
    %v998 = vld [vmem:[#allocation5 + $0x600] sm:$0xff]
    %v999 = vld [vmem:[#allocation5 + $0x608] sm:$0xff]
    %v1000 = vld [vmem:[#allocation5 + $0x610] sm:$0xff]
    %v1001 = vld [vmem:[#allocation5 + $0x618] sm:$0xff]
    %v1002 = vld [vmem:[#allocation5 + $0x620] sm:$0xff]
    %v1003 = vld [vmem:[#allocation5 + $0x628] sm:$0xff]
    %v1004 = vld [vmem:[#allocation5 + $0x630] sm:$0xff]
    %v1005 = vld [vmem:[#allocation5 + $0x638] sm:$0xff]
    %v1006 = vld [vmem:[#allocation5 + $0x640] sm:$0xff]
    %v1007 = vld [vmem:[#allocation5 + $0x648] sm:$0xff]
    %v1008 = vld [vmem:[#allocation5 + $0x650] sm:$0xff]
    %v1009 = vld [vmem:[#allocation5 + $0x658] sm:$0xff]
    %v1010 = vld [vmem:[#allocation5 + $0x660] sm:$0xff]
    %v1011 = vld [vmem:[#allocation5 + $0x668] sm:$0xff]
    %v1012 = vld [vmem:[#allocation5 + $0x670] sm:$0xff]
    %v1013 = vld [vmem:[#allocation5 + $0x678] sm:$0xff]
    %v1014 = vld [vmem:[#allocation5 + $0x680] sm:$0xff]
    %v1015 = vld [vmem:[#allocation5 + $0x688] sm:$0xff]
    %v1016 = vld [vmem:[#allocation5 + $0x690] sm:$0xff]
    %v1017 = vld [vmem:[#allocation5 + $0x698] sm:$0xff]
    %v1018 = vld [vmem:[#allocation5 + $0x6a0] sm:$0xff]
    %v1019 = vld [vmem:[#allocation5 + $0x6a8] sm:$0xff]
    %v1020 = vld [vmem:[#allocation5 + $0x6b0] sm:$0xff]
    %v1021 = vld [vmem:[#allocation5 + $0x6b8] sm:$0xff]
    %v1022 = vld [vmem:[#allocation5 + $0x6c0] sm:$0xff]
    %v1023 = vld [vmem:[#allocation5 + $0x6c8] sm:$0xff]
    %v1024 = vld [vmem:[#allocation5 + $0x6d0] sm:$0xff]
    %v1025 = vld [vmem:[#allocation5 + $0x6d8] sm:$0xff]
    %v1026 = vld [vmem:[#allocation5 + $0x6e0] sm:$0xff]
    %v1027 = vld [vmem:[#allocation5 + $0x6e8] sm:$0xff]
    %v1028 = vld [vmem:[#allocation5 + $0x6f0] sm:$0xff]
    %v1029 = vld [vmem:[#allocation5 + $0x6f8] sm:$0xff]
    %v1030 = vld [vmem:[#allocation5 + $0x700] sm:$0xff]
    %v1031 = vld [vmem:[#allocation5 + $0x708] sm:$0xff]
    %v1032 = vld [vmem:[#allocation5 + $0x710] sm:$0xff]
    %v1033 = vld [vmem:[#allocation5 + $0x718] sm:$0xff]
    %v1034 = vld [vmem:[#allocation5 + $0x720] sm:$0xff]
    %v1035 = vld [vmem:[#allocation5 + $0x728] sm:$0xff]
    %v1036 = vld [vmem:[#allocation5 + $0x730] sm:$0xff]
    %v1037 = vld [vmem:[#allocation5 + $0x738] sm:$0xff]
    %v1038 = vld [vmem:[#allocation5 + $0x740] sm:$0xff]
    %v1039 = vld [vmem:[#allocation5 + $0x748] sm:$0xff]
    %v1040 = vld [vmem:[#allocation5 + $0x750] sm:$0xff]
    %v1041 = vld [vmem:[#allocation5 + $0x758] sm:$0xff]
    %v1042 = vld [vmem:[#allocation5 + $0x760] sm:$0xff]
    %v1043 = vld [vmem:[#allocation5 + $0x768] sm:$0xff]
    %v1044 = vld [vmem:[#allocation5 + $0x770] sm:$0xff]
    %v1045 = vld [vmem:[#allocation5 + $0x778] sm:$0xff]
    %v1046 = vld [vmem:[#allocation5 + $0x780] sm:$0xff]
    %v1047 = vld [vmem:[#allocation5 + $0x788] sm:$0xff]
    %v1048 = vld [vmem:[#allocation5 + $0x790] sm:$0xff]
    %v1049 = vld [vmem:[#allocation5 + $0x798] sm:$0xff]
    %v1050 = vld [vmem:[#allocation5 + $0x7a0] sm:$0xff]
    %v1051 = vld [vmem:[#allocation5 + $0x7a8] sm:$0xff]
    %v1052 = vld [vmem:[#allocation5 + $0x7b0] sm:$0xff]
    %v1053 = vld [vmem:[#allocation5 + $0x7b8] sm:$0xff]
    %v1054 = vld [vmem:[#allocation5 + $0x7c0] sm:$0xff]
    %v1055 = vld [vmem:[#allocation5 + $0x7c8] sm:$0xff]
    %v1056 = vld [vmem:[#allocation5 + $0x7d0] sm:$0xff]
    %v1057 = vld [vmem:[#allocation5 + $0x7d8] sm:$0xff]
    %v1058 = vld [vmem:[#allocation5 + $0x7e0] sm:$0xff]
    %v1059 = vld [vmem:[#allocation5 + $0x7e8] sm:$0xff]
    %v1060 = vld [vmem:[#allocation5 + $0x7f0] sm:$0xff]
    %v1061 = vld [vmem:[#allocation5 + $0x7f8] sm:$0xff]
    %v1062 = vld [vmem:[#allocation5 + $0x800] sm:$0xff]
    %v1063 = vld [vmem:[#allocation5 + $0x808] sm:$0xff]
    %v1064 = vld [vmem:[#allocation5 + $0x810] sm:$0xff]
    %v1065 = vld [vmem:[#allocation5 + $0x818] sm:$0xff]
    %v1066 = vld [vmem:[#allocation5 + $0x820] sm:$0xff]
    %v1067 = vld [vmem:[#allocation5 + $0x828] sm:$0xff]
    %v1068 = vld [vmem:[#allocation5 + $0x830] sm:$0xff]
    %v1069 = vld [vmem:[#allocation5 + $0x838] sm:$0xff]
    %v1070 = vld [vmem:[#allocation5 + $0x840] sm:$0xff]
    %v1071 = vld [vmem:[#allocation5 + $0x848] sm:$0xff]
    %v1072 = vld [vmem:[#allocation5 + $0x850] sm:$0xff]
    %v1073 = vld [vmem:[#allocation5 + $0x858] sm:$0xff]
    %v1074 = vld [vmem:[#allocation5 + $0x860] sm:$0xff]
    %v1075 = vld [vmem:[#allocation5 + $0x868] sm:$0xff]
    %v1076 = vld [vmem:[#allocation5 + $0x870] sm:$0xff]
    %v1077 = vld [vmem:[#allocation5 + $0x878] sm:$0xff]
    %v1078 = vld [vmem:[#allocation5 + $0x880] sm:$0xff]
    %v1079 = vld [vmem:[#allocation5 + $0x888] sm:$0xff]
    %v1080 = vld [vmem:[#allocation5 + $0x890] sm:$0xff]
    %v1081 = vld [vmem:[#allocation5 + $0x898] sm:$0xff]
    %v1082 = vld [vmem:[#allocation5 + $0x8a0] sm:$0xff]
    %v1083 = vld [vmem:[#allocation5 + $0x8a8] sm:$0xff]
    %v1084 = vld [vmem:[#allocation5 + $0x8b0] sm:$0xff]
    %v1085 = vld [vmem:[#allocation5 + $0x8b8] sm:$0xff]
    %v1086 = vld [vmem:[#allocation5 + $0x8c0] sm:$0xff]
    %v1087 = vld [vmem:[#allocation5 + $0x8c8] sm:$0xff]
    %v1088 = vld [vmem:[#allocation5 + $0x8d0] sm:$0xff]
    %v1089 = vld [vmem:[#allocation5 + $0x8d8] sm:$0xff]
    %v1090 = vld [vmem:[#allocation5 + $0x8e0] sm:$0xff]
    %v1091 = vld [vmem:[#allocation5 + $0x8e8] sm:$0xff]
    %v1092 = vld [vmem:[#allocation5 + $0x8f0] sm:$0xff]
    %v1093 = vld [vmem:[#allocation5 + $0x8f8] sm:$0xff]
    %v1094 = vld [vmem:[#allocation5 + $0x900] sm:$0xff]
    %v1095 = vld [vmem:[#allocation5 + $0x908] sm:$0xff]
    %v1096 = vld [vmem:[#allocation5 + $0x910] sm:$0xff]
    %v1097 = vld [vmem:[#allocation5 + $0x918] sm:$0xff]
    %v1098 = vld [vmem:[#allocation5 + $0x920] sm:$0xff]
    %v1099 = vld [vmem:[#allocation5 + $0x928] sm:$0xff]
    %v1100 = vld [vmem:[#allocation5 + $0x930] sm:$0xff]
    %v1101 = vld [vmem:[#allocation5 + $0x938] sm:$0xff]
    %v1102 = vld [vmem:[#allocation5 + $0x940] sm:$0xff]
    %v1103 = vld [vmem:[#allocation5 + $0x948] sm:$0xff]
    %v1104 = vld [vmem:[#allocation5 + $0x950] sm:$0xff]
    %v1105 = vld [vmem:[#allocation5 + $0x958] sm:$0xff]
    %v1106 = vld [vmem:[#allocation5 + $0x960] sm:$0xff]
    %v1107 = vld [vmem:[#allocation5 + $0x968] sm:$0xff]
    %v1108 = vld [vmem:[#allocation5 + $0x970] sm:$0xff]
    %v1109 = vld [vmem:[#allocation5 + $0x978] sm:$0xff]
    %v1110 = vld [vmem:[#allocation5 + $0x980] sm:$0xff]
    %v1111 = vld [vmem:[#allocation5 + $0x988] sm:$0xff]
    %v1112 = vld [vmem:[#allocation5 + $0x990] sm:$0xff]
    %v1113 = vld [vmem:[#allocation5 + $0x998] sm:$0xff]
    %v1114 = vld [vmem:[#allocation5 + $0x9a0] sm:$0xff]
    %v1115 = vld [vmem:[#allocation5 + $0x9a8] sm:$0xff]
    %v1116 = vld [vmem:[#allocation5 + $0x9b0] sm:$0xff]
    %v1117 = vld [vmem:[#allocation5 + $0x9b8] sm:$0xff]
    %v1118 = vld [vmem:[#allocation5 + $0x9c0] sm:$0xff]
    %v1119 = vld [vmem:[#allocation5 + $0x9c8] sm:$0xff]
    %v1120 = vld [vmem:[#allocation5 + $0x9d0] sm:$0xff]
    %v1121 = vld [vmem:[#allocation5 + $0x9d8] sm:$0xff]
    %v1122 = vld [vmem:[#allocation5 + $0x9e0] sm:$0xff]
    %v1123 = vld [vmem:[#allocation5 + $0x9e8] sm:$0xff]
    %v1124 = vld [vmem:[#allocation5 + $0x9f0] sm:$0xff]
    %v1125 = vld [vmem:[#allocation5 + $0x9f8] sm:$0xff]
    %v1126 = vld [vmem:[#allocation5 + $0xa00] sm:$0xff]
    %v1127 = vld [vmem:[#allocation5 + $0xa08] sm:$0xff]
    %v1128 = vld [vmem:[#allocation5 + $0xa10] sm:$0xff]
    %v1129 = vld [vmem:[#allocation5 + $0xa18] sm:$0xff]
    %v1130 = vld [vmem:[#allocation5 + $0xa20] sm:$0xff]
    %v1131 = vld [vmem:[#allocation5 + $0xa28] sm:$0xff]
    %v1132 = vld [vmem:[#allocation5 + $0xa30] sm:$0xff]
    %v1133 = vld [vmem:[#allocation5 + $0xa38] sm:$0xff]
    %v1134 = vld [vmem:[#allocation5 + $0xa40] sm:$0xff]
    %v1135 = vld [vmem:[#allocation5 + $0xa48] sm:$0xff]
    %v1136 = vld [vmem:[#allocation5 + $0xa50] sm:$0xff]
    %v1137 = vld [vmem:[#allocation5 + $0xa58] sm:$0xff]
    %v1138 = vld [vmem:[#allocation5 + $0xa60] sm:$0xff]
    %v1139 = vld [vmem:[#allocation5 + $0xa68] sm:$0xff]
    %v1140 = vld [vmem:[#allocation5 + $0xa70] sm:$0xff]
    %v1141 = vld [vmem:[#allocation5 + $0xa78] sm:$0xff]
    %v1142 = vld [vmem:[#allocation5 + $0xa80] sm:$0xff]
    %v1143 = vld [vmem:[#allocation5 + $0xa88] sm:$0xff]
    %v1144 = vld [vmem:[#allocation5 + $0xa90] sm:$0xff]
    %v1145 = vld [vmem:[#allocation5 + $0xa98] sm:$0xff]
    %v1146 = vld [vmem:[#allocation5 + $0xaa0] sm:$0xff]
    %v1147 = vld [vmem:[#allocation5 + $0xaa8] sm:$0xff]
    %v1148 = vld [vmem:[#allocation5 + $0xab0] sm:$0xff]
    %v1149 = vld [vmem:[#allocation5 + $0xab8] sm:$0xff]
    %v1150 = vld [vmem:[#allocation5 + $0xac0] sm:$0xff]
    %v1151 = vld [vmem:[#allocation5 + $0xac8] sm:$0xff]
    %v1152 = vld [vmem:[#allocation5 + $0xad0] sm:$0xff]
    %v1153 = vld [vmem:[#allocation5 + $0xad8] sm:$0xff]
    %v1154 = vld [vmem:[#allocation5 + $0xae0] sm:$0xff]
    %v1155 = vld [vmem:[#allocation5 + $0xae8] sm:$0xff]
    %v1156 = vld [vmem:[#allocation5 + $0xaf0] sm:$0xff]
    %v1157 = vld [vmem:[#allocation5 + $0xaf8] sm:$0xff]
    %v1158 = vld [vmem:[#allocation5 + $0xb00] sm:$0xff]
    %v1159 = vld [vmem:[#allocation5 + $0xb08] sm:$0xff]
    %v1160 = vld [vmem:[#allocation5 + $0xb10] sm:$0xff]
    %v1161 = vld [vmem:[#allocation5 + $0xb18] sm:$0xff]
    %v1162 = vld [vmem:[#allocation5 + $0xb20] sm:$0xff]
    %v1163 = vld [vmem:[#allocation5 + $0xb28] sm:$0xff]
    %v1164 = vld [vmem:[#allocation5 + $0xb30] sm:$0xff]
    %v1165 = vld [vmem:[#allocation5 + $0xb38] sm:$0xff]
    %v1166 = vld [vmem:[#allocation5 + $0xb40] sm:$0xff]
    %v1167 = vld [vmem:[#allocation5 + $0xb48] sm:$0xff]
    %v1168 = vld [vmem:[#allocation5 + $0xb50] sm:$0xff]
    %v1169 = vld [vmem:[#allocation5 + $0xb58] sm:$0xff]
    %v1170 = vld [vmem:[#allocation5 + $0xb60] sm:$0xff]
    %v1171 = vld [vmem:[#allocation5 + $0xb68] sm:$0xff]
    %v1172 = vld [vmem:[#allocation5 + $0xb70] sm:$0xff]
    %v1173 = vld [vmem:[#allocation5 + $0xb78] sm:$0xff]
    %v1174 = vld [vmem:[#allocation5 + $0xb80] sm:$0xff]
    %v1175 = vld [vmem:[#allocation5 + $0xb88] sm:$0xff]
    %v1176 = vld [vmem:[#allocation5 + $0xb90] sm:$0xff]
    %v1177 = vld [vmem:[#allocation5 + $0xb98] sm:$0xff]
    %v1178 = vld [vmem:[#allocation5 + $0xba0] sm:$0xff]
    %v1179 = vld [vmem:[#allocation5 + $0xba8] sm:$0xff]
    %v1180 = vld [vmem:[#allocation5 + $0xbb0] sm:$0xff]
    %v1181 = vld [vmem:[#allocation5 + $0xbb8] sm:$0xff]
    %v1182 = vld [vmem:[#allocation5 + $0xbc0] sm:$0xff]
    %v1183 = vld [vmem:[#allocation5 + $0xbc8] sm:$0xff]
    %v1184 = vld [vmem:[#allocation5 + $0xbd0] sm:$0xff]
    %v1185 = vld [vmem:[#allocation5 + $0xbd8] sm:$0xff]
    %v1186 = vld [vmem:[#allocation5 + $0xbe0] sm:$0xff]
    %v1187 = vld [vmem:[#allocation5 + $0xbe8] sm:$0xff]
    %v1188 = vld [vmem:[#allocation5 + $0xbf0] sm:$0xff]
    %v1189 = vld [vmem:[#allocation5 + $0xbf8] sm:$0xff]
    %v1190 = vld [vmem:[#allocation5 + $0xc00] sm:$0xff]
    %v1191 = vld [vmem:[#allocation5 + $0xc08] sm:$0xff]
    %v1192 = vld [vmem:[#allocation5 + $0xc10] sm:$0xff]
    %v1193 = vld [vmem:[#allocation5 + $0xc18] sm:$0xff]
    %v1194 = vld [vmem:[#allocation5 + $0xc20] sm:$0xff]
    %v1195 = vld [vmem:[#allocation5 + $0xc28] sm:$0xff]
    %v1196 = vld [vmem:[#allocation5 + $0xc30] sm:$0xff]
    %v1197 = vld [vmem:[#allocation5 + $0xc38] sm:$0xff]
    %v1198 = vld [vmem:[#allocation5 + $0xc40] sm:$0xff]
    %v1199 = vld [vmem:[#allocation5 + $0xc48] sm:$0xff]
    %v1200 = vld [vmem:[#allocation5 + $0xc50] sm:$0xff]
    %v1201 = vld [vmem:[#allocation5 + $0xc58] sm:$0xff]
    %v1202 = vld [vmem:[#allocation5 + $0xc60] sm:$0xff]
    %v1203 = vld [vmem:[#allocation5 + $0xc68] sm:$0xff]
    %v1204 = vld [vmem:[#allocation5 + $0xc70] sm:$0xff]
    %v1205 = vld [vmem:[#allocation5 + $0xc78] sm:$0xff]
    %v1206 = vld [vmem:[#allocation5 + $0xc80] sm:$0xff]
    %v1207 = vld [vmem:[#allocation5 + $0xc88] sm:$0xff]
    %v1208 = vld [vmem:[#allocation5 + $0xc90] sm:$0xff]
    %v1209 = vld [vmem:[#allocation5 + $0xc98] sm:$0xff]
    %v1210 = vld [vmem:[#allocation5 + $0xca0] sm:$0xff]
    %v1211 = vld [vmem:[#allocation5 + $0xca8] sm:$0xff]
    %v1212 = vld [vmem:[#allocation5 + $0xcb0] sm:$0xff]
    %v1213 = vld [vmem:[#allocation5 + $0xcb8] sm:$0xff]
    %v1214 = vld [vmem:[#allocation5 + $0xcc0] sm:$0xff]
    %v1215 = vld [vmem:[#allocation5 + $0xcc8] sm:$0xff]
    %v1216 = vld [vmem:[#allocation5 + $0xcd0] sm:$0xff]
    %v1217 = vld [vmem:[#allocation5 + $0xcd8] sm:$0xff]
    %v1218 = vld [vmem:[#allocation5 + $0xce0] sm:$0xff]
    %v1219 = vld [vmem:[#allocation5 + $0xce8] sm:$0xff]
    %v1220 = vld [vmem:[#allocation5 + $0xcf0] sm:$0xff]
    %v1221 = vld [vmem:[#allocation5 + $0xcf8] sm:$0xff]
    %v1222 = vld [vmem:[#allocation5 + $0xd00] sm:$0xff]
    %v1223 = vld [vmem:[#allocation5 + $0xd08] sm:$0xff]
    %v1224 = vld [vmem:[#allocation5 + $0xd10] sm:$0xff]
    %v1225 = vld [vmem:[#allocation5 + $0xd18] sm:$0xff]
    %v1226 = vld [vmem:[#allocation5 + $0xd20] sm:$0xff]
    %v1227 = vld [vmem:[#allocation5 + $0xd28] sm:$0xff]
    %v1228 = vld [vmem:[#allocation5 + $0xd30] sm:$0xff]
    %v1229 = vld [vmem:[#allocation5 + $0xd38] sm:$0xff]
    %v1230 = vld [vmem:[#allocation5 + $0xd40] sm:$0xff]
    %v1231 = vld [vmem:[#allocation5 + $0xd48] sm:$0xff]
    %v1232 = vld [vmem:[#allocation5 + $0xd50] sm:$0xff]
    %v1233 = vld [vmem:[#allocation5 + $0xd58] sm:$0xff]
    %v1234 = vld [vmem:[#allocation5 + $0xd60] sm:$0xff]
    %v1235 = vld [vmem:[#allocation5 + $0xd68] sm:$0xff]
    %v1236 = vld [vmem:[#allocation5 + $0xd70] sm:$0xff]
    %v1237 = vld [vmem:[#allocation5 + $0xd78] sm:$0xff]
    %v1238 = vld [vmem:[#allocation5 + $0xd80] sm:$0xff]
    %v1239 = vld [vmem:[#allocation5 + $0xd88] sm:$0xff]
    %v1240 = vld [vmem:[#allocation5 + $0xd90] sm:$0xff]
    %v1241 = vld [vmem:[#allocation5 + $0xd98] sm:$0xff]
    %v1242 = vld [vmem:[#allocation5 + $0xda0] sm:$0xff]
    %v1243 = vld [vmem:[#allocation5 + $0xda8] sm:$0xff]
    %v1244 = vld [vmem:[#allocation5 + $0xdb0] sm:$0xff]
    %v1245 = vld [vmem:[#allocation5 + $0xdb8] sm:$0xff]
    %v1246 = vld [vmem:[#allocation5 + $0xdc0] sm:$0xff]
    %v1247 = vld [vmem:[#allocation5 + $0xdc8] sm:$0xff]
    %v1248 = vld [vmem:[#allocation5 + $0xdd0] sm:$0xff]
    %v1249 = vld [vmem:[#allocation5 + $0xdd8] sm:$0xff]
    %v1250 = vld [vmem:[#allocation5 + $0xde0] sm:$0xff]
    %v1251 = vld [vmem:[#allocation5 + $0xde8] sm:$0xff]
    %v1252 = vld [vmem:[#allocation5 + $0xdf0] sm:$0xff]
    %v1253 = vld [vmem:[#allocation5 + $0xdf8] sm:$0xff]
    %v1254 = vld [vmem:[#allocation5 + $0xe00] sm:$0xff]
    %v1255 = vld [vmem:[#allocation5 + $0xe08] sm:$0xff]
    %v1256 = vld [vmem:[#allocation5 + $0xe10] sm:$0xff]
    %v1257 = vld [vmem:[#allocation5 + $0xe18] sm:$0xff]
    %v1258 = vld [vmem:[#allocation5 + $0xe20] sm:$0xff]
    %v1259 = vld [vmem:[#allocation5 + $0xe28] sm:$0xff]
    %v1260 = vld [vmem:[#allocation5 + $0xe30] sm:$0xff]
    %v1261 = vld [vmem:[#allocation5 + $0xe38] sm:$0xff]
    %v1262 = vld [vmem:[#allocation5 + $0xe40] sm:$0xff]
    %v1263 = vld [vmem:[#allocation5 + $0xe48] sm:$0xff]
    %v1264 = vld [vmem:[#allocation5 + $0xe50] sm:$0xff]
    %v1265 = vld [vmem:[#allocation5 + $0xe58] sm:$0xff]
    %v1266 = vld [vmem:[#allocation5 + $0xe60] sm:$0xff]
    %v1267 = vld [vmem:[#allocation5 + $0xe68] sm:$0xff]
    %v1268 = vld [vmem:[#allocation5 + $0xe70] sm:$0xff]
    %v1269 = vld [vmem:[#allocation5 + $0xe78] sm:$0xff]
    %v1270 = vld [vmem:[#allocation5 + $0xe80] sm:$0xff]
    %v1271 = vld [vmem:[#allocation5 + $0xe88] sm:$0xff]
    %v1272 = vld [vmem:[#allocation5 + $0xe90] sm:$0xff]
    %v1273 = vld [vmem:[#allocation5 + $0xe98] sm:$0xff]
    %v1274 = vld [vmem:[#allocation5 + $0xea0] sm:$0xff]
    %v1275 = vld [vmem:[#allocation5 + $0xea8] sm:$0xff]
    %v1276 = vld [vmem:[#allocation5 + $0xeb0] sm:$0xff]
    %v1277 = vld [vmem:[#allocation5 + $0xeb8] sm:$0xff]
    %v1278 = vld [vmem:[#allocation5 + $0xec0] sm:$0xff]
    %v1279 = vld [vmem:[#allocation5 + $0xec8] sm:$0xff]
    %v1280 = vld [vmem:[#allocation5 + $0xed0] sm:$0xff]
    %v1281 = vld [vmem:[#allocation5 + $0xed8] sm:$0xff]
    %v1282 = vld [vmem:[#allocation5 + $0xee0] sm:$0xff]
    %v1283 = vld [vmem:[#allocation5 + $0xee8] sm:$0xff]
    %v1284 = vld [vmem:[#allocation5 + $0xef0] sm:$0xff]
    %v1285 = vld [vmem:[#allocation5 + $0xef8] sm:$0xff]
    %v1286 = vld [vmem:[#allocation5 + $0xf00] sm:$0xff]
    %v1287 = vld [vmem:[#allocation5 + $0xf08] sm:$0xff]
    %v1288 = vld [vmem:[#allocation5 + $0xf10] sm:$0xff]
    %v1289 = vld [vmem:[#allocation5 + $0xf18] sm:$0xff]
    %v1290 = vld [vmem:[#allocation5 + $0xf20] sm:$0xff]
    %v1291 = vld [vmem:[#allocation5 + $0xf28] sm:$0xff]
    %v1292 = vld [vmem:[#allocation5 + $0xf30] sm:$0xff]
    %v1293 = vld [vmem:[#allocation5 + $0xf38] sm:$0xff]
    %v1294 = vld [vmem:[#allocation5 + $0xf40] sm:$0xff]
    %v1295 = vld [vmem:[#allocation5 + $0xf48] sm:$0xff]
    %v1296 = vld [vmem:[#allocation5 + $0xf50] sm:$0xff]
    %v1297 = vld [vmem:[#allocation5 + $0xf58] sm:$0xff]
    %v1298 = vld [vmem:[#allocation5 + $0xf60] sm:$0xff]
    %v1299 = vld [vmem:[#allocation5 + $0xf68] sm:$0xff]
    %v1300 = vld [vmem:[#allocation5 + $0xf70] sm:$0xff]
    %v1301 = vld [vmem:[#allocation5 + $0xf78] sm:$0xff]
    %v1302 = vld [vmem:[#allocation5 + $0xf80] sm:$0xff]
    %v1303 = vld [vmem:[#allocation5 + $0xf88] sm:$0xff]
    %v1304 = vld [vmem:[#allocation5 + $0xf90] sm:$0xff]
    %v1305 = vld [vmem:[#allocation5 + $0xf98] sm:$0xff]
    %v1306 = vld [vmem:[#allocation5 + $0xfa0] sm:$0xff]
    %v1307 = vld [vmem:[#allocation5 + $0xfa8] sm:$0xff]
    %v1308 = vld [vmem:[#allocation5 + $0xfb0] sm:$0xff]
    %v1309 = vld [vmem:[#allocation5 + $0xfb8] sm:$0xff]
    %v1310 = vld [vmem:[#allocation5 + $0xfc0] sm:$0xff]
    %v1311 = vld [vmem:[#allocation5 + $0xfc8] sm:$0xff]
    %v1312 = vld [vmem:[#allocation5 + $0xfd0] sm:$0xff]
    %v1313 = vld [vmem:[#allocation5 + $0xfd8] sm:$0xff]
    %v1314 = vld [vmem:[#allocation5 + $0xfe0] sm:$0xff]
    %v1315 = vld [vmem:[#allocation5 + $0xfe8] sm:$0xff]
    %v1316 = vld [vmem:[#allocation5 + $0xff0] sm:$0xff]
    %v1317 = vld [vmem:[#allocation5 + $0xff8] sm:$0xff]
    %v1318 = vld [vmem:[#allocation7] sm:$0xff]
    %v1320 = vperm.slane %v1318, 0
    %v1321 = vperm.slane %v1318, 1
    %v1322 = vperm.slane %v1318, 2
    %v1323 = vperm.slane %v1318, 3
    %v1324 = vperm.slane %v1318, 4
    %v1325 = vperm.slane %v1318, 5
    %v1326 = vperm.slane %v1318, 6
    %v1327 = vperm.slane %v1318, 7
    %v1400 = vunpack.c.l.b16 %v742
    %v1401 = vunpack.c.l.b16 %v743
    %v1402 = vunpack.c.l.b16 %v744
    %v1403 = vunpack.c.l.b16 %v745
    %v1404 = vunpack.c.l.b16 %v746
    %v1405 = vunpack.c.l.b16 %v747
    %v1406 = vunpack.c.l.b16 %v748
    %v1407 = vunpack.c.l.b16 %v749
    %v1408 = vunpack.c.l.b16 %v750
    %v1409 = vunpack.c.l.b16 %v751
    %v1410 = vunpack.c.l.b16 %v752
    %v1411 = vunpack.c.l.b16 %v753
    %v1412 = vunpack.c.l.b16 %v754
    %v1413 = vunpack.c.l.b16 %v755
    %v1414 = vunpack.c.l.b16 %v756
    %v1415 = vunpack.c.l.b16 %v757
    %v1416 = vunpack.c.l.b16 %v758
    %v1417 = vunpack.c.l.b16 %v759
    %v1418 = vunpack.c.l.b16 %v760
    %v1419 = vunpack.c.l.b16 %v761
    %v1420 = vunpack.c.l.b16 %v762
    %v1421 = vunpack.c.l.b16 %v763
    %v1422 = vunpack.c.l.b16 %v764
    %v1423 = vunpack.c.l.b16 %v765
    %v1424 = vunpack.c.l.b16 %v766
    %v1425 = vunpack.c.l.b16 %v767
    %v1426 = vunpack.c.l.b16 %v768
    %v1427 = vunpack.c.l.b16 %v769
    %v1428 = vunpack.c.l.b16 %v770
    %v1429 = vunpack.c.l.b16 %v771
    %v1430 = vunpack.c.l.b16 %v772
    %v1431 = vunpack.c.l.b16 %v773
    %v1432 = vunpack.c.l.b16 %v774
    %v1433 = vunpack.c.l.b16 %v775
    %v1434 = vunpack.c.l.b16 %v776
    %v1435 = vunpack.c.l.b16 %v777
    %v1436 = vunpack.c.l.b16 %v778
    %v1437 = vunpack.c.l.b16 %v779
    %v1438 = vunpack.c.l.b16 %v780
    %v1439 = vunpack.c.l.b16 %v781
    %v1440 = vunpack.c.l.b16 %v782
    %v1441 = vunpack.c.l.b16 %v783
    %v1442 = vunpack.c.l.b16 %v784
    %v1443 = vunpack.c.l.b16 %v785
    %v1444 = vunpack.c.l.b16 %v786
    %v1445 = vunpack.c.l.b16 %v787
    %v1446 = vunpack.c.l.b16 %v788
    %v1447 = vunpack.c.l.b16 %v789
    %v1448 = vunpack.c.l.b16 %v790
    %v1449 = vunpack.c.l.b16 %v791
    %v1450 = vunpack.c.l.b16 %v792
    %v1451 = vunpack.c.l.b16 %v793
    %v1452 = vunpack.c.l.b16 %v794
    %v1453 = vunpack.c.l.b16 %v795
    %v1454 = vunpack.c.l.b16 %v796
    %v1455 = vunpack.c.l.b16 %v797
    %v1456 = vunpack.c.l.b16 %v798
    %v1457 = vunpack.c.l.b16 %v799
    %v1458 = vunpack.c.l.b16 %v800
    %v1459 = vunpack.c.l.b16 %v801
    %v1460 = vunpack.c.l.b16 %v802
    %v1461 = vunpack.c.l.b16 %v803
    %v1462 = vunpack.c.l.b16 %v804
    %v1463 = vunpack.c.l.b16 %v805
    %vm1464 = vcmask 1041409
    %v1465 = vsel %vm1464, %v1408, %v1400
    %vm1466 = vcmask 1042434
    %v1467 = vsel %vm1466, %v1416, %v1465
    %vm1468 = vcmask 1043459
    %v1469 = vsel %vm1468, %v1424, %v1467
    %vm1470 = vcmask 1044484
    %v1471 = vsel %vm1470, %v1432, %v1469
    %vm1472 = vcmask 1045509
    %v1473 = vsel %vm1472, %v1440, %v1471
    %vm1474 = vcmask 1046534
    %v1475 = vsel %vm1474, %v1448, %v1473
    %vm1476 = vcmask 1047559
    %v1477 = vsel %vm1476, %v1456, %v1475
    %v1478 = vsel %vm1464, %v1409, %v1401
    %v1479 = vsel %vm1466, %v1417, %v1478
    %v1480 = vsel %vm1468, %v1425, %v1479
    %v1481 = vsel %vm1470, %v1433, %v1480
    %v1482 = vsel %vm1472, %v1441, %v1481
    %v1483 = vsel %vm1474, %v1449, %v1482
    %v1484 = vsel %vm1476, %v1457, %v1483
    %v1485 = vsel %vm1464, %v1410, %v1402
    %v1486 = vsel %vm1466, %v1418, %v1485
    %v1487 = vsel %vm1468, %v1426, %v1486
    %v1488 = vsel %vm1470, %v1434, %v1487
    %v1489 = vsel %vm1472, %v1442, %v1488
    %v1490 = vsel %vm1474, %v1450, %v1489
    %v1491 = vsel %vm1476, %v1458, %v1490
    %v1492 = vsel %vm1464, %v1411, %v1403
    %v1493 = vsel %vm1466, %v1419, %v1492
    %v1494 = vsel %vm1468, %v1427, %v1493
    %v1495 = vsel %vm1470, %v1435, %v1494
    %v1496 = vsel %vm1472, %v1443, %v1495
    %v1497 = vsel %vm1474, %v1451, %v1496
    %v1498 = vsel %vm1476, %v1459, %v1497
    %v1499 = vsel %vm1464, %v1412, %v1404
    %v1500 = vsel %vm1466, %v1420, %v1499
    %v1501 = vsel %vm1468, %v1428, %v1500
    %v1502 = vsel %vm1470, %v1436, %v1501
    %v1503 = vsel %vm1472, %v1444, %v1502
    %v1504 = vsel %vm1474, %v1452, %v1503
    %v1505 = vsel %vm1476, %v1460, %v1504
    %v1506 = vsel %vm1464, %v1413, %v1405
    %v1507 = vsel %vm1466, %v1421, %v1506
    %v1508 = vsel %vm1468, %v1429, %v1507
    %v1509 = vsel %vm1470, %v1437, %v1508
    %v1510 = vsel %vm1472, %v1445, %v1509
    %v1511 = vsel %vm1474, %v1453, %v1510
    %v1512 = vsel %vm1476, %v1461, %v1511
    %v1513 = vsel %vm1464, %v1414, %v1406
    %v1514 = vsel %vm1466, %v1422, %v1513
    %v1515 = vsel %vm1468, %v1430, %v1514
    %v1516 = vsel %vm1470, %v1438, %v1515
    %v1517 = vsel %vm1472, %v1446, %v1516
    %v1518 = vsel %vm1474, %v1454, %v1517
    %v1519 = vsel %vm1476, %v1462, %v1518
    %v1520 = vsel %vm1464, %v1415, %v1407
    %v1521 = vsel %vm1466, %v1423, %v1520
    %v1522 = vsel %vm1468, %v1431, %v1521
    %v1523 = vsel %vm1470, %v1439, %v1522
    %v1524 = vsel %vm1472, %v1447, %v1523
    %v1525 = vsel %vm1474, %v1455, %v1524
    %v1526 = vsel %vm1476, %v1463, %v1525
    %v1527 = vpack.c.b16 %v1477, %v1477
    %v1528 = vpack.c.b16 %v1484, %v1484
    %v1529 = vpack.c.b16 %v1491, %v1491
    %v1530 = vpack.c.b16 %v1498, %v1498
    %v1531 = vpack.c.b16 %v1505, %v1505
    %v1532 = vpack.c.b16 %v1512, %v1512
    %v1533 = vpack.c.b16 %v1519, %v1519
    %v1534 = vpack.c.b16 %v1526, %v1526
    %v2055 = vunpack.c.l.b16 %v806
    %v2056 = vunpack.c.h.b16 %v806
    %v2057 = vunpack.c.l.b16 %v807
    %v2058 = vunpack.c.h.b16 %v807
    %v2059 = vunpack.c.l.b16 %v808
    %v2060 = vunpack.c.h.b16 %v808
    %v2061 = vunpack.c.l.b16 %v809
    %v2062 = vunpack.c.h.b16 %v809
    %v2063 = vunpack.c.l.b16 %v810
    %v2064 = vunpack.c.h.b16 %v810
    %v2065 = vunpack.c.l.b16 %v811
    %v2066 = vunpack.c.h.b16 %v811
    %v2067 = vunpack.c.l.b16 %v812
    %v2068 = vunpack.c.h.b16 %v812
    %v2069 = vunpack.c.l.b16 %v813
    %v2070 = vunpack.c.h.b16 %v813
    %v2071 = vunpack.c.l.b16 %v814
    %v2072 = vunpack.c.h.b16 %v814
    %v2073 = vunpack.c.l.b16 %v815
    %v2074 = vunpack.c.h.b16 %v815
    %v2075 = vunpack.c.l.b16 %v816
    %v2076 = vunpack.c.h.b16 %v816
    %v2077 = vunpack.c.l.b16 %v817
    %v2078 = vunpack.c.h.b16 %v817
    %v2079 = vunpack.c.l.b16 %v818
    %v2080 = vunpack.c.h.b16 %v818
    %v2081 = vunpack.c.l.b16 %v819
    %v2082 = vunpack.c.h.b16 %v819
    %v2083 = vunpack.c.l.b16 %v820
    %v2084 = vunpack.c.h.b16 %v820
    %v2085 = vunpack.c.l.b16 %v821
    %v2086 = vunpack.c.h.b16 %v821
    %v2087 = vunpack.c.l.b16 %v822
    %v2088 = vunpack.c.h.b16 %v822
    %v2089 = vunpack.c.l.b16 %v823
    %v2090 = vunpack.c.h.b16 %v823
    %v2091 = vunpack.c.l.b16 %v824
    %v2092 = vunpack.c.h.b16 %v824
    %v2093 = vunpack.c.l.b16 %v825
    %v2094 = vunpack.c.h.b16 %v825
    %v2095 = vunpack.c.l.b16 %v826
    %v2096 = vunpack.c.h.b16 %v826
    %v2097 = vunpack.c.l.b16 %v827
    %v2098 = vunpack.c.h.b16 %v827
    %v2099 = vunpack.c.l.b16 %v828
    %v2100 = vunpack.c.h.b16 %v828
    %v2101 = vunpack.c.l.b16 %v829
    %v2102 = vunpack.c.h.b16 %v829
    %v2103 = vunpack.c.l.b16 %v830
    %v2104 = vunpack.c.h.b16 %v830
    %v2105 = vunpack.c.l.b16 %v831
    %v2106 = vunpack.c.h.b16 %v831
    %v2107 = vunpack.c.l.b16 %v832
    %v2108 = vunpack.c.h.b16 %v832
    %v2109 = vunpack.c.l.b16 %v833
    %v2110 = vunpack.c.h.b16 %v833
    %v2111 = vunpack.c.l.b16 %v834
    %v2112 = vunpack.c.h.b16 %v834
    %v2113 = vunpack.c.l.b16 %v835
    %v2114 = vunpack.c.h.b16 %v835
    %v2115 = vunpack.c.l.b16 %v836
    %v2116 = vunpack.c.h.b16 %v836
    %v2117 = vunpack.c.l.b16 %v837
    %v2118 = vunpack.c.h.b16 %v837
    %v2119 = vunpack.c.l.b16 %v838
    %v2120 = vunpack.c.h.b16 %v838
    %v2121 = vunpack.c.l.b16 %v839
    %v2122 = vunpack.c.h.b16 %v839
    %v2123 = vunpack.c.l.b16 %v840
    %v2124 = vunpack.c.h.b16 %v840
    %v2125 = vunpack.c.l.b16 %v841
    %v2126 = vunpack.c.h.b16 %v841
    %v2127 = vunpack.c.l.b16 %v842
    %v2128 = vunpack.c.h.b16 %v842
    %v2129 = vunpack.c.l.b16 %v843
    %v2130 = vunpack.c.h.b16 %v843
    %v2131 = vunpack.c.l.b16 %v844
    %v2132 = vunpack.c.h.b16 %v844
    %v2133 = vunpack.c.l.b16 %v845
    %v2134 = vunpack.c.h.b16 %v845
    %v2135 = vunpack.c.l.b16 %v846
    %v2136 = vunpack.c.h.b16 %v846
    %v2137 = vunpack.c.l.b16 %v847
    %v2138 = vunpack.c.h.b16 %v847
    %v2139 = vunpack.c.l.b16 %v848
    %v2140 = vunpack.c.h.b16 %v848
    %v2141 = vunpack.c.l.b16 %v849
    %v2142 = vunpack.c.h.b16 %v849
    %v2143 = vunpack.c.l.b16 %v850
    %v2144 = vunpack.c.h.b16 %v850
    %v2145 = vunpack.c.l.b16 %v851
    %v2146 = vunpack.c.h.b16 %v851
    %v2147 = vunpack.c.l.b16 %v852
    %v2148 = vunpack.c.h.b16 %v852
    %v2149 = vunpack.c.l.b16 %v853
    %v2150 = vunpack.c.h.b16 %v853
    %v2151 = vunpack.c.l.b16 %v854
    %v2152 = vunpack.c.h.b16 %v854
    %v2153 = vunpack.c.l.b16 %v855
    %v2154 = vunpack.c.h.b16 %v855
    %v2155 = vunpack.c.l.b16 %v856
    %v2156 = vunpack.c.h.b16 %v856
    %v2157 = vunpack.c.l.b16 %v857
    %v2158 = vunpack.c.h.b16 %v857
    %v2159 = vunpack.c.l.b16 %v858
    %v2160 = vunpack.c.h.b16 %v858
    %v2161 = vunpack.c.l.b16 %v859
    %v2162 = vunpack.c.h.b16 %v859
    %v2163 = vunpack.c.l.b16 %v860
    %v2164 = vunpack.c.h.b16 %v860
    %v2165 = vunpack.c.l.b16 %v861
    %v2166 = vunpack.c.h.b16 %v861
    %v2167 = vunpack.c.l.b16 %v862
    %v2168 = vunpack.c.h.b16 %v862
    %v2169 = vunpack.c.l.b16 %v863
    %v2170 = vunpack.c.h.b16 %v863
    %v2171 = vunpack.c.l.b16 %v864
    %v2172 = vunpack.c.h.b16 %v864
    %v2173 = vunpack.c.l.b16 %v865
    %v2174 = vunpack.c.h.b16 %v865
    %v2175 = vunpack.c.l.b16 %v866
    %v2176 = vunpack.c.h.b16 %v866
    %v2177 = vunpack.c.l.b16 %v867
    %v2178 = vunpack.c.h.b16 %v867
    %v2179 = vunpack.c.l.b16 %v868
    %v2180 = vunpack.c.h.b16 %v868
    %v2181 = vunpack.c.l.b16 %v869
    %v2182 = vunpack.c.h.b16 %v869
    %v2183 = vunpack.c.l.b16 %v870
    %v2184 = vunpack.c.h.b16 %v870
    %v2185 = vunpack.c.l.b16 %v871
    %v2186 = vunpack.c.h.b16 %v871
    %v2187 = vunpack.c.l.b16 %v872
    %v2188 = vunpack.c.h.b16 %v872
    %v2189 = vunpack.c.l.b16 %v873
    %v2190 = vunpack.c.h.b16 %v873
    %v2191 = vunpack.c.l.b16 %v874
    %v2192 = vunpack.c.h.b16 %v874
    %v2193 = vunpack.c.l.b16 %v875
    %v2194 = vunpack.c.h.b16 %v875
    %v2195 = vunpack.c.l.b16 %v876
    %v2196 = vunpack.c.h.b16 %v876
    %v2197 = vunpack.c.l.b16 %v877
    %v2198 = vunpack.c.h.b16 %v877
    %v2199 = vunpack.c.l.b16 %v878
    %v2200 = vunpack.c.h.b16 %v878
    %v2201 = vunpack.c.l.b16 %v879
    %v2202 = vunpack.c.h.b16 %v879
    %v2203 = vunpack.c.l.b16 %v880
    %v2204 = vunpack.c.h.b16 %v880
    %v2205 = vunpack.c.l.b16 %v881
    %v2206 = vunpack.c.h.b16 %v881
    %v2207 = vunpack.c.l.b16 %v882
    %v2208 = vunpack.c.h.b16 %v882
    %v2209 = vunpack.c.l.b16 %v883
    %v2210 = vunpack.c.h.b16 %v883
    %v2211 = vunpack.c.l.b16 %v884
    %v2212 = vunpack.c.h.b16 %v884
    %v2213 = vunpack.c.l.b16 %v885
    %v2214 = vunpack.c.h.b16 %v885
    %v2215 = vunpack.c.l.b16 %v886
    %v2216 = vunpack.c.h.b16 %v886
    %v2217 = vunpack.c.l.b16 %v887
    %v2218 = vunpack.c.h.b16 %v887
    %v2219 = vunpack.c.l.b16 %v888
    %v2220 = vunpack.c.h.b16 %v888
    %v2221 = vunpack.c.l.b16 %v889
    %v2222 = vunpack.c.h.b16 %v889
    %v2223 = vunpack.c.l.b16 %v890
    %v2224 = vunpack.c.h.b16 %v890
    %v2225 = vunpack.c.l.b16 %v891
    %v2226 = vunpack.c.h.b16 %v891
    %v2227 = vunpack.c.l.b16 %v892
    %v2228 = vunpack.c.h.b16 %v892
    %v2229 = vunpack.c.l.b16 %v893
    %v2230 = vunpack.c.h.b16 %v893
    %v2231 = vunpack.c.l.b16 %v894
    %v2232 = vunpack.c.h.b16 %v894
    %v2233 = vunpack.c.l.b16 %v895
    %v2234 = vunpack.c.h.b16 %v895
    %v2235 = vunpack.c.l.b16 %v896
    %v2236 = vunpack.c.h.b16 %v896
    %v2237 = vunpack.c.l.b16 %v897
    %v2238 = vunpack.c.h.b16 %v897
    %v2239 = vunpack.c.l.b16 %v898
    %v2240 = vunpack.c.h.b16 %v898
    %v2241 = vunpack.c.l.b16 %v899
    %v2242 = vunpack.c.h.b16 %v899
    %v2243 = vunpack.c.l.b16 %v900
    %v2244 = vunpack.c.h.b16 %v900
    %v2245 = vunpack.c.l.b16 %v901
    %v2246 = vunpack.c.h.b16 %v901
    %v2247 = vunpack.c.l.b16 %v902
    %v2248 = vunpack.c.h.b16 %v902
    %v2249 = vunpack.c.l.b16 %v903
    %v2250 = vunpack.c.h.b16 %v903
    %v2251 = vunpack.c.l.b16 %v904
    %v2252 = vunpack.c.h.b16 %v904
    %v2253 = vunpack.c.l.b16 %v905
    %v2254 = vunpack.c.h.b16 %v905
    %v2255 = vunpack.c.l.b16 %v906
    %v2256 = vunpack.c.h.b16 %v906
    %v2257 = vunpack.c.l.b16 %v907
    %v2258 = vunpack.c.h.b16 %v907
    %v2259 = vunpack.c.l.b16 %v908
    %v2260 = vunpack.c.h.b16 %v908
    %v2261 = vunpack.c.l.b16 %v909
    %v2262 = vunpack.c.h.b16 %v909
    %v2263 = vunpack.c.l.b16 %v910
    %v2264 = vunpack.c.h.b16 %v910
    %v2265 = vunpack.c.l.b16 %v911
    %v2266 = vunpack.c.h.b16 %v911
    %v2267 = vunpack.c.l.b16 %v912
    %v2268 = vunpack.c.h.b16 %v912
    %v2269 = vunpack.c.l.b16 %v913
    %v2270 = vunpack.c.h.b16 %v913
    %v2271 = vunpack.c.l.b16 %v914
    %v2272 = vunpack.c.h.b16 %v914
    %v2273 = vunpack.c.l.b16 %v915
    %v2274 = vunpack.c.h.b16 %v915
    %v2275 = vunpack.c.l.b16 %v916
    %v2276 = vunpack.c.h.b16 %v916
    %v2277 = vunpack.c.l.b16 %v917
    %v2278 = vunpack.c.h.b16 %v917
    %v2279 = vunpack.c.l.b16 %v918
    %v2280 = vunpack.c.h.b16 %v918
    %v2281 = vunpack.c.l.b16 %v919
    %v2282 = vunpack.c.h.b16 %v919
    %v2283 = vunpack.c.l.b16 %v920
    %v2284 = vunpack.c.h.b16 %v920
    %v2285 = vunpack.c.l.b16 %v921
    %v2286 = vunpack.c.h.b16 %v921
    %v2287 = vunpack.c.l.b16 %v922
    %v2288 = vunpack.c.h.b16 %v922
    %v2289 = vunpack.c.l.b16 %v923
    %v2290 = vunpack.c.h.b16 %v923
    %v2291 = vunpack.c.l.b16 %v924
    %v2292 = vunpack.c.h.b16 %v924
    %v2293 = vunpack.c.l.b16 %v925
    %v2294 = vunpack.c.h.b16 %v925
    %v2295 = vunpack.c.l.b16 %v926
    %v2296 = vunpack.c.h.b16 %v926
    %v2297 = vunpack.c.l.b16 %v927
    %v2298 = vunpack.c.h.b16 %v927
    %v2299 = vunpack.c.l.b16 %v928
    %v2300 = vunpack.c.h.b16 %v928
    %v2301 = vunpack.c.l.b16 %v929
    %v2302 = vunpack.c.h.b16 %v929
    %v2303 = vunpack.c.l.b16 %v930
    %v2304 = vunpack.c.h.b16 %v930
    %v2305 = vunpack.c.l.b16 %v931
    %v2306 = vunpack.c.h.b16 %v931
    %v2307 = vunpack.c.l.b16 %v932
    %v2308 = vunpack.c.h.b16 %v932
    %v2309 = vunpack.c.l.b16 %v933
    %v2310 = vunpack.c.h.b16 %v933
    %v2311 = vunpack.c.l.b16 %v934
    %v2312 = vunpack.c.h.b16 %v934
    %v2313 = vunpack.c.l.b16 %v935
    %v2314 = vunpack.c.h.b16 %v935
    %v2315 = vunpack.c.l.b16 %v936
    %v2316 = vunpack.c.h.b16 %v936
    %v2317 = vunpack.c.l.b16 %v937
    %v2318 = vunpack.c.h.b16 %v937
    %v2319 = vunpack.c.l.b16 %v938
    %v2320 = vunpack.c.h.b16 %v938
    %v2321 = vunpack.c.l.b16 %v939
    %v2322 = vunpack.c.h.b16 %v939
    %v2323 = vunpack.c.l.b16 %v940
    %v2324 = vunpack.c.h.b16 %v940
    %v2325 = vunpack.c.l.b16 %v941
    %v2326 = vunpack.c.h.b16 %v941
    %v2327 = vunpack.c.l.b16 %v942
    %v2328 = vunpack.c.h.b16 %v942
    %v2329 = vunpack.c.l.b16 %v943
    %v2330 = vunpack.c.h.b16 %v943
    %v2331 = vunpack.c.l.b16 %v944
    %v2332 = vunpack.c.h.b16 %v944
    %v2333 = vunpack.c.l.b16 %v945
    %v2334 = vunpack.c.h.b16 %v945
    %v2335 = vunpack.c.l.b16 %v946
    %v2336 = vunpack.c.h.b16 %v946
    %v2337 = vunpack.c.l.b16 %v947
    %v2338 = vunpack.c.h.b16 %v947
    %v2339 = vunpack.c.l.b16 %v948
    %v2340 = vunpack.c.h.b16 %v948
    %v2341 = vunpack.c.l.b16 %v949
    %v2342 = vunpack.c.h.b16 %v949
    %v2343 = vunpack.c.l.b16 %v950
    %v2344 = vunpack.c.h.b16 %v950
    %v2345 = vunpack.c.l.b16 %v951
    %v2346 = vunpack.c.h.b16 %v951
    %v2347 = vunpack.c.l.b16 %v952
    %v2348 = vunpack.c.h.b16 %v952
    %v2349 = vunpack.c.l.b16 %v953
    %v2350 = vunpack.c.h.b16 %v953
    %v2351 = vunpack.c.l.b16 %v954
    %v2352 = vunpack.c.h.b16 %v954
    %v2353 = vunpack.c.l.b16 %v955
    %v2354 = vunpack.c.h.b16 %v955
    %v2355 = vunpack.c.l.b16 %v956
    %v2356 = vunpack.c.h.b16 %v956
    %v2357 = vunpack.c.l.b16 %v957
    %v2358 = vunpack.c.h.b16 %v957
    %v2359 = vunpack.c.l.b16 %v958
    %v2360 = vunpack.c.h.b16 %v958
    %v2361 = vunpack.c.l.b16 %v959
    %v2362 = vunpack.c.h.b16 %v959
    %v2363 = vunpack.c.l.b16 %v960
    %v2364 = vunpack.c.h.b16 %v960
    %v2365 = vunpack.c.l.b16 %v961
    %v2366 = vunpack.c.h.b16 %v961
    %v2367 = vunpack.c.l.b16 %v962
    %v2368 = vunpack.c.h.b16 %v962
    %v2369 = vunpack.c.l.b16 %v963
    %v2370 = vunpack.c.h.b16 %v963
    %v2371 = vunpack.c.l.b16 %v964
    %v2372 = vunpack.c.h.b16 %v964
    %v2373 = vunpack.c.l.b16 %v965
    %v2374 = vunpack.c.h.b16 %v965
    %v2375 = vunpack.c.l.b16 %v966
    %v2376 = vunpack.c.h.b16 %v966
    %v2377 = vunpack.c.l.b16 %v967
    %v2378 = vunpack.c.h.b16 %v967
    %v2379 = vunpack.c.l.b16 %v968
    %v2380 = vunpack.c.h.b16 %v968
    %v2381 = vunpack.c.l.b16 %v969
    %v2382 = vunpack.c.h.b16 %v969
    %v2383 = vunpack.c.l.b16 %v970
    %v2384 = vunpack.c.h.b16 %v970
    %v2385 = vunpack.c.l.b16 %v971
    %v2386 = vunpack.c.h.b16 %v971
    %v2387 = vunpack.c.l.b16 %v972
    %v2388 = vunpack.c.h.b16 %v972
    %v2389 = vunpack.c.l.b16 %v973
    %v2390 = vunpack.c.h.b16 %v973
    %v2391 = vunpack.c.l.b16 %v974
    %v2392 = vunpack.c.h.b16 %v974
    %v2393 = vunpack.c.l.b16 %v975
    %v2394 = vunpack.c.h.b16 %v975
    %v2395 = vunpack.c.l.b16 %v976
    %v2396 = vunpack.c.h.b16 %v976
    %v2397 = vunpack.c.l.b16 %v977
    %v2398 = vunpack.c.h.b16 %v977
    %v2399 = vunpack.c.l.b16 %v978
    %v2400 = vunpack.c.h.b16 %v978
    %v2401 = vunpack.c.l.b16 %v979
    %v2402 = vunpack.c.h.b16 %v979
    %v2403 = vunpack.c.l.b16 %v980
    %v2404 = vunpack.c.h.b16 %v980
    %v2405 = vunpack.c.l.b16 %v981
    %v2406 = vunpack.c.h.b16 %v981
    %v2407 = vunpack.c.l.b16 %v982
    %v2408 = vunpack.c.h.b16 %v982
    %v2409 = vunpack.c.l.b16 %v983
    %v2410 = vunpack.c.h.b16 %v983
    %v2411 = vunpack.c.l.b16 %v984
    %v2412 = vunpack.c.h.b16 %v984
    %v2413 = vunpack.c.l.b16 %v985
    %v2414 = vunpack.c.h.b16 %v985
    %v2415 = vunpack.c.l.b16 %v986
    %v2416 = vunpack.c.h.b16 %v986
    %v2417 = vunpack.c.l.b16 %v987
    %v2418 = vunpack.c.h.b16 %v987
    %v2419 = vunpack.c.l.b16 %v988
    %v2420 = vunpack.c.h.b16 %v988
    %v2421 = vunpack.c.l.b16 %v989
    %v2422 = vunpack.c.h.b16 %v989
    %v2423 = vunpack.c.l.b16 %v990
    %v2424 = vunpack.c.h.b16 %v990
    %v2425 = vunpack.c.l.b16 %v991
    %v2426 = vunpack.c.h.b16 %v991
    %v2427 = vunpack.c.l.b16 %v992
    %v2428 = vunpack.c.h.b16 %v992
    %v2429 = vunpack.c.l.b16 %v993
    %v2430 = vunpack.c.h.b16 %v993
    %v2431 = vunpack.c.l.b16 %v994
    %v2432 = vunpack.c.h.b16 %v994
    %v2433 = vunpack.c.l.b16 %v995
    %v2434 = vunpack.c.h.b16 %v995
    %v2435 = vunpack.c.l.b16 %v996
    %v2436 = vunpack.c.h.b16 %v996
    %v2437 = vunpack.c.l.b16 %v997
    %v2438 = vunpack.c.h.b16 %v997
    %v2439 = vunpack.c.l.b16 %v998
    %v2440 = vunpack.c.h.b16 %v998
    %v2441 = vunpack.c.l.b16 %v999
    %v2442 = vunpack.c.h.b16 %v999
    %v2443 = vunpack.c.l.b16 %v1000
    %v2444 = vunpack.c.h.b16 %v1000
    %v2445 = vunpack.c.l.b16 %v1001
    %v2446 = vunpack.c.h.b16 %v1001
    %v2447 = vunpack.c.l.b16 %v1002
    %v2448 = vunpack.c.h.b16 %v1002
    %v2449 = vunpack.c.l.b16 %v1003
    %v2450 = vunpack.c.h.b16 %v1003
    %v2451 = vunpack.c.l.b16 %v1004
    %v2452 = vunpack.c.h.b16 %v1004
    %v2453 = vunpack.c.l.b16 %v1005
    %v2454 = vunpack.c.h.b16 %v1005
    %v2455 = vunpack.c.l.b16 %v1006
    %v2456 = vunpack.c.h.b16 %v1006
    %v2457 = vunpack.c.l.b16 %v1007
    %v2458 = vunpack.c.h.b16 %v1007
    %v2459 = vunpack.c.l.b16 %v1008
    %v2460 = vunpack.c.h.b16 %v1008
    %v2461 = vunpack.c.l.b16 %v1009
    %v2462 = vunpack.c.h.b16 %v1009
    %v2463 = vunpack.c.l.b16 %v1010
    %v2464 = vunpack.c.h.b16 %v1010
    %v2465 = vunpack.c.l.b16 %v1011
    %v2466 = vunpack.c.h.b16 %v1011
    %v2467 = vunpack.c.l.b16 %v1012
    %v2468 = vunpack.c.h.b16 %v1012
    %v2469 = vunpack.c.l.b16 %v1013
    %v2470 = vunpack.c.h.b16 %v1013
    %v2471 = vunpack.c.l.b16 %v1014
    %v2472 = vunpack.c.h.b16 %v1014
    %v2473 = vunpack.c.l.b16 %v1015
    %v2474 = vunpack.c.h.b16 %v1015
    %v2475 = vunpack.c.l.b16 %v1016
    %v2476 = vunpack.c.h.b16 %v1016
    %v2477 = vunpack.c.l.b16 %v1017
    %v2478 = vunpack.c.h.b16 %v1017
    %v2479 = vunpack.c.l.b16 %v1018
    %v2480 = vunpack.c.h.b16 %v1018
    %v2481 = vunpack.c.l.b16 %v1019
    %v2482 = vunpack.c.h.b16 %v1019
    %v2483 = vunpack.c.l.b16 %v1020
    %v2484 = vunpack.c.h.b16 %v1020
    %v2485 = vunpack.c.l.b16 %v1021
    %v2486 = vunpack.c.h.b16 %v1021
    %v2487 = vunpack.c.l.b16 %v1022
    %v2488 = vunpack.c.h.b16 %v1022
    %v2489 = vunpack.c.l.b16 %v1023
    %v2490 = vunpack.c.h.b16 %v1023
    %v2491 = vunpack.c.l.b16 %v1024
    %v2492 = vunpack.c.h.b16 %v1024
    %v2493 = vunpack.c.l.b16 %v1025
    %v2494 = vunpack.c.h.b16 %v1025
    %v2495 = vunpack.c.l.b16 %v1026
    %v2496 = vunpack.c.h.b16 %v1026
    %v2497 = vunpack.c.l.b16 %v1027
    %v2498 = vunpack.c.h.b16 %v1027
    %v2499 = vunpack.c.l.b16 %v1028
    %v2500 = vunpack.c.h.b16 %v1028
    %v2501 = vunpack.c.l.b16 %v1029
    %v2502 = vunpack.c.h.b16 %v1029
    %v2503 = vunpack.c.l.b16 %v1030
    %v2504 = vunpack.c.h.b16 %v1030
    %v2505 = vunpack.c.l.b16 %v1031
    %v2506 = vunpack.c.h.b16 %v1031
    %v2507 = vunpack.c.l.b16 %v1032
    %v2508 = vunpack.c.h.b16 %v1032
    %v2509 = vunpack.c.l.b16 %v1033
    %v2510 = vunpack.c.h.b16 %v1033
    %v2511 = vunpack.c.l.b16 %v1034
    %v2512 = vunpack.c.h.b16 %v1034
    %v2513 = vunpack.c.l.b16 %v1035
    %v2514 = vunpack.c.h.b16 %v1035
    %v2515 = vunpack.c.l.b16 %v1036
    %v2516 = vunpack.c.h.b16 %v1036
    %v2517 = vunpack.c.l.b16 %v1037
    %v2518 = vunpack.c.h.b16 %v1037
    %v2519 = vunpack.c.l.b16 %v1038
    %v2520 = vunpack.c.h.b16 %v1038
    %v2521 = vunpack.c.l.b16 %v1039
    %v2522 = vunpack.c.h.b16 %v1039
    %v2523 = vunpack.c.l.b16 %v1040
    %v2524 = vunpack.c.h.b16 %v1040
    %v2525 = vunpack.c.l.b16 %v1041
    %v2526 = vunpack.c.h.b16 %v1041
    %v2527 = vunpack.c.l.b16 %v1042
    %v2528 = vunpack.c.h.b16 %v1042
    %v2529 = vunpack.c.l.b16 %v1043
    %v2530 = vunpack.c.h.b16 %v1043
    %v2531 = vunpack.c.l.b16 %v1044
    %v2532 = vunpack.c.h.b16 %v1044
    %v2533 = vunpack.c.l.b16 %v1045
    %v2534 = vunpack.c.h.b16 %v1045
    %v2535 = vunpack.c.l.b16 %v1046
    %v2536 = vunpack.c.h.b16 %v1046
    %v2537 = vunpack.c.l.b16 %v1047
    %v2538 = vunpack.c.h.b16 %v1047
    %v2539 = vunpack.c.l.b16 %v1048
    %v2540 = vunpack.c.h.b16 %v1048
    %v2541 = vunpack.c.l.b16 %v1049
    %v2542 = vunpack.c.h.b16 %v1049
    %v2543 = vunpack.c.l.b16 %v1050
    %v2544 = vunpack.c.h.b16 %v1050
    %v2545 = vunpack.c.l.b16 %v1051
    %v2546 = vunpack.c.h.b16 %v1051
    %v2547 = vunpack.c.l.b16 %v1052
    %v2548 = vunpack.c.h.b16 %v1052
    %v2549 = vunpack.c.l.b16 %v1053
    %v2550 = vunpack.c.h.b16 %v1053
    %v2551 = vunpack.c.l.b16 %v1054
    %v2552 = vunpack.c.h.b16 %v1054
    %v2553 = vunpack.c.l.b16 %v1055
    %v2554 = vunpack.c.h.b16 %v1055
    %v2555 = vunpack.c.l.b16 %v1056
    %v2556 = vunpack.c.h.b16 %v1056
    %v2557 = vunpack.c.l.b16 %v1057
    %v2558 = vunpack.c.h.b16 %v1057
    %v2559 = vunpack.c.l.b16 %v1058
    %v2560 = vunpack.c.h.b16 %v1058
    %v2561 = vunpack.c.l.b16 %v1059
    %v2562 = vunpack.c.h.b16 %v1059
    %v2563 = vunpack.c.l.b16 %v1060
    %v2564 = vunpack.c.h.b16 %v1060
    %v2565 = vunpack.c.l.b16 %v1061
    %v2566 = vunpack.c.h.b16 %v1061
    %v2567 = vunpack.c.l.b16 %v1062
    %v2568 = vunpack.c.h.b16 %v1062
    %v2569 = vunpack.c.l.b16 %v1063
    %v2570 = vunpack.c.h.b16 %v1063
    %v2571 = vunpack.c.l.b16 %v1064
    %v2572 = vunpack.c.h.b16 %v1064
    %v2573 = vunpack.c.l.b16 %v1065
    %v2574 = vunpack.c.h.b16 %v1065
    %v2575 = vunpack.c.l.b16 %v1066
    %v2576 = vunpack.c.h.b16 %v1066
    %v2577 = vunpack.c.l.b16 %v1067
    %v2578 = vunpack.c.h.b16 %v1067
    %v2579 = vunpack.c.l.b16 %v1068
    %v2580 = vunpack.c.h.b16 %v1068
    %v2581 = vunpack.c.l.b16 %v1069
    %v2582 = vunpack.c.h.b16 %v1069
    %v2583 = vunpack.c.l.b16 %v1070
    %v2584 = vunpack.c.h.b16 %v1070
    %v2585 = vunpack.c.l.b16 %v1071
    %v2586 = vunpack.c.h.b16 %v1071
    %v2587 = vunpack.c.l.b16 %v1072
    %v2588 = vunpack.c.h.b16 %v1072
    %v2589 = vunpack.c.l.b16 %v1073
    %v2590 = vunpack.c.h.b16 %v1073
    %v2591 = vunpack.c.l.b16 %v1074
    %v2592 = vunpack.c.h.b16 %v1074
    %v2593 = vunpack.c.l.b16 %v1075
    %v2594 = vunpack.c.h.b16 %v1075
    %v2595 = vunpack.c.l.b16 %v1076
    %v2596 = vunpack.c.h.b16 %v1076
    %v2597 = vunpack.c.l.b16 %v1077
    %v2598 = vunpack.c.h.b16 %v1077
    %v2599 = vunpack.c.l.b16 %v1078
    %v2600 = vunpack.c.h.b16 %v1078
    %v2601 = vunpack.c.l.b16 %v1079
    %v2602 = vunpack.c.h.b16 %v1079
    %v2603 = vunpack.c.l.b16 %v1080
    %v2604 = vunpack.c.h.b16 %v1080
    %v2605 = vunpack.c.l.b16 %v1081
    %v2606 = vunpack.c.h.b16 %v1081
    %v2607 = vunpack.c.l.b16 %v1082
    %v2608 = vunpack.c.h.b16 %v1082
    %v2609 = vunpack.c.l.b16 %v1083
    %v2610 = vunpack.c.h.b16 %v1083
    %v2611 = vunpack.c.l.b16 %v1084
    %v2612 = vunpack.c.h.b16 %v1084
    %v2613 = vunpack.c.l.b16 %v1085
    %v2614 = vunpack.c.h.b16 %v1085
    %v2615 = vunpack.c.l.b16 %v1086
    %v2616 = vunpack.c.h.b16 %v1086
    %v2617 = vunpack.c.l.b16 %v1087
    %v2618 = vunpack.c.h.b16 %v1087
    %v2619 = vunpack.c.l.b16 %v1088
    %v2620 = vunpack.c.h.b16 %v1088
    %v2621 = vunpack.c.l.b16 %v1089
    %v2622 = vunpack.c.h.b16 %v1089
    %v2623 = vunpack.c.l.b16 %v1090
    %v2624 = vunpack.c.h.b16 %v1090
    %v2625 = vunpack.c.l.b16 %v1091
    %v2626 = vunpack.c.h.b16 %v1091
    %v2627 = vunpack.c.l.b16 %v1092
    %v2628 = vunpack.c.h.b16 %v1092
    %v2629 = vunpack.c.l.b16 %v1093
    %v2630 = vunpack.c.h.b16 %v1093
    %v2631 = vunpack.c.l.b16 %v1094
    %v2632 = vunpack.c.h.b16 %v1094
    %v2633 = vunpack.c.l.b16 %v1095
    %v2634 = vunpack.c.h.b16 %v1095
    %v2635 = vunpack.c.l.b16 %v1096
    %v2636 = vunpack.c.h.b16 %v1096
    %v2637 = vunpack.c.l.b16 %v1097
    %v2638 = vunpack.c.h.b16 %v1097
    %v2639 = vunpack.c.l.b16 %v1098
    %v2640 = vunpack.c.h.b16 %v1098
    %v2641 = vunpack.c.l.b16 %v1099
    %v2642 = vunpack.c.h.b16 %v1099
    %v2643 = vunpack.c.l.b16 %v1100
    %v2644 = vunpack.c.h.b16 %v1100
    %v2645 = vunpack.c.l.b16 %v1101
    %v2646 = vunpack.c.h.b16 %v1101
    %v2647 = vunpack.c.l.b16 %v1102
    %v2648 = vunpack.c.h.b16 %v1102
    %v2649 = vunpack.c.l.b16 %v1103
    %v2650 = vunpack.c.h.b16 %v1103
    %v2651 = vunpack.c.l.b16 %v1104
    %v2652 = vunpack.c.h.b16 %v1104
    %v2653 = vunpack.c.l.b16 %v1105
    %v2654 = vunpack.c.h.b16 %v1105
    %v2655 = vunpack.c.l.b16 %v1106
    %v2656 = vunpack.c.h.b16 %v1106
    %v2657 = vunpack.c.l.b16 %v1107
    %v2658 = vunpack.c.h.b16 %v1107
    %v2659 = vunpack.c.l.b16 %v1108
    %v2660 = vunpack.c.h.b16 %v1108
    %v2661 = vunpack.c.l.b16 %v1109
    %v2662 = vunpack.c.h.b16 %v1109
    %v2663 = vunpack.c.l.b16 %v1110
    %v2664 = vunpack.c.h.b16 %v1110
    %v2665 = vunpack.c.l.b16 %v1111
    %v2666 = vunpack.c.h.b16 %v1111
    %v2667 = vunpack.c.l.b16 %v1112
    %v2668 = vunpack.c.h.b16 %v1112
    %v2669 = vunpack.c.l.b16 %v1113
    %v2670 = vunpack.c.h.b16 %v1113
    %v2671 = vunpack.c.l.b16 %v1114
    %v2672 = vunpack.c.h.b16 %v1114
    %v2673 = vunpack.c.l.b16 %v1115
    %v2674 = vunpack.c.h.b16 %v1115
    %v2675 = vunpack.c.l.b16 %v1116
    %v2676 = vunpack.c.h.b16 %v1116
    %v2677 = vunpack.c.l.b16 %v1117
    %v2678 = vunpack.c.h.b16 %v1117
    %v2679 = vunpack.c.l.b16 %v1118
    %v2680 = vunpack.c.h.b16 %v1118
    %v2681 = vunpack.c.l.b16 %v1119
    %v2682 = vunpack.c.h.b16 %v1119
    %v2683 = vunpack.c.l.b16 %v1120
    %v2684 = vunpack.c.h.b16 %v1120
    %v2685 = vunpack.c.l.b16 %v1121
    %v2686 = vunpack.c.h.b16 %v1121
    %v2687 = vunpack.c.l.b16 %v1122
    %v2688 = vunpack.c.h.b16 %v1122
    %v2689 = vunpack.c.l.b16 %v1123
    %v2690 = vunpack.c.h.b16 %v1123
    %v2691 = vunpack.c.l.b16 %v1124
    %v2692 = vunpack.c.h.b16 %v1124
    %v2693 = vunpack.c.l.b16 %v1125
    %v2694 = vunpack.c.h.b16 %v1125
    %v2695 = vunpack.c.l.b16 %v1126
    %v2696 = vunpack.c.h.b16 %v1126
    %v2697 = vunpack.c.l.b16 %v1127
    %v2698 = vunpack.c.h.b16 %v1127
    %v2699 = vunpack.c.l.b16 %v1128
    %v2700 = vunpack.c.h.b16 %v1128
    %v2701 = vunpack.c.l.b16 %v1129
    %v2702 = vunpack.c.h.b16 %v1129
    %v2703 = vunpack.c.l.b16 %v1130
    %v2704 = vunpack.c.h.b16 %v1130
    %v2705 = vunpack.c.l.b16 %v1131
    %v2706 = vunpack.c.h.b16 %v1131
    %v2707 = vunpack.c.l.b16 %v1132
    %v2708 = vunpack.c.h.b16 %v1132
    %v2709 = vunpack.c.l.b16 %v1133
    %v2710 = vunpack.c.h.b16 %v1133
    %v2711 = vunpack.c.l.b16 %v1134
    %v2712 = vunpack.c.h.b16 %v1134
    %v2713 = vunpack.c.l.b16 %v1135
    %v2714 = vunpack.c.h.b16 %v1135
    %v2715 = vunpack.c.l.b16 %v1136
    %v2716 = vunpack.c.h.b16 %v1136
    %v2717 = vunpack.c.l.b16 %v1137
    %v2718 = vunpack.c.h.b16 %v1137
    %v2719 = vunpack.c.l.b16 %v1138
    %v2720 = vunpack.c.h.b16 %v1138
    %v2721 = vunpack.c.l.b16 %v1139
    %v2722 = vunpack.c.h.b16 %v1139
    %v2723 = vunpack.c.l.b16 %v1140
    %v2724 = vunpack.c.h.b16 %v1140
    %v2725 = vunpack.c.l.b16 %v1141
    %v2726 = vunpack.c.h.b16 %v1141
    %v2727 = vunpack.c.l.b16 %v1142
    %v2728 = vunpack.c.h.b16 %v1142
    %v2729 = vunpack.c.l.b16 %v1143
    %v2730 = vunpack.c.h.b16 %v1143
    %v2731 = vunpack.c.l.b16 %v1144
    %v2732 = vunpack.c.h.b16 %v1144
    %v2733 = vunpack.c.l.b16 %v1145
    %v2734 = vunpack.c.h.b16 %v1145
    %v2735 = vunpack.c.l.b16 %v1146
    %v2736 = vunpack.c.h.b16 %v1146
    %v2737 = vunpack.c.l.b16 %v1147
    %v2738 = vunpack.c.h.b16 %v1147
    %v2739 = vunpack.c.l.b16 %v1148
    %v2740 = vunpack.c.h.b16 %v1148
    %v2741 = vunpack.c.l.b16 %v1149
    %v2742 = vunpack.c.h.b16 %v1149
    %v2743 = vunpack.c.l.b16 %v1150
    %v2744 = vunpack.c.h.b16 %v1150
    %v2745 = vunpack.c.l.b16 %v1151
    %v2746 = vunpack.c.h.b16 %v1151
    %v2747 = vunpack.c.l.b16 %v1152
    %v2748 = vunpack.c.h.b16 %v1152
    %v2749 = vunpack.c.l.b16 %v1153
    %v2750 = vunpack.c.h.b16 %v1153
    %v2751 = vunpack.c.l.b16 %v1154
    %v2752 = vunpack.c.h.b16 %v1154
    %v2753 = vunpack.c.l.b16 %v1155
    %v2754 = vunpack.c.h.b16 %v1155
    %v2755 = vunpack.c.l.b16 %v1156
    %v2756 = vunpack.c.h.b16 %v1156
    %v2757 = vunpack.c.l.b16 %v1157
    %v2758 = vunpack.c.h.b16 %v1157
    %v2759 = vunpack.c.l.b16 %v1158
    %v2760 = vunpack.c.h.b16 %v1158
    %v2761 = vunpack.c.l.b16 %v1159
    %v2762 = vunpack.c.h.b16 %v1159
    %v2763 = vunpack.c.l.b16 %v1160
    %v2764 = vunpack.c.h.b16 %v1160
    %v2765 = vunpack.c.l.b16 %v1161
    %v2766 = vunpack.c.h.b16 %v1161
    %v2767 = vunpack.c.l.b16 %v1162
    %v2768 = vunpack.c.h.b16 %v1162
    %v2769 = vunpack.c.l.b16 %v1163
    %v2770 = vunpack.c.h.b16 %v1163
    %v2771 = vunpack.c.l.b16 %v1164
    %v2772 = vunpack.c.h.b16 %v1164
    %v2773 = vunpack.c.l.b16 %v1165
    %v2774 = vunpack.c.h.b16 %v1165
    %v2775 = vunpack.c.l.b16 %v1166
    %v2776 = vunpack.c.h.b16 %v1166
    %v2777 = vunpack.c.l.b16 %v1167
    %v2778 = vunpack.c.h.b16 %v1167
    %v2779 = vunpack.c.l.b16 %v1168
    %v2780 = vunpack.c.h.b16 %v1168
    %v2781 = vunpack.c.l.b16 %v1169
    %v2782 = vunpack.c.h.b16 %v1169
    %v2783 = vunpack.c.l.b16 %v1170
    %v2784 = vunpack.c.h.b16 %v1170
    %v2785 = vunpack.c.l.b16 %v1171
    %v2786 = vunpack.c.h.b16 %v1171
    %v2787 = vunpack.c.l.b16 %v1172
    %v2788 = vunpack.c.h.b16 %v1172
    %v2789 = vunpack.c.l.b16 %v1173
    %v2790 = vunpack.c.h.b16 %v1173
    %v2791 = vunpack.c.l.b16 %v1174
    %v2792 = vunpack.c.h.b16 %v1174
    %v2793 = vunpack.c.l.b16 %v1175
    %v2794 = vunpack.c.h.b16 %v1175
    %v2795 = vunpack.c.l.b16 %v1176
    %v2796 = vunpack.c.h.b16 %v1176
    %v2797 = vunpack.c.l.b16 %v1177
    %v2798 = vunpack.c.h.b16 %v1177
    %v2799 = vunpack.c.l.b16 %v1178
    %v2800 = vunpack.c.h.b16 %v1178
    %v2801 = vunpack.c.l.b16 %v1179
    %v2802 = vunpack.c.h.b16 %v1179
    %v2803 = vunpack.c.l.b16 %v1180
    %v2804 = vunpack.c.h.b16 %v1180
    %v2805 = vunpack.c.l.b16 %v1181
    %v2806 = vunpack.c.h.b16 %v1181
    %v2807 = vunpack.c.l.b16 %v1182
    %v2808 = vunpack.c.h.b16 %v1182
    %v2809 = vunpack.c.l.b16 %v1183
    %v2810 = vunpack.c.h.b16 %v1183
    %v2811 = vunpack.c.l.b16 %v1184
    %v2812 = vunpack.c.h.b16 %v1184
    %v2813 = vunpack.c.l.b16 %v1185
    %v2814 = vunpack.c.h.b16 %v1185
    %v2815 = vunpack.c.l.b16 %v1186
    %v2816 = vunpack.c.h.b16 %v1186
    %v2817 = vunpack.c.l.b16 %v1187
    %v2818 = vunpack.c.h.b16 %v1187
    %v2819 = vunpack.c.l.b16 %v1188
    %v2820 = vunpack.c.h.b16 %v1188
    %v2821 = vunpack.c.l.b16 %v1189
    %v2822 = vunpack.c.h.b16 %v1189
    %v2823 = vunpack.c.l.b16 %v1190
    %v2824 = vunpack.c.h.b16 %v1190
    %v2825 = vunpack.c.l.b16 %v1191
    %v2826 = vunpack.c.h.b16 %v1191
    %v2827 = vunpack.c.l.b16 %v1192
    %v2828 = vunpack.c.h.b16 %v1192
    %v2829 = vunpack.c.l.b16 %v1193
    %v2830 = vunpack.c.h.b16 %v1193
    %v2831 = vunpack.c.l.b16 %v1194
    %v2832 = vunpack.c.h.b16 %v1194
    %v2833 = vunpack.c.l.b16 %v1195
    %v2834 = vunpack.c.h.b16 %v1195
    %v2835 = vunpack.c.l.b16 %v1196
    %v2836 = vunpack.c.h.b16 %v1196
    %v2837 = vunpack.c.l.b16 %v1197
    %v2838 = vunpack.c.h.b16 %v1197
    %v2839 = vunpack.c.l.b16 %v1198
    %v2840 = vunpack.c.h.b16 %v1198
    %v2841 = vunpack.c.l.b16 %v1199
    %v2842 = vunpack.c.h.b16 %v1199
    %v2843 = vunpack.c.l.b16 %v1200
    %v2844 = vunpack.c.h.b16 %v1200
    %v2845 = vunpack.c.l.b16 %v1201
    %v2846 = vunpack.c.h.b16 %v1201
    %v2847 = vunpack.c.l.b16 %v1202
    %v2848 = vunpack.c.h.b16 %v1202
    %v2849 = vunpack.c.l.b16 %v1203
    %v2850 = vunpack.c.h.b16 %v1203
    %v2851 = vunpack.c.l.b16 %v1204
    %v2852 = vunpack.c.h.b16 %v1204
    %v2853 = vunpack.c.l.b16 %v1205
    %v2854 = vunpack.c.h.b16 %v1205
    %v2855 = vunpack.c.l.b16 %v1206
    %v2856 = vunpack.c.h.b16 %v1206
    %v2857 = vunpack.c.l.b16 %v1207
    %v2858 = vunpack.c.h.b16 %v1207
    %v2859 = vunpack.c.l.b16 %v1208
    %v2860 = vunpack.c.h.b16 %v1208
    %v2861 = vunpack.c.l.b16 %v1209
    %v2862 = vunpack.c.h.b16 %v1209
    %v2863 = vunpack.c.l.b16 %v1210
    %v2864 = vunpack.c.h.b16 %v1210
    %v2865 = vunpack.c.l.b16 %v1211
    %v2866 = vunpack.c.h.b16 %v1211
    %v2867 = vunpack.c.l.b16 %v1212
    %v2868 = vunpack.c.h.b16 %v1212
    %v2869 = vunpack.c.l.b16 %v1213
    %v2870 = vunpack.c.h.b16 %v1213
    %v2871 = vunpack.c.l.b16 %v1214
    %v2872 = vunpack.c.h.b16 %v1214
    %v2873 = vunpack.c.l.b16 %v1215
    %v2874 = vunpack.c.h.b16 %v1215
    %v2875 = vunpack.c.l.b16 %v1216
    %v2876 = vunpack.c.h.b16 %v1216
    %v2877 = vunpack.c.l.b16 %v1217
    %v2878 = vunpack.c.h.b16 %v1217
    %v2879 = vunpack.c.l.b16 %v1218
    %v2880 = vunpack.c.h.b16 %v1218
    %v2881 = vunpack.c.l.b16 %v1219
    %v2882 = vunpack.c.h.b16 %v1219
    %v2883 = vunpack.c.l.b16 %v1220
    %v2884 = vunpack.c.h.b16 %v1220
    %v2885 = vunpack.c.l.b16 %v1221
    %v2886 = vunpack.c.h.b16 %v1221
    %v2887 = vunpack.c.l.b16 %v1222
    %v2888 = vunpack.c.h.b16 %v1222
    %v2889 = vunpack.c.l.b16 %v1223
    %v2890 = vunpack.c.h.b16 %v1223
    %v2891 = vunpack.c.l.b16 %v1224
    %v2892 = vunpack.c.h.b16 %v1224
    %v2893 = vunpack.c.l.b16 %v1225
    %v2894 = vunpack.c.h.b16 %v1225
    %v2895 = vunpack.c.l.b16 %v1226
    %v2896 = vunpack.c.h.b16 %v1226
    %v2897 = vunpack.c.l.b16 %v1227
    %v2898 = vunpack.c.h.b16 %v1227
    %v2899 = vunpack.c.l.b16 %v1228
    %v2900 = vunpack.c.h.b16 %v1228
    %v2901 = vunpack.c.l.b16 %v1229
    %v2902 = vunpack.c.h.b16 %v1229
    %v2903 = vunpack.c.l.b16 %v1230
    %v2904 = vunpack.c.h.b16 %v1230
    %v2905 = vunpack.c.l.b16 %v1231
    %v2906 = vunpack.c.h.b16 %v1231
    %v2907 = vunpack.c.l.b16 %v1232
    %v2908 = vunpack.c.h.b16 %v1232
    %v2909 = vunpack.c.l.b16 %v1233
    %v2910 = vunpack.c.h.b16 %v1233
    %v2911 = vunpack.c.l.b16 %v1234
    %v2912 = vunpack.c.h.b16 %v1234
    %v2913 = vunpack.c.l.b16 %v1235
    %v2914 = vunpack.c.h.b16 %v1235
    %v2915 = vunpack.c.l.b16 %v1236
    %v2916 = vunpack.c.h.b16 %v1236
    %v2917 = vunpack.c.l.b16 %v1237
    %v2918 = vunpack.c.h.b16 %v1237
    %v2919 = vunpack.c.l.b16 %v1238
    %v2920 = vunpack.c.h.b16 %v1238
    %v2921 = vunpack.c.l.b16 %v1239
    %v2922 = vunpack.c.h.b16 %v1239
    %v2923 = vunpack.c.l.b16 %v1240
    %v2924 = vunpack.c.h.b16 %v1240
    %v2925 = vunpack.c.l.b16 %v1241
    %v2926 = vunpack.c.h.b16 %v1241
    %v2927 = vunpack.c.l.b16 %v1242
    %v2928 = vunpack.c.h.b16 %v1242
    %v2929 = vunpack.c.l.b16 %v1243
    %v2930 = vunpack.c.h.b16 %v1243
    %v2931 = vunpack.c.l.b16 %v1244
    %v2932 = vunpack.c.h.b16 %v1244
    %v2933 = vunpack.c.l.b16 %v1245
    %v2934 = vunpack.c.h.b16 %v1245
    %v2935 = vunpack.c.l.b16 %v1246
    %v2936 = vunpack.c.h.b16 %v1246
    %v2937 = vunpack.c.l.b16 %v1247
    %v2938 = vunpack.c.h.b16 %v1247
    %v2939 = vunpack.c.l.b16 %v1248
    %v2940 = vunpack.c.h.b16 %v1248
    %v2941 = vunpack.c.l.b16 %v1249
    %v2942 = vunpack.c.h.b16 %v1249
    %v2943 = vunpack.c.l.b16 %v1250
    %v2944 = vunpack.c.h.b16 %v1250
    %v2945 = vunpack.c.l.b16 %v1251
    %v2946 = vunpack.c.h.b16 %v1251
    %v2947 = vunpack.c.l.b16 %v1252
    %v2948 = vunpack.c.h.b16 %v1252
    %v2949 = vunpack.c.l.b16 %v1253
    %v2950 = vunpack.c.h.b16 %v1253
    %v2951 = vunpack.c.l.b16 %v1254
    %v2952 = vunpack.c.h.b16 %v1254
    %v2953 = vunpack.c.l.b16 %v1255
    %v2954 = vunpack.c.h.b16 %v1255
    %v2955 = vunpack.c.l.b16 %v1256
    %v2956 = vunpack.c.h.b16 %v1256
    %v2957 = vunpack.c.l.b16 %v1257
    %v2958 = vunpack.c.h.b16 %v1257
    %v2959 = vunpack.c.l.b16 %v1258
    %v2960 = vunpack.c.h.b16 %v1258
    %v2961 = vunpack.c.l.b16 %v1259
    %v2962 = vunpack.c.h.b16 %v1259
    %v2963 = vunpack.c.l.b16 %v1260
    %v2964 = vunpack.c.h.b16 %v1260
    %v2965 = vunpack.c.l.b16 %v1261
    %v2966 = vunpack.c.h.b16 %v1261
    %v2967 = vunpack.c.l.b16 %v1262
    %v2968 = vunpack.c.h.b16 %v1262
    %v2969 = vunpack.c.l.b16 %v1263
    %v2970 = vunpack.c.h.b16 %v1263
    %v2971 = vunpack.c.l.b16 %v1264
    %v2972 = vunpack.c.h.b16 %v1264
    %v2973 = vunpack.c.l.b16 %v1265
    %v2974 = vunpack.c.h.b16 %v1265
    %v2975 = vunpack.c.l.b16 %v1266
    %v2976 = vunpack.c.h.b16 %v1266
    %v2977 = vunpack.c.l.b16 %v1267
    %v2978 = vunpack.c.h.b16 %v1267
    %v2979 = vunpack.c.l.b16 %v1268
    %v2980 = vunpack.c.h.b16 %v1268
    %v2981 = vunpack.c.l.b16 %v1269
    %v2982 = vunpack.c.h.b16 %v1269
    %v2983 = vunpack.c.l.b16 %v1270
    %v2984 = vunpack.c.h.b16 %v1270
    %v2985 = vunpack.c.l.b16 %v1271
    %v2986 = vunpack.c.h.b16 %v1271
    %v2987 = vunpack.c.l.b16 %v1272
    %v2988 = vunpack.c.h.b16 %v1272
    %v2989 = vunpack.c.l.b16 %v1273
    %v2990 = vunpack.c.h.b16 %v1273
    %v2991 = vunpack.c.l.b16 %v1274
    %v2992 = vunpack.c.h.b16 %v1274
    %v2993 = vunpack.c.l.b16 %v1275
    %v2994 = vunpack.c.h.b16 %v1275
    %v2995 = vunpack.c.l.b16 %v1276
    %v2996 = vunpack.c.h.b16 %v1276
    %v2997 = vunpack.c.l.b16 %v1277
    %v2998 = vunpack.c.h.b16 %v1277
    %v2999 = vunpack.c.l.b16 %v1278
    %v3000 = vunpack.c.h.b16 %v1278
    %v3001 = vunpack.c.l.b16 %v1279
    %v3002 = vunpack.c.h.b16 %v1279
    %v3003 = vunpack.c.l.b16 %v1280
    %v3004 = vunpack.c.h.b16 %v1280
    %v3005 = vunpack.c.l.b16 %v1281
    %v3006 = vunpack.c.h.b16 %v1281
    %v3007 = vunpack.c.l.b16 %v1282
    %v3008 = vunpack.c.h.b16 %v1282
    %v3009 = vunpack.c.l.b16 %v1283
    %v3010 = vunpack.c.h.b16 %v1283
    %v3011 = vunpack.c.l.b16 %v1284
    %v3012 = vunpack.c.h.b16 %v1284
    %v3013 = vunpack.c.l.b16 %v1285
    %v3014 = vunpack.c.h.b16 %v1285
    %v3015 = vunpack.c.l.b16 %v1286
    %v3016 = vunpack.c.h.b16 %v1286
    %v3017 = vunpack.c.l.b16 %v1287
    %v3018 = vunpack.c.h.b16 %v1287
    %v3019 = vunpack.c.l.b16 %v1288
    %v3020 = vunpack.c.h.b16 %v1288
    %v3021 = vunpack.c.l.b16 %v1289
    %v3022 = vunpack.c.h.b16 %v1289
    %v3023 = vunpack.c.l.b16 %v1290
    %v3024 = vunpack.c.h.b16 %v1290
    %v3025 = vunpack.c.l.b16 %v1291
    %v3026 = vunpack.c.h.b16 %v1291
    %v3027 = vunpack.c.l.b16 %v1292
    %v3028 = vunpack.c.h.b16 %v1292
    %v3029 = vunpack.c.l.b16 %v1293
    %v3030 = vunpack.c.h.b16 %v1293
    %v3031 = vunpack.c.l.b16 %v1294
    %v3032 = vunpack.c.h.b16 %v1294
    %v3033 = vunpack.c.l.b16 %v1295
    %v3034 = vunpack.c.h.b16 %v1295
    %v3035 = vunpack.c.l.b16 %v1296
    %v3036 = vunpack.c.h.b16 %v1296
    %v3037 = vunpack.c.l.b16 %v1297
    %v3038 = vunpack.c.h.b16 %v1297
    %v3039 = vunpack.c.l.b16 %v1298
    %v3040 = vunpack.c.h.b16 %v1298
    %v3041 = vunpack.c.l.b16 %v1299
    %v3042 = vunpack.c.h.b16 %v1299
    %v3043 = vunpack.c.l.b16 %v1300
    %v3044 = vunpack.c.h.b16 %v1300
    %v3045 = vunpack.c.l.b16 %v1301
    %v3046 = vunpack.c.h.b16 %v1301
    %v3047 = vunpack.c.l.b16 %v1302
    %v3048 = vunpack.c.h.b16 %v1302
    %v3049 = vunpack.c.l.b16 %v1303
    %v3050 = vunpack.c.h.b16 %v1303
    %v3051 = vunpack.c.l.b16 %v1304
    %v3052 = vunpack.c.h.b16 %v1304
    %v3053 = vunpack.c.l.b16 %v1305
    %v3054 = vunpack.c.h.b16 %v1305
    %v3055 = vunpack.c.l.b16 %v1306
    %v3056 = vunpack.c.h.b16 %v1306
    %v3057 = vunpack.c.l.b16 %v1307
    %v3058 = vunpack.c.h.b16 %v1307
    %v3059 = vunpack.c.l.b16 %v1308
    %v3060 = vunpack.c.h.b16 %v1308
    %v3061 = vunpack.c.l.b16 %v1309
    %v3062 = vunpack.c.h.b16 %v1309
    %v3063 = vunpack.c.l.b16 %v1310
    %v3064 = vunpack.c.h.b16 %v1310
    %v3065 = vunpack.c.l.b16 %v1311
    %v3066 = vunpack.c.h.b16 %v1311
    %v3067 = vunpack.c.l.b16 %v1312
    %v3068 = vunpack.c.h.b16 %v1312
    %v3069 = vunpack.c.l.b16 %v1313
    %v3070 = vunpack.c.h.b16 %v1313
    %v3071 = vunpack.c.l.b16 %v1314
    %v3072 = vunpack.c.h.b16 %v1314
    %v3073 = vunpack.c.l.b16 %v1315
    %v3074 = vunpack.c.h.b16 %v1315
    %v3075 = vunpack.c.l.b16 %v1316
    %v3076 = vunpack.c.h.b16 %v1316
    %v3077 = vunpack.c.l.b16 %v1317
    %v3078 = vunpack.c.h.b16 %v1317
    %v3079 = vpack.c.b16 %v2063, %v2055
    %v3080 = vpack.c.b16 %v2064, %v2056
    %v3081 = vpack.c.b16 %v2065, %v2057
    %v3082 = vpack.c.b16 %v2066, %v2058
    %v3083 = vpack.c.b16 %v2067, %v2059
    %v3084 = vpack.c.b16 %v2068, %v2060
    %v3085 = vpack.c.b16 %v2069, %v2061
    %v3086 = vpack.c.b16 %v2070, %v2062
    %v3087 = vpack.c.b16 %v2079, %v2071
    %v3088 = vpack.c.b16 %v2080, %v2072
    %v3089 = vpack.c.b16 %v2081, %v2073
    %v3090 = vpack.c.b16 %v2082, %v2074
    %v3091 = vpack.c.b16 %v2083, %v2075
    %v3092 = vpack.c.b16 %v2084, %v2076
    %v3093 = vpack.c.b16 %v2085, %v2077
    %v3094 = vpack.c.b16 %v2086, %v2078
    %v3095 = vpack.c.b16 %v2095, %v2087
    %v3096 = vpack.c.b16 %v2096, %v2088
    %v3097 = vpack.c.b16 %v2097, %v2089
    %v3098 = vpack.c.b16 %v2098, %v2090
    %v3099 = vpack.c.b16 %v2099, %v2091
    %v3100 = vpack.c.b16 %v2100, %v2092
    %v3101 = vpack.c.b16 %v2101, %v2093
    %v3102 = vpack.c.b16 %v2102, %v2094
    %v3103 = vpack.c.b16 %v2111, %v2103
    %v3104 = vpack.c.b16 %v2112, %v2104
    %v3105 = vpack.c.b16 %v2113, %v2105
    %v3106 = vpack.c.b16 %v2114, %v2106
    %v3107 = vpack.c.b16 %v2115, %v2107
    %v3108 = vpack.c.b16 %v2116, %v2108
    %v3109 = vpack.c.b16 %v2117, %v2109
    %v3110 = vpack.c.b16 %v2118, %v2110
    %v3111 = vpack.c.b16 %v2127, %v2119
    %v3112 = vpack.c.b16 %v2128, %v2120
    %v3113 = vpack.c.b16 %v2129, %v2121
    %v3114 = vpack.c.b16 %v2130, %v2122
    %v3115 = vpack.c.b16 %v2131, %v2123
    %v3116 = vpack.c.b16 %v2132, %v2124
    %v3117 = vpack.c.b16 %v2133, %v2125
    %v3118 = vpack.c.b16 %v2134, %v2126
    %v3119 = vpack.c.b16 %v2143, %v2135
    %v3120 = vpack.c.b16 %v2144, %v2136
    %v3121 = vpack.c.b16 %v2145, %v2137
    %v3122 = vpack.c.b16 %v2146, %v2138
    %v3123 = vpack.c.b16 %v2147, %v2139
    %v3124 = vpack.c.b16 %v2148, %v2140
    %v3125 = vpack.c.b16 %v2149, %v2141
    %v3126 = vpack.c.b16 %v2150, %v2142
    %v3127 = vpack.c.b16 %v2159, %v2151
    %v3128 = vpack.c.b16 %v2160, %v2152
    %v3129 = vpack.c.b16 %v2161, %v2153
    %v3130 = vpack.c.b16 %v2162, %v2154
    %v3131 = vpack.c.b16 %v2163, %v2155
    %v3132 = vpack.c.b16 %v2164, %v2156
    %v3133 = vpack.c.b16 %v2165, %v2157
    %v3134 = vpack.c.b16 %v2166, %v2158
    %v3135 = vpack.c.b16 %v2175, %v2167
    %v3136 = vpack.c.b16 %v2176, %v2168
    %v3137 = vpack.c.b16 %v2177, %v2169
    %v3138 = vpack.c.b16 %v2178, %v2170
    %v3139 = vpack.c.b16 %v2179, %v2171
    %v3140 = vpack.c.b16 %v2180, %v2172
    %v3141 = vpack.c.b16 %v2181, %v2173
    %v3142 = vpack.c.b16 %v2182, %v2174
    %v3143 = vpack.c.b16 %v2191, %v2183
    %v3144 = vpack.c.b16 %v2192, %v2184
    %v3145 = vpack.c.b16 %v2193, %v2185
    %v3146 = vpack.c.b16 %v2194, %v2186
    %v3147 = vpack.c.b16 %v2195, %v2187
    %v3148 = vpack.c.b16 %v2196, %v2188
    %v3149 = vpack.c.b16 %v2197, %v2189
    %v3150 = vpack.c.b16 %v2198, %v2190
    %v3151 = vpack.c.b16 %v2207, %v2199
    %v3152 = vpack.c.b16 %v2208, %v2200
    %v3153 = vpack.c.b16 %v2209, %v2201
    %v3154 = vpack.c.b16 %v2210, %v2202
    %v3155 = vpack.c.b16 %v2211, %v2203
    %v3156 = vpack.c.b16 %v2212, %v2204
    %v3157 = vpack.c.b16 %v2213, %v2205
    %v3158 = vpack.c.b16 %v2214, %v2206
    %v3159 = vpack.c.b16 %v2223, %v2215
    %v3160 = vpack.c.b16 %v2224, %v2216
    %v3161 = vpack.c.b16 %v2225, %v2217
    %v3162 = vpack.c.b16 %v2226, %v2218
    %v3163 = vpack.c.b16 %v2227, %v2219
    %v3164 = vpack.c.b16 %v2228, %v2220
    %v3165 = vpack.c.b16 %v2229, %v2221
    %v3166 = vpack.c.b16 %v2230, %v2222
    %v3167 = vpack.c.b16 %v2239, %v2231
    %v3168 = vpack.c.b16 %v2240, %v2232
    %v3169 = vpack.c.b16 %v2241, %v2233
    %v3170 = vpack.c.b16 %v2242, %v2234
    %v3171 = vpack.c.b16 %v2243, %v2235
    %v3172 = vpack.c.b16 %v2244, %v2236
    %v3173 = vpack.c.b16 %v2245, %v2237
    %v3174 = vpack.c.b16 %v2246, %v2238
    %v3175 = vpack.c.b16 %v2255, %v2247
    %v3176 = vpack.c.b16 %v2256, %v2248
    %v3177 = vpack.c.b16 %v2257, %v2249
    %v3178 = vpack.c.b16 %v2258, %v2250
    %v3179 = vpack.c.b16 %v2259, %v2251
    %v3180 = vpack.c.b16 %v2260, %v2252
    %v3181 = vpack.c.b16 %v2261, %v2253
    %v3182 = vpack.c.b16 %v2262, %v2254
    %v3183 = vpack.c.b16 %v2271, %v2263
    %v3184 = vpack.c.b16 %v2272, %v2264
    %v3185 = vpack.c.b16 %v2273, %v2265
    %v3186 = vpack.c.b16 %v2274, %v2266
    %v3187 = vpack.c.b16 %v2275, %v2267
    %v3188 = vpack.c.b16 %v2276, %v2268
    %v3189 = vpack.c.b16 %v2277, %v2269
    %v3190 = vpack.c.b16 %v2278, %v2270
    %v3191 = vpack.c.b16 %v2287, %v2279
    %v3192 = vpack.c.b16 %v2288, %v2280
    %v3193 = vpack.c.b16 %v2289, %v2281
    %v3194 = vpack.c.b16 %v2290, %v2282
    %v3195 = vpack.c.b16 %v2291, %v2283
    %v3196 = vpack.c.b16 %v2292, %v2284
    %v3197 = vpack.c.b16 %v2293, %v2285
    %v3198 = vpack.c.b16 %v2294, %v2286
    %v3199 = vpack.c.b16 %v2303, %v2295
    %v3200 = vpack.c.b16 %v2304, %v2296
    %v3201 = vpack.c.b16 %v2305, %v2297
    %v3202 = vpack.c.b16 %v2306, %v2298
    %v3203 = vpack.c.b16 %v2307, %v2299
    %v3204 = vpack.c.b16 %v2308, %v2300
    %v3205 = vpack.c.b16 %v2309, %v2301
    %v3206 = vpack.c.b16 %v2310, %v2302
    %v3207 = vpack.c.b16 %v2319, %v2311
    %v3208 = vpack.c.b16 %v2320, %v2312
    %v3209 = vpack.c.b16 %v2321, %v2313
    %v3210 = vpack.c.b16 %v2322, %v2314
    %v3211 = vpack.c.b16 %v2323, %v2315
    %v3212 = vpack.c.b16 %v2324, %v2316
    %v3213 = vpack.c.b16 %v2325, %v2317
    %v3214 = vpack.c.b16 %v2326, %v2318
    %v3215 = vpack.c.b16 %v2335, %v2327
    %v3216 = vpack.c.b16 %v2336, %v2328
    %v3217 = vpack.c.b16 %v2337, %v2329
    %v3218 = vpack.c.b16 %v2338, %v2330
    %v3219 = vpack.c.b16 %v2339, %v2331
    %v3220 = vpack.c.b16 %v2340, %v2332
    %v3221 = vpack.c.b16 %v2341, %v2333
    %v3222 = vpack.c.b16 %v2342, %v2334
    %v3223 = vpack.c.b16 %v2351, %v2343
    %v3224 = vpack.c.b16 %v2352, %v2344
    %v3225 = vpack.c.b16 %v2353, %v2345
    %v3226 = vpack.c.b16 %v2354, %v2346
    %v3227 = vpack.c.b16 %v2355, %v2347
    %v3228 = vpack.c.b16 %v2356, %v2348
    %v3229 = vpack.c.b16 %v2357, %v2349
    %v3230 = vpack.c.b16 %v2358, %v2350
    %v3231 = vpack.c.b16 %v2367, %v2359
    %v3232 = vpack.c.b16 %v2368, %v2360
    %v3233 = vpack.c.b16 %v2369, %v2361
    %v3234 = vpack.c.b16 %v2370, %v2362
    %v3235 = vpack.c.b16 %v2371, %v2363
    %v3236 = vpack.c.b16 %v2372, %v2364
    %v3237 = vpack.c.b16 %v2373, %v2365
    %v3238 = vpack.c.b16 %v2374, %v2366
    %v3239 = vpack.c.b16 %v2383, %v2375
    %v3240 = vpack.c.b16 %v2384, %v2376
    %v3241 = vpack.c.b16 %v2385, %v2377
    %v3242 = vpack.c.b16 %v2386, %v2378
    %v3243 = vpack.c.b16 %v2387, %v2379
    %v3244 = vpack.c.b16 %v2388, %v2380
    %v3245 = vpack.c.b16 %v2389, %v2381
    %v3246 = vpack.c.b16 %v2390, %v2382
    %v3247 = vpack.c.b16 %v2399, %v2391
    %v3248 = vpack.c.b16 %v2400, %v2392
    %v3249 = vpack.c.b16 %v2401, %v2393
    %v3250 = vpack.c.b16 %v2402, %v2394
    %v3251 = vpack.c.b16 %v2403, %v2395
    %v3252 = vpack.c.b16 %v2404, %v2396
    %v3253 = vpack.c.b16 %v2405, %v2397
    %v3254 = vpack.c.b16 %v2406, %v2398
    %v3255 = vpack.c.b16 %v2415, %v2407
    %v3256 = vpack.c.b16 %v2416, %v2408
    %v3257 = vpack.c.b16 %v2417, %v2409
    %v3258 = vpack.c.b16 %v2418, %v2410
    %v3259 = vpack.c.b16 %v2419, %v2411
    %v3260 = vpack.c.b16 %v2420, %v2412
    %v3261 = vpack.c.b16 %v2421, %v2413
    %v3262 = vpack.c.b16 %v2422, %v2414
    %v3263 = vpack.c.b16 %v2431, %v2423
    %v3264 = vpack.c.b16 %v2432, %v2424
    %v3265 = vpack.c.b16 %v2433, %v2425
    %v3266 = vpack.c.b16 %v2434, %v2426
    %v3267 = vpack.c.b16 %v2435, %v2427
    %v3268 = vpack.c.b16 %v2436, %v2428
    %v3269 = vpack.c.b16 %v2437, %v2429
    %v3270 = vpack.c.b16 %v2438, %v2430
    %v3271 = vpack.c.b16 %v2447, %v2439
    %v3272 = vpack.c.b16 %v2448, %v2440
    %v3273 = vpack.c.b16 %v2449, %v2441
    %v3274 = vpack.c.b16 %v2450, %v2442
    %v3275 = vpack.c.b16 %v2451, %v2443
    %v3276 = vpack.c.b16 %v2452, %v2444
    %v3277 = vpack.c.b16 %v2453, %v2445
    %v3278 = vpack.c.b16 %v2454, %v2446
    %v3279 = vpack.c.b16 %v2463, %v2455
    %v3280 = vpack.c.b16 %v2464, %v2456
    %v3281 = vpack.c.b16 %v2465, %v2457
    %v3282 = vpack.c.b16 %v2466, %v2458
    %v3283 = vpack.c.b16 %v2467, %v2459
    %v3284 = vpack.c.b16 %v2468, %v2460
    %v3285 = vpack.c.b16 %v2469, %v2461
    %v3286 = vpack.c.b16 %v2470, %v2462
    %v3287 = vpack.c.b16 %v2479, %v2471
    %v3288 = vpack.c.b16 %v2480, %v2472
    %v3289 = vpack.c.b16 %v2481, %v2473
    %v3290 = vpack.c.b16 %v2482, %v2474
    %v3291 = vpack.c.b16 %v2483, %v2475
    %v3292 = vpack.c.b16 %v2484, %v2476
    %v3293 = vpack.c.b16 %v2485, %v2477
    %v3294 = vpack.c.b16 %v2486, %v2478
    %v3295 = vpack.c.b16 %v2495, %v2487
    %v3296 = vpack.c.b16 %v2496, %v2488
    %v3297 = vpack.c.b16 %v2497, %v2489
    %v3298 = vpack.c.b16 %v2498, %v2490
    %v3299 = vpack.c.b16 %v2499, %v2491
    %v3300 = vpack.c.b16 %v2500, %v2492
    %v3301 = vpack.c.b16 %v2501, %v2493
    %v3302 = vpack.c.b16 %v2502, %v2494
    %v3303 = vpack.c.b16 %v2511, %v2503
    %v3304 = vpack.c.b16 %v2512, %v2504
    %v3305 = vpack.c.b16 %v2513, %v2505
    %v3306 = vpack.c.b16 %v2514, %v2506
    %v3307 = vpack.c.b16 %v2515, %v2507
    %v3308 = vpack.c.b16 %v2516, %v2508
    %v3309 = vpack.c.b16 %v2517, %v2509
    %v3310 = vpack.c.b16 %v2518, %v2510
    %v3311 = vpack.c.b16 %v2527, %v2519
    %v3312 = vpack.c.b16 %v2528, %v2520
    %v3313 = vpack.c.b16 %v2529, %v2521
    %v3314 = vpack.c.b16 %v2530, %v2522
    %v3315 = vpack.c.b16 %v2531, %v2523
    %v3316 = vpack.c.b16 %v2532, %v2524
    %v3317 = vpack.c.b16 %v2533, %v2525
    %v3318 = vpack.c.b16 %v2534, %v2526
    %v3319 = vpack.c.b16 %v2543, %v2535
    %v3320 = vpack.c.b16 %v2544, %v2536
    %v3321 = vpack.c.b16 %v2545, %v2537
    %v3322 = vpack.c.b16 %v2546, %v2538
    %v3323 = vpack.c.b16 %v2547, %v2539
    %v3324 = vpack.c.b16 %v2548, %v2540
    %v3325 = vpack.c.b16 %v2549, %v2541
    %v3326 = vpack.c.b16 %v2550, %v2542
    %v3327 = vpack.c.b16 %v2559, %v2551
    %v3328 = vpack.c.b16 %v2560, %v2552
    %v3329 = vpack.c.b16 %v2561, %v2553
    %v3330 = vpack.c.b16 %v2562, %v2554
    %v3331 = vpack.c.b16 %v2563, %v2555
    %v3332 = vpack.c.b16 %v2564, %v2556
    %v3333 = vpack.c.b16 %v2565, %v2557
    %v3334 = vpack.c.b16 %v2566, %v2558
    %v3335 = vpack.c.b16 %v2575, %v2567
    %v3336 = vpack.c.b16 %v2576, %v2568
    %v3337 = vpack.c.b16 %v2577, %v2569
    %v3338 = vpack.c.b16 %v2578, %v2570
    %v3339 = vpack.c.b16 %v2579, %v2571
    %v3340 = vpack.c.b16 %v2580, %v2572
    %v3341 = vpack.c.b16 %v2581, %v2573
    %v3342 = vpack.c.b16 %v2582, %v2574
    %v3343 = vpack.c.b16 %v2591, %v2583
    %v3344 = vpack.c.b16 %v2592, %v2584
    %v3345 = vpack.c.b16 %v2593, %v2585
    %v3346 = vpack.c.b16 %v2594, %v2586
    %v3347 = vpack.c.b16 %v2595, %v2587
    %v3348 = vpack.c.b16 %v2596, %v2588
    %v3349 = vpack.c.b16 %v2597, %v2589
    %v3350 = vpack.c.b16 %v2598, %v2590
    %v3351 = vpack.c.b16 %v2607, %v2599
    %v3352 = vpack.c.b16 %v2608, %v2600
    %v3353 = vpack.c.b16 %v2609, %v2601
    %v3354 = vpack.c.b16 %v2610, %v2602
    %v3355 = vpack.c.b16 %v2611, %v2603
    %v3356 = vpack.c.b16 %v2612, %v2604
    %v3357 = vpack.c.b16 %v2613, %v2605
    %v3358 = vpack.c.b16 %v2614, %v2606
    %v3359 = vpack.c.b16 %v2623, %v2615
    %v3360 = vpack.c.b16 %v2624, %v2616
    %v3361 = vpack.c.b16 %v2625, %v2617
    %v3362 = vpack.c.b16 %v2626, %v2618
    %v3363 = vpack.c.b16 %v2627, %v2619
    %v3364 = vpack.c.b16 %v2628, %v2620
    %v3365 = vpack.c.b16 %v2629, %v2621
    %v3366 = vpack.c.b16 %v2630, %v2622
    %v3367 = vpack.c.b16 %v2639, %v2631
    %v3368 = vpack.c.b16 %v2640, %v2632
    %v3369 = vpack.c.b16 %v2641, %v2633
    %v3370 = vpack.c.b16 %v2642, %v2634
    %v3371 = vpack.c.b16 %v2643, %v2635
    %v3372 = vpack.c.b16 %v2644, %v2636
    %v3373 = vpack.c.b16 %v2645, %v2637
    %v3374 = vpack.c.b16 %v2646, %v2638
    %v3375 = vpack.c.b16 %v2655, %v2647
    %v3376 = vpack.c.b16 %v2656, %v2648
    %v3377 = vpack.c.b16 %v2657, %v2649
    %v3378 = vpack.c.b16 %v2658, %v2650
    %v3379 = vpack.c.b16 %v2659, %v2651
    %v3380 = vpack.c.b16 %v2660, %v2652
    %v3381 = vpack.c.b16 %v2661, %v2653
    %v3382 = vpack.c.b16 %v2662, %v2654
    %v3383 = vpack.c.b16 %v2671, %v2663
    %v3384 = vpack.c.b16 %v2672, %v2664
    %v3385 = vpack.c.b16 %v2673, %v2665
    %v3386 = vpack.c.b16 %v2674, %v2666
    %v3387 = vpack.c.b16 %v2675, %v2667
    %v3388 = vpack.c.b16 %v2676, %v2668
    %v3389 = vpack.c.b16 %v2677, %v2669
    %v3390 = vpack.c.b16 %v2678, %v2670
    %v3391 = vpack.c.b16 %v2687, %v2679
    %v3392 = vpack.c.b16 %v2688, %v2680
    %v3393 = vpack.c.b16 %v2689, %v2681
    %v3394 = vpack.c.b16 %v2690, %v2682
    %v3395 = vpack.c.b16 %v2691, %v2683
    %v3396 = vpack.c.b16 %v2692, %v2684
    %v3397 = vpack.c.b16 %v2693, %v2685
    %v3398 = vpack.c.b16 %v2694, %v2686
    %v3399 = vpack.c.b16 %v2703, %v2695
    %v3400 = vpack.c.b16 %v2704, %v2696
    %v3401 = vpack.c.b16 %v2705, %v2697
    %v3402 = vpack.c.b16 %v2706, %v2698
    %v3403 = vpack.c.b16 %v2707, %v2699
    %v3404 = vpack.c.b16 %v2708, %v2700
    %v3405 = vpack.c.b16 %v2709, %v2701
    %v3406 = vpack.c.b16 %v2710, %v2702
    %v3407 = vpack.c.b16 %v2719, %v2711
    %v3408 = vpack.c.b16 %v2720, %v2712
    %v3409 = vpack.c.b16 %v2721, %v2713
    %v3410 = vpack.c.b16 %v2722, %v2714
    %v3411 = vpack.c.b16 %v2723, %v2715
    %v3412 = vpack.c.b16 %v2724, %v2716
    %v3413 = vpack.c.b16 %v2725, %v2717
    %v3414 = vpack.c.b16 %v2726, %v2718
    %v3415 = vpack.c.b16 %v2735, %v2727
    %v3416 = vpack.c.b16 %v2736, %v2728
    %v3417 = vpack.c.b16 %v2737, %v2729
    %v3418 = vpack.c.b16 %v2738, %v2730
    %v3419 = vpack.c.b16 %v2739, %v2731
    %v3420 = vpack.c.b16 %v2740, %v2732
    %v3421 = vpack.c.b16 %v2741, %v2733
    %v3422 = vpack.c.b16 %v2742, %v2734
    %v3423 = vpack.c.b16 %v2751, %v2743
    %v3424 = vpack.c.b16 %v2752, %v2744
    %v3425 = vpack.c.b16 %v2753, %v2745
    %v3426 = vpack.c.b16 %v2754, %v2746
    %v3427 = vpack.c.b16 %v2755, %v2747
    %v3428 = vpack.c.b16 %v2756, %v2748
    %v3429 = vpack.c.b16 %v2757, %v2749
    %v3430 = vpack.c.b16 %v2758, %v2750
    %v3431 = vpack.c.b16 %v2767, %v2759
    %v3432 = vpack.c.b16 %v2768, %v2760
    %v3433 = vpack.c.b16 %v2769, %v2761
    %v3434 = vpack.c.b16 %v2770, %v2762
    %v3435 = vpack.c.b16 %v2771, %v2763
    %v3436 = vpack.c.b16 %v2772, %v2764
    %v3437 = vpack.c.b16 %v2773, %v2765
    %v3438 = vpack.c.b16 %v2774, %v2766
    %v3439 = vpack.c.b16 %v2783, %v2775
    %v3440 = vpack.c.b16 %v2784, %v2776
    %v3441 = vpack.c.b16 %v2785, %v2777
    %v3442 = vpack.c.b16 %v2786, %v2778
    %v3443 = vpack.c.b16 %v2787, %v2779
    %v3444 = vpack.c.b16 %v2788, %v2780
    %v3445 = vpack.c.b16 %v2789, %v2781
    %v3446 = vpack.c.b16 %v2790, %v2782
    %v3447 = vpack.c.b16 %v2799, %v2791
    %v3448 = vpack.c.b16 %v2800, %v2792
    %v3449 = vpack.c.b16 %v2801, %v2793
    %v3450 = vpack.c.b16 %v2802, %v2794
    %v3451 = vpack.c.b16 %v2803, %v2795
    %v3452 = vpack.c.b16 %v2804, %v2796
    %v3453 = vpack.c.b16 %v2805, %v2797
    %v3454 = vpack.c.b16 %v2806, %v2798
    %v3455 = vpack.c.b16 %v2815, %v2807
    %v3456 = vpack.c.b16 %v2816, %v2808
    %v3457 = vpack.c.b16 %v2817, %v2809
    %v3458 = vpack.c.b16 %v2818, %v2810
    %v3459 = vpack.c.b16 %v2819, %v2811
    %v3460 = vpack.c.b16 %v2820, %v2812
    %v3461 = vpack.c.b16 %v2821, %v2813
    %v3462 = vpack.c.b16 %v2822, %v2814
    %v3463 = vpack.c.b16 %v2831, %v2823
    %v3464 = vpack.c.b16 %v2832, %v2824
    %v3465 = vpack.c.b16 %v2833, %v2825
    %v3466 = vpack.c.b16 %v2834, %v2826
    %v3467 = vpack.c.b16 %v2835, %v2827
    %v3468 = vpack.c.b16 %v2836, %v2828
    %v3469 = vpack.c.b16 %v2837, %v2829
    %v3470 = vpack.c.b16 %v2838, %v2830
    %v3471 = vpack.c.b16 %v2847, %v2839
    %v3472 = vpack.c.b16 %v2848, %v2840
    %v3473 = vpack.c.b16 %v2849, %v2841
    %v3474 = vpack.c.b16 %v2850, %v2842
    %v3475 = vpack.c.b16 %v2851, %v2843
    %v3476 = vpack.c.b16 %v2852, %v2844
    %v3477 = vpack.c.b16 %v2853, %v2845
    %v3478 = vpack.c.b16 %v2854, %v2846
    %v3479 = vpack.c.b16 %v2863, %v2855
    %v3480 = vpack.c.b16 %v2864, %v2856
    %v3481 = vpack.c.b16 %v2865, %v2857
    %v3482 = vpack.c.b16 %v2866, %v2858
    %v3483 = vpack.c.b16 %v2867, %v2859
    %v3484 = vpack.c.b16 %v2868, %v2860
    %v3485 = vpack.c.b16 %v2869, %v2861
    %v3486 = vpack.c.b16 %v2870, %v2862
    %v3487 = vpack.c.b16 %v2879, %v2871
    %v3488 = vpack.c.b16 %v2880, %v2872
    %v3489 = vpack.c.b16 %v2881, %v2873
    %v3490 = vpack.c.b16 %v2882, %v2874
    %v3491 = vpack.c.b16 %v2883, %v2875
    %v3492 = vpack.c.b16 %v2884, %v2876
    %v3493 = vpack.c.b16 %v2885, %v2877
    %v3494 = vpack.c.b16 %v2886, %v2878
    %v3495 = vpack.c.b16 %v2895, %v2887
    %v3496 = vpack.c.b16 %v2896, %v2888
    %v3497 = vpack.c.b16 %v2897, %v2889
    %v3498 = vpack.c.b16 %v2898, %v2890
    %v3499 = vpack.c.b16 %v2899, %v2891
    %v3500 = vpack.c.b16 %v2900, %v2892
    %v3501 = vpack.c.b16 %v2901, %v2893
    %v3502 = vpack.c.b16 %v2902, %v2894
    %v3503 = vpack.c.b16 %v2911, %v2903
    %v3504 = vpack.c.b16 %v2912, %v2904
    %v3505 = vpack.c.b16 %v2913, %v2905
    %v3506 = vpack.c.b16 %v2914, %v2906
    %v3507 = vpack.c.b16 %v2915, %v2907
    %v3508 = vpack.c.b16 %v2916, %v2908
    %v3509 = vpack.c.b16 %v2917, %v2909
    %v3510 = vpack.c.b16 %v2918, %v2910
    %v3511 = vpack.c.b16 %v2927, %v2919
    %v3512 = vpack.c.b16 %v2928, %v2920
    %v3513 = vpack.c.b16 %v2929, %v2921
    %v3514 = vpack.c.b16 %v2930, %v2922
    %v3515 = vpack.c.b16 %v2931, %v2923
    %v3516 = vpack.c.b16 %v2932, %v2924
    %v3517 = vpack.c.b16 %v2933, %v2925
    %v3518 = vpack.c.b16 %v2934, %v2926
    %v3519 = vpack.c.b16 %v2943, %v2935
    %v3520 = vpack.c.b16 %v2944, %v2936
    %v3521 = vpack.c.b16 %v2945, %v2937
    %v3522 = vpack.c.b16 %v2946, %v2938
    %v3523 = vpack.c.b16 %v2947, %v2939
    %v3524 = vpack.c.b16 %v2948, %v2940
    %v3525 = vpack.c.b16 %v2949, %v2941
    %v3526 = vpack.c.b16 %v2950, %v2942
    %v3527 = vpack.c.b16 %v2959, %v2951
    %v3528 = vpack.c.b16 %v2960, %v2952
    %v3529 = vpack.c.b16 %v2961, %v2953
    %v3530 = vpack.c.b16 %v2962, %v2954
    %v3531 = vpack.c.b16 %v2963, %v2955
    %v3532 = vpack.c.b16 %v2964, %v2956
    %v3533 = vpack.c.b16 %v2965, %v2957
    %v3534 = vpack.c.b16 %v2966, %v2958
    %v3535 = vpack.c.b16 %v2975, %v2967
    %v3536 = vpack.c.b16 %v2976, %v2968
    %v3537 = vpack.c.b16 %v2977, %v2969
    %v3538 = vpack.c.b16 %v2978, %v2970
    %v3539 = vpack.c.b16 %v2979, %v2971
    %v3540 = vpack.c.b16 %v2980, %v2972
    %v3541 = vpack.c.b16 %v2981, %v2973
    %v3542 = vpack.c.b16 %v2982, %v2974
    %v3543 = vpack.c.b16 %v2991, %v2983
    %v3544 = vpack.c.b16 %v2992, %v2984
    %v3545 = vpack.c.b16 %v2993, %v2985
    %v3546 = vpack.c.b16 %v2994, %v2986
    %v3547 = vpack.c.b16 %v2995, %v2987
    %v3548 = vpack.c.b16 %v2996, %v2988
    %v3549 = vpack.c.b16 %v2997, %v2989
    %v3550 = vpack.c.b16 %v2998, %v2990
    %v3551 = vpack.c.b16 %v3007, %v2999
    %v3552 = vpack.c.b16 %v3008, %v3000
    %v3553 = vpack.c.b16 %v3009, %v3001
    %v3554 = vpack.c.b16 %v3010, %v3002
    %v3555 = vpack.c.b16 %v3011, %v3003
    %v3556 = vpack.c.b16 %v3012, %v3004
    %v3557 = vpack.c.b16 %v3013, %v3005
    %v3558 = vpack.c.b16 %v3014, %v3006
    %v3559 = vpack.c.b16 %v3023, %v3015
    %v3560 = vpack.c.b16 %v3024, %v3016
    %v3561 = vpack.c.b16 %v3025, %v3017
    %v3562 = vpack.c.b16 %v3026, %v3018
    %v3563 = vpack.c.b16 %v3027, %v3019
    %v3564 = vpack.c.b16 %v3028, %v3020
    %v3565 = vpack.c.b16 %v3029, %v3021
    %v3566 = vpack.c.b16 %v3030, %v3022
    %v3567 = vpack.c.b16 %v3039, %v3031
    %v3568 = vpack.c.b16 %v3040, %v3032
    %v3569 = vpack.c.b16 %v3041, %v3033
    %v3570 = vpack.c.b16 %v3042, %v3034
    %v3571 = vpack.c.b16 %v3043, %v3035
    %v3572 = vpack.c.b16 %v3044, %v3036
    %v3573 = vpack.c.b16 %v3045, %v3037
    %v3574 = vpack.c.b16 %v3046, %v3038
    %v3575 = vpack.c.b16 %v3055, %v3047
    %v3576 = vpack.c.b16 %v3056, %v3048
    %v3577 = vpack.c.b16 %v3057, %v3049
    %v3578 = vpack.c.b16 %v3058, %v3050
    %v3579 = vpack.c.b16 %v3059, %v3051
    %v3580 = vpack.c.b16 %v3060, %v3052
    %v3581 = vpack.c.b16 %v3061, %v3053
    %v3582 = vpack.c.b16 %v3062, %v3054
    %v3583 = vpack.c.b16 %v3071, %v3063
    %v3584 = vpack.c.b16 %v3072, %v3064
    %v3585 = vpack.c.b16 %v3073, %v3065
    %v3586 = vpack.c.b16 %v3074, %v3066
    %v3587 = vpack.c.b16 %v3075, %v3067
    %v3588 = vpack.c.b16 %v3076, %v3068
    %v3589 = vpack.c.b16 %v3077, %v3069
    %v3590 = vpack.c.b16 %v3078, %v3070
    %4103 = vmatpush.bf16.msra.mxu0 %v3135
    %4104 = vmatpush.bf16.msra.mxu0 %v3127
    %4105 = vmatpush.bf16.msra.mxu0 %v3119
    %4106 = vmatpush.bf16.msra.mxu0 %v3111
    %4107 = vmatpush.bf16.msra.mxu0 %v3103
    %4108 = vmatpush.bf16.msra.mxu0 %v3095
    %4109 = vmatpush.bf16.msra.mxu0 %v3087
    %4110 = vmatpush.bf16.msra.mxu0 %v3079
    %4111 = vmatmul.bf16.gmra.mxu0 %v1527
    %v4112 = vpop.f32.mrf.mxu0
    %v4113 = vadd.f32 %v1320, %v4112
    %v4114 = vpop.f32.mrf.mxu0
    %4115 = vdwg.mxu0
    %4116 = vmatpush.bf16.msra.mxu0 %v3199
    %4117 = vmatpush.bf16.msra.mxu0 %v3191
    %4118 = vmatpush.bf16.msra.mxu0 %v3183
    %4119 = vmatpush.bf16.msra.mxu0 %v3175
    %4120 = vmatpush.bf16.msra.mxu0 %v3167
    %4121 = vmatpush.bf16.msra.mxu0 %v3159
    %4122 = vmatpush.bf16.msra.mxu0 %v3151
    %4123 = vmatpush.bf16.msra.mxu0 %v3143
    %4124 = vmatmul.bf16.gmra.mxu0 %v1528
    %v4125 = vpop.f32.mrf.mxu0
    %v4126 = vadd.f32 %v4113, %v4125
    %v4127 = vpop.f32.mrf.mxu0
    %4128 = vdwg.mxu0
    %4129 = vmatpush.bf16.msra.mxu0 %v3263
    %4130 = vmatpush.bf16.msra.mxu0 %v3255
    %4131 = vmatpush.bf16.msra.mxu0 %v3247
    %4132 = vmatpush.bf16.msra.mxu0 %v3239
    %4133 = vmatpush.bf16.msra.mxu0 %v3231
    %4134 = vmatpush.bf16.msra.mxu0 %v3223
    %4135 = vmatpush.bf16.msra.mxu0 %v3215
    %4136 = vmatpush.bf16.msra.mxu0 %v3207
    %4137 = vmatmul.bf16.gmra.mxu0 %v1529
    %v4138 = vpop.f32.mrf.mxu0
    %v4139 = vadd.f32 %v4126, %v4138
    %v4140 = vpop.f32.mrf.mxu0
    %4141 = vdwg.mxu0
    %4142 = vmatpush.bf16.msra.mxu0 %v3327
    %4143 = vmatpush.bf16.msra.mxu0 %v3319
    %4144 = vmatpush.bf16.msra.mxu0 %v3311
    %4145 = vmatpush.bf16.msra.mxu0 %v3303
    %4146 = vmatpush.bf16.msra.mxu0 %v3295
    %4147 = vmatpush.bf16.msra.mxu0 %v3287
    %4148 = vmatpush.bf16.msra.mxu0 %v3279
    %4149 = vmatpush.bf16.msra.mxu0 %v3271
    %4150 = vmatmul.bf16.gmra.mxu0 %v1530
    %v4151 = vpop.f32.mrf.mxu0
    %v4152 = vadd.f32 %v4139, %v4151
    %v4153 = vpop.f32.mrf.mxu0
    %4154 = vdwg.mxu0
    %4155 = vmatpush.bf16.msra.mxu0 %v3391
    %4156 = vmatpush.bf16.msra.mxu0 %v3383
    %4157 = vmatpush.bf16.msra.mxu0 %v3375
    %4158 = vmatpush.bf16.msra.mxu0 %v3367
    %4159 = vmatpush.bf16.msra.mxu0 %v3359
    %4160 = vmatpush.bf16.msra.mxu0 %v3351
    %4161 = vmatpush.bf16.msra.mxu0 %v3343
    %4162 = vmatpush.bf16.msra.mxu0 %v3335
    %4163 = vmatmul.bf16.gmra.mxu0 %v1531
    %v4164 = vpop.f32.mrf.mxu0
    %v4165 = vadd.f32 %v4152, %v4164
    %v4166 = vpop.f32.mrf.mxu0
    %4167 = vdwg.mxu0
    %4168 = vmatpush.bf16.msra.mxu0 %v3455
    %4169 = vmatpush.bf16.msra.mxu0 %v3447
    %4170 = vmatpush.bf16.msra.mxu0 %v3439
    %4171 = vmatpush.bf16.msra.mxu0 %v3431
    %4172 = vmatpush.bf16.msra.mxu0 %v3423
    %4173 = vmatpush.bf16.msra.mxu0 %v3415
    %4174 = vmatpush.bf16.msra.mxu0 %v3407
    %4175 = vmatpush.bf16.msra.mxu0 %v3399
    %4176 = vmatmul.bf16.gmra.mxu0 %v1532
    %v4177 = vpop.f32.mrf.mxu0
    %v4178 = vadd.f32 %v4165, %v4177
    %v4179 = vpop.f32.mrf.mxu0
    %4180 = vdwg.mxu0
    %4181 = vmatpush.bf16.msra.mxu0 %v3519
    %4182 = vmatpush.bf16.msra.mxu0 %v3511
    %4183 = vmatpush.bf16.msra.mxu0 %v3503
    %4184 = vmatpush.bf16.msra.mxu0 %v3495
    %4185 = vmatpush.bf16.msra.mxu0 %v3487
    %4186 = vmatpush.bf16.msra.mxu0 %v3479
    %4187 = vmatpush.bf16.msra.mxu0 %v3471
    %4188 = vmatpush.bf16.msra.mxu0 %v3463
    %4189 = vmatmul.bf16.gmra.mxu0 %v1533
    %v4190 = vpop.f32.mrf.mxu0
    %v4191 = vadd.f32 %v4178, %v4190
    %v4192 = vpop.f32.mrf.mxu0
    %4193 = vdwg.mxu0
    %4194 = vmatpush.bf16.msra.mxu0 %v3583
    %4195 = vmatpush.bf16.msra.mxu0 %v3575
    %4196 = vmatpush.bf16.msra.mxu0 %v3567
    %4197 = vmatpush.bf16.msra.mxu0 %v3559
    %4198 = vmatpush.bf16.msra.mxu0 %v3551
    %4199 = vmatpush.bf16.msra.mxu0 %v3543
    %4200 = vmatpush.bf16.msra.mxu0 %v3535
    %4201 = vmatpush.bf16.msra.mxu0 %v3527
    %4202 = vmatmul.bf16.gmra.mxu0 %v1534
    %v4203 = vpop.f32.mrf.mxu0
    %v4204 = vadd.f32 %v4191, %v4203
    %v4205 = vpop.f32.mrf.mxu0
    %4206 = vdwg.mxu0
    %4207 = vmatpush.bf16.msra.mxu0 %v3136
    %4208 = vmatpush.bf16.msra.mxu0 %v3128
    %4209 = vmatpush.bf16.msra.mxu0 %v3120
    %4210 = vmatpush.bf16.msra.mxu0 %v3112
    %4211 = vmatpush.bf16.msra.mxu0 %v3104
    %4212 = vmatpush.bf16.msra.mxu0 %v3096
    %4213 = vmatpush.bf16.msra.mxu0 %v3088
    %4214 = vmatpush.bf16.msra.mxu0 %v3080
    %4215 = vmatmul.bf16.gmra.mxu0 %v1527
    %v4216 = vpop.f32.mrf.mxu0
    %v4217 = vadd.f32 %v1321, %v4216
    %v4218 = vpop.f32.mrf.mxu0
    %4219 = vdwg.mxu0
    %4220 = vmatpush.bf16.msra.mxu0 %v3200
    %4221 = vmatpush.bf16.msra.mxu0 %v3192
    %4222 = vmatpush.bf16.msra.mxu0 %v3184
    %4223 = vmatpush.bf16.msra.mxu0 %v3176
    %4224 = vmatpush.bf16.msra.mxu0 %v3168
    %4225 = vmatpush.bf16.msra.mxu0 %v3160
    %4226 = vmatpush.bf16.msra.mxu0 %v3152
    %4227 = vmatpush.bf16.msra.mxu0 %v3144
    %4228 = vmatmul.bf16.gmra.mxu0 %v1528
    %v4229 = vpop.f32.mrf.mxu0
    %v4230 = vadd.f32 %v4217, %v4229
    %v4231 = vpop.f32.mrf.mxu0
    %4232 = vdwg.mxu0
    %4233 = vmatpush.bf16.msra.mxu0 %v3264
    %4234 = vmatpush.bf16.msra.mxu0 %v3256
    %4235 = vmatpush.bf16.msra.mxu0 %v3248
    %4236 = vmatpush.bf16.msra.mxu0 %v3240
    %4237 = vmatpush.bf16.msra.mxu0 %v3232
    %4238 = vmatpush.bf16.msra.mxu0 %v3224
    %4239 = vmatpush.bf16.msra.mxu0 %v3216
    %4240 = vmatpush.bf16.msra.mxu0 %v3208
    %4241 = vmatmul.bf16.gmra.mxu0 %v1529
    %v4242 = vpop.f32.mrf.mxu0
    %v4243 = vadd.f32 %v4230, %v4242
    %v4244 = vpop.f32.mrf.mxu0
    %4245 = vdwg.mxu0
    %4246 = vmatpush.bf16.msra.mxu0 %v3328
    %4247 = vmatpush.bf16.msra.mxu0 %v3320
    %4248 = vmatpush.bf16.msra.mxu0 %v3312
    %4249 = vmatpush.bf16.msra.mxu0 %v3304
    %4250 = vmatpush.bf16.msra.mxu0 %v3296
    %4251 = vmatpush.bf16.msra.mxu0 %v3288
    %4252 = vmatpush.bf16.msra.mxu0 %v3280
    %4253 = vmatpush.bf16.msra.mxu0 %v3272
    %4254 = vmatmul.bf16.gmra.mxu0 %v1530
    %v4255 = vpop.f32.mrf.mxu0
    %v4256 = vadd.f32 %v4243, %v4255
    %v4257 = vpop.f32.mrf.mxu0
    %4258 = vdwg.mxu0
    %4259 = vmatpush.bf16.msra.mxu0 %v3392
    %4260 = vmatpush.bf16.msra.mxu0 %v3384
    %4261 = vmatpush.bf16.msra.mxu0 %v3376
    %4262 = vmatpush.bf16.msra.mxu0 %v3368
    %4263 = vmatpush.bf16.msra.mxu0 %v3360
    %4264 = vmatpush.bf16.msra.mxu0 %v3352
    %4265 = vmatpush.bf16.msra.mxu0 %v3344
    %4266 = vmatpush.bf16.msra.mxu0 %v3336
    %4267 = vmatmul.bf16.gmra.mxu0 %v1531
    %v4268 = vpop.f32.mrf.mxu0
    %v4269 = vadd.f32 %v4256, %v4268
    %v4270 = vpop.f32.mrf.mxu0
    %4271 = vdwg.mxu0
    %4272 = vmatpush.bf16.msra.mxu0 %v3456
    %4273 = vmatpush.bf16.msra.mxu0 %v3448
    %4274 = vmatpush.bf16.msra.mxu0 %v3440
    %4275 = vmatpush.bf16.msra.mxu0 %v3432
    %4276 = vmatpush.bf16.msra.mxu0 %v3424
    %4277 = vmatpush.bf16.msra.mxu0 %v3416
    %4278 = vmatpush.bf16.msra.mxu0 %v3408
    %4279 = vmatpush.bf16.msra.mxu0 %v3400
    %4280 = vmatmul.bf16.gmra.mxu0 %v1532
    %v4281 = vpop.f32.mrf.mxu0
    %v4282 = vadd.f32 %v4269, %v4281
    %v4283 = vpop.f32.mrf.mxu0
    %4284 = vdwg.mxu0
    %4285 = vmatpush.bf16.msra.mxu0 %v3520
    %4286 = vmatpush.bf16.msra.mxu0 %v3512
    %4287 = vmatpush.bf16.msra.mxu0 %v3504
    %4288 = vmatpush.bf16.msra.mxu0 %v3496
    %4289 = vmatpush.bf16.msra.mxu0 %v3488
    %4290 = vmatpush.bf16.msra.mxu0 %v3480
    %4291 = vmatpush.bf16.msra.mxu0 %v3472
    %4292 = vmatpush.bf16.msra.mxu0 %v3464
    %4293 = vmatmul.bf16.gmra.mxu0 %v1533
    %v4294 = vpop.f32.mrf.mxu0
    %v4295 = vadd.f32 %v4282, %v4294
    %v4296 = vpop.f32.mrf.mxu0
    %4297 = vdwg.mxu0
    %4298 = vmatpush.bf16.msra.mxu0 %v3584
    %4299 = vmatpush.bf16.msra.mxu0 %v3576
    %4300 = vmatpush.bf16.msra.mxu0 %v3568
    %4301 = vmatpush.bf16.msra.mxu0 %v3560
    %4302 = vmatpush.bf16.msra.mxu0 %v3552
    %4303 = vmatpush.bf16.msra.mxu0 %v3544
    %4304 = vmatpush.bf16.msra.mxu0 %v3536
    %4305 = vmatpush.bf16.msra.mxu0 %v3528
    %4306 = vmatmul.bf16.gmra.mxu0 %v1534
    %v4307 = vpop.f32.mrf.mxu0
    %v4308 = vadd.f32 %v4295, %v4307
    %v4309 = vpop.f32.mrf.mxu0
    %4310 = vdwg.mxu0
    %4311 = vmatpush.bf16.msra.mxu0 %v3137
    %4312 = vmatpush.bf16.msra.mxu0 %v3129
    %4313 = vmatpush.bf16.msra.mxu0 %v3121
    %4314 = vmatpush.bf16.msra.mxu0 %v3113
    %4315 = vmatpush.bf16.msra.mxu0 %v3105
    %4316 = vmatpush.bf16.msra.mxu0 %v3097
    %4317 = vmatpush.bf16.msra.mxu0 %v3089
    %4318 = vmatpush.bf16.msra.mxu0 %v3081
    %4319 = vmatmul.bf16.gmra.mxu0 %v1527
    %v4320 = vpop.f32.mrf.mxu0
    %v4321 = vadd.f32 %v1322, %v4320
    %v4322 = vpop.f32.mrf.mxu0
    %4323 = vdwg.mxu0
    %4324 = vmatpush.bf16.msra.mxu0 %v3201
    %4325 = vmatpush.bf16.msra.mxu0 %v3193
    %4326 = vmatpush.bf16.msra.mxu0 %v3185
    %4327 = vmatpush.bf16.msra.mxu0 %v3177
    %4328 = vmatpush.bf16.msra.mxu0 %v3169
    %4329 = vmatpush.bf16.msra.mxu0 %v3161
    %4330 = vmatpush.bf16.msra.mxu0 %v3153
    %4331 = vmatpush.bf16.msra.mxu0 %v3145
    %4332 = vmatmul.bf16.gmra.mxu0 %v1528
    %v4333 = vpop.f32.mrf.mxu0
    %v4334 = vadd.f32 %v4321, %v4333
    %v4335 = vpop.f32.mrf.mxu0
    %4336 = vdwg.mxu0
    %4337 = vmatpush.bf16.msra.mxu0 %v3265
    %4338 = vmatpush.bf16.msra.mxu0 %v3257
    %4339 = vmatpush.bf16.msra.mxu0 %v3249
    %4340 = vmatpush.bf16.msra.mxu0 %v3241
    %4341 = vmatpush.bf16.msra.mxu0 %v3233
    %4342 = vmatpush.bf16.msra.mxu0 %v3225
    %4343 = vmatpush.bf16.msra.mxu0 %v3217
    %4344 = vmatpush.bf16.msra.mxu0 %v3209
    %4345 = vmatmul.bf16.gmra.mxu0 %v1529
    %v4346 = vpop.f32.mrf.mxu0
    %v4347 = vadd.f32 %v4334, %v4346
    %v4348 = vpop.f32.mrf.mxu0
    %4349 = vdwg.mxu0
    %4350 = vmatpush.bf16.msra.mxu0 %v3329
    %4351 = vmatpush.bf16.msra.mxu0 %v3321
    %4352 = vmatpush.bf16.msra.mxu0 %v3313
    %4353 = vmatpush.bf16.msra.mxu0 %v3305
    %4354 = vmatpush.bf16.msra.mxu0 %v3297
    %4355 = vmatpush.bf16.msra.mxu0 %v3289
    %4356 = vmatpush.bf16.msra.mxu0 %v3281
    %4357 = vmatpush.bf16.msra.mxu0 %v3273
    %4358 = vmatmul.bf16.gmra.mxu0 %v1530
    %v4359 = vpop.f32.mrf.mxu0
    %v4360 = vadd.f32 %v4347, %v4359
    %v4361 = vpop.f32.mrf.mxu0
    %4362 = vdwg.mxu0
    %4363 = vmatpush.bf16.msra.mxu0 %v3393
    %4364 = vmatpush.bf16.msra.mxu0 %v3385
    %4365 = vmatpush.bf16.msra.mxu0 %v3377
    %4366 = vmatpush.bf16.msra.mxu0 %v3369
    %4367 = vmatpush.bf16.msra.mxu0 %v3361
    %4368 = vmatpush.bf16.msra.mxu0 %v3353
    %4369 = vmatpush.bf16.msra.mxu0 %v3345
    %4370 = vmatpush.bf16.msra.mxu0 %v3337
    %4371 = vmatmul.bf16.gmra.mxu0 %v1531
    %v4372 = vpop.f32.mrf.mxu0
    %v4373 = vadd.f32 %v4360, %v4372
    %v4374 = vpop.f32.mrf.mxu0
    %4375 = vdwg.mxu0
    %4376 = vmatpush.bf16.msra.mxu0 %v3457
    %4377 = vmatpush.bf16.msra.mxu0 %v3449
    %4378 = vmatpush.bf16.msra.mxu0 %v3441
    %4379 = vmatpush.bf16.msra.mxu0 %v3433
    %4380 = vmatpush.bf16.msra.mxu0 %v3425
    %4381 = vmatpush.bf16.msra.mxu0 %v3417
    %4382 = vmatpush.bf16.msra.mxu0 %v3409
    %4383 = vmatpush.bf16.msra.mxu0 %v3401
    %4384 = vmatmul.bf16.gmra.mxu0 %v1532
    %v4385 = vpop.f32.mrf.mxu0
    %v4386 = vadd.f32 %v4373, %v4385
    %v4387 = vpop.f32.mrf.mxu0
    %4388 = vdwg.mxu0
    %4389 = vmatpush.bf16.msra.mxu0 %v3521
    %4390 = vmatpush.bf16.msra.mxu0 %v3513
    %4391 = vmatpush.bf16.msra.mxu0 %v3505
    %4392 = vmatpush.bf16.msra.mxu0 %v3497
    %4393 = vmatpush.bf16.msra.mxu0 %v3489
    %4394 = vmatpush.bf16.msra.mxu0 %v3481
    %4395 = vmatpush.bf16.msra.mxu0 %v3473
    %4396 = vmatpush.bf16.msra.mxu0 %v3465
    %4397 = vmatmul.bf16.gmra.mxu0 %v1533
    %v4398 = vpop.f32.mrf.mxu0
    %v4399 = vadd.f32 %v4386, %v4398
    %v4400 = vpop.f32.mrf.mxu0
    %4401 = vdwg.mxu0
    %4402 = vmatpush.bf16.msra.mxu0 %v3585
    %4403 = vmatpush.bf16.msra.mxu0 %v3577
    %4404 = vmatpush.bf16.msra.mxu0 %v3569
    %4405 = vmatpush.bf16.msra.mxu0 %v3561
    %4406 = vmatpush.bf16.msra.mxu0 %v3553
    %4407 = vmatpush.bf16.msra.mxu0 %v3545
    %4408 = vmatpush.bf16.msra.mxu0 %v3537
    %4409 = vmatpush.bf16.msra.mxu0 %v3529
    %4410 = vmatmul.bf16.gmra.mxu0 %v1534
    %v4411 = vpop.f32.mrf.mxu0
    %v4412 = vadd.f32 %v4399, %v4411
    %v4413 = vpop.f32.mrf.mxu0
    %4414 = vdwg.mxu0
    %4415 = vmatpush.bf16.msra.mxu0 %v3138
    %4416 = vmatpush.bf16.msra.mxu0 %v3130
    %4417 = vmatpush.bf16.msra.mxu0 %v3122
    %4418 = vmatpush.bf16.msra.mxu0 %v3114
    %4419 = vmatpush.bf16.msra.mxu0 %v3106
    %4420 = vmatpush.bf16.msra.mxu0 %v3098
    %4421 = vmatpush.bf16.msra.mxu0 %v3090
    %4422 = vmatpush.bf16.msra.mxu0 %v3082
    %4423 = vmatmul.bf16.gmra.mxu0 %v1527
    %v4424 = vpop.f32.mrf.mxu0
    %v4425 = vadd.f32 %v1323, %v4424
    %v4426 = vpop.f32.mrf.mxu0
    %4427 = vdwg.mxu0
    %4428 = vmatpush.bf16.msra.mxu0 %v3202
    %4429 = vmatpush.bf16.msra.mxu0 %v3194
    %4430 = vmatpush.bf16.msra.mxu0 %v3186
    %4431 = vmatpush.bf16.msra.mxu0 %v3178
    %4432 = vmatpush.bf16.msra.mxu0 %v3170
    %4433 = vmatpush.bf16.msra.mxu0 %v3162
    %4434 = vmatpush.bf16.msra.mxu0 %v3154
    %4435 = vmatpush.bf16.msra.mxu0 %v3146
    %4436 = vmatmul.bf16.gmra.mxu0 %v1528
    %v4437 = vpop.f32.mrf.mxu0
    %v4438 = vadd.f32 %v4425, %v4437
    %v4439 = vpop.f32.mrf.mxu0
    %4440 = vdwg.mxu0
    %4441 = vmatpush.bf16.msra.mxu0 %v3266
    %4442 = vmatpush.bf16.msra.mxu0 %v3258
    %4443 = vmatpush.bf16.msra.mxu0 %v3250
    %4444 = vmatpush.bf16.msra.mxu0 %v3242
    %4445 = vmatpush.bf16.msra.mxu0 %v3234
    %4446 = vmatpush.bf16.msra.mxu0 %v3226
    %4447 = vmatpush.bf16.msra.mxu0 %v3218
    %4448 = vmatpush.bf16.msra.mxu0 %v3210
    %4449 = vmatmul.bf16.gmra.mxu0 %v1529
    %v4450 = vpop.f32.mrf.mxu0
    %v4451 = vadd.f32 %v4438, %v4450
    %v4452 = vpop.f32.mrf.mxu0
    %4453 = vdwg.mxu0
    %4454 = vmatpush.bf16.msra.mxu0 %v3330
    %4455 = vmatpush.bf16.msra.mxu0 %v3322
    %4456 = vmatpush.bf16.msra.mxu0 %v3314
    %4457 = vmatpush.bf16.msra.mxu0 %v3306
    %4458 = vmatpush.bf16.msra.mxu0 %v3298
    %4459 = vmatpush.bf16.msra.mxu0 %v3290
    %4460 = vmatpush.bf16.msra.mxu0 %v3282
    %4461 = vmatpush.bf16.msra.mxu0 %v3274
    %4462 = vmatmul.bf16.gmra.mxu0 %v1530
    %v4463 = vpop.f32.mrf.mxu0
    %v4464 = vadd.f32 %v4451, %v4463
    %v4465 = vpop.f32.mrf.mxu0
    %4466 = vdwg.mxu0
    %4467 = vmatpush.bf16.msra.mxu0 %v3394
    %4468 = vmatpush.bf16.msra.mxu0 %v3386
    %4469 = vmatpush.bf16.msra.mxu0 %v3378
    %4470 = vmatpush.bf16.msra.mxu0 %v3370
    %4471 = vmatpush.bf16.msra.mxu0 %v3362
    %4472 = vmatpush.bf16.msra.mxu0 %v3354
    %4473 = vmatpush.bf16.msra.mxu0 %v3346
    %4474 = vmatpush.bf16.msra.mxu0 %v3338
    %4475 = vmatmul.bf16.gmra.mxu0 %v1531
    %v4476 = vpop.f32.mrf.mxu0
    %v4477 = vadd.f32 %v4464, %v4476
    %v4478 = vpop.f32.mrf.mxu0
    %4479 = vdwg.mxu0
    %4480 = vmatpush.bf16.msra.mxu0 %v3458
    %4481 = vmatpush.bf16.msra.mxu0 %v3450
    %4482 = vmatpush.bf16.msra.mxu0 %v3442
    %4483 = vmatpush.bf16.msra.mxu0 %v3434
    %4484 = vmatpush.bf16.msra.mxu0 %v3426
    %4485 = vmatpush.bf16.msra.mxu0 %v3418
    %4486 = vmatpush.bf16.msra.mxu0 %v3410
    %4487 = vmatpush.bf16.msra.mxu0 %v3402
    %4488 = vmatmul.bf16.gmra.mxu0 %v1532
    %v4489 = vpop.f32.mrf.mxu0
    %v4490 = vadd.f32 %v4477, %v4489
    %v4491 = vpop.f32.mrf.mxu0
    %4492 = vdwg.mxu0
    %4493 = vmatpush.bf16.msra.mxu0 %v3522
    %4494 = vmatpush.bf16.msra.mxu0 %v3514
    %4495 = vmatpush.bf16.msra.mxu0 %v3506
    %4496 = vmatpush.bf16.msra.mxu0 %v3498
    %4497 = vmatpush.bf16.msra.mxu0 %v3490
    %4498 = vmatpush.bf16.msra.mxu0 %v3482
    %4499 = vmatpush.bf16.msra.mxu0 %v3474
    %4500 = vmatpush.bf16.msra.mxu0 %v3466
    %4501 = vmatmul.bf16.gmra.mxu0 %v1533
    %v4502 = vpop.f32.mrf.mxu0
    %v4503 = vadd.f32 %v4490, %v4502
    %v4504 = vpop.f32.mrf.mxu0
    %4505 = vdwg.mxu0
    %4506 = vmatpush.bf16.msra.mxu0 %v3586
    %4507 = vmatpush.bf16.msra.mxu0 %v3578
    %4508 = vmatpush.bf16.msra.mxu0 %v3570
    %4509 = vmatpush.bf16.msra.mxu0 %v3562
    %4510 = vmatpush.bf16.msra.mxu0 %v3554
    %4511 = vmatpush.bf16.msra.mxu0 %v3546
    %4512 = vmatpush.bf16.msra.mxu0 %v3538
    %4513 = vmatpush.bf16.msra.mxu0 %v3530
    %4514 = vmatmul.bf16.gmra.mxu0 %v1534
    %v4515 = vpop.f32.mrf.mxu0
    %v4516 = vadd.f32 %v4503, %v4515
    %v4517 = vpop.f32.mrf.mxu0
    %4518 = vdwg.mxu0
    %4519 = vmatpush.bf16.msra.mxu0 %v3139
    %4520 = vmatpush.bf16.msra.mxu0 %v3131
    %4521 = vmatpush.bf16.msra.mxu0 %v3123
    %4522 = vmatpush.bf16.msra.mxu0 %v3115
    %4523 = vmatpush.bf16.msra.mxu0 %v3107
    %4524 = vmatpush.bf16.msra.mxu0 %v3099
    %4525 = vmatpush.bf16.msra.mxu0 %v3091
    %4526 = vmatpush.bf16.msra.mxu0 %v3083
    %4527 = vmatmul.bf16.gmra.mxu0 %v1527
    %v4528 = vpop.f32.mrf.mxu0
    %v4529 = vadd.f32 %v1324, %v4528
    %v4530 = vpop.f32.mrf.mxu0
    %4531 = vdwg.mxu0
    %4532 = vmatpush.bf16.msra.mxu0 %v3203
    %4533 = vmatpush.bf16.msra.mxu0 %v3195
    %4534 = vmatpush.bf16.msra.mxu0 %v3187
    %4535 = vmatpush.bf16.msra.mxu0 %v3179
    %4536 = vmatpush.bf16.msra.mxu0 %v3171
    %4537 = vmatpush.bf16.msra.mxu0 %v3163
    %4538 = vmatpush.bf16.msra.mxu0 %v3155
    %4539 = vmatpush.bf16.msra.mxu0 %v3147
    %4540 = vmatmul.bf16.gmra.mxu0 %v1528
    %v4541 = vpop.f32.mrf.mxu0
    %v4542 = vadd.f32 %v4529, %v4541
    %v4543 = vpop.f32.mrf.mxu0
    %4544 = vdwg.mxu0
    %4545 = vmatpush.bf16.msra.mxu0 %v3267
    %4546 = vmatpush.bf16.msra.mxu0 %v3259
    %4547 = vmatpush.bf16.msra.mxu0 %v3251
    %4548 = vmatpush.bf16.msra.mxu0 %v3243
    %4549 = vmatpush.bf16.msra.mxu0 %v3235
    %4550 = vmatpush.bf16.msra.mxu0 %v3227
    %4551 = vmatpush.bf16.msra.mxu0 %v3219
    %4552 = vmatpush.bf16.msra.mxu0 %v3211
    %4553 = vmatmul.bf16.gmra.mxu0 %v1529
    %v4554 = vpop.f32.mrf.mxu0
    %v4555 = vadd.f32 %v4542, %v4554
    %v4556 = vpop.f32.mrf.mxu0
    %4557 = vdwg.mxu0
    %4558 = vmatpush.bf16.msra.mxu0 %v3331
    %4559 = vmatpush.bf16.msra.mxu0 %v3323
    %4560 = vmatpush.bf16.msra.mxu0 %v3315
    %4561 = vmatpush.bf16.msra.mxu0 %v3307
    %4562 = vmatpush.bf16.msra.mxu0 %v3299
    %4563 = vmatpush.bf16.msra.mxu0 %v3291
    %4564 = vmatpush.bf16.msra.mxu0 %v3283
    %4565 = vmatpush.bf16.msra.mxu0 %v3275
    %4566 = vmatmul.bf16.gmra.mxu0 %v1530
    %v4567 = vpop.f32.mrf.mxu0
    %v4568 = vadd.f32 %v4555, %v4567
    %v4569 = vpop.f32.mrf.mxu0
    %4570 = vdwg.mxu0
    %4571 = vmatpush.bf16.msra.mxu0 %v3395
    %4572 = vmatpush.bf16.msra.mxu0 %v3387
    %4573 = vmatpush.bf16.msra.mxu0 %v3379
    %4574 = vmatpush.bf16.msra.mxu0 %v3371
    %4575 = vmatpush.bf16.msra.mxu0 %v3363
    %4576 = vmatpush.bf16.msra.mxu0 %v3355
    %4577 = vmatpush.bf16.msra.mxu0 %v3347
    %4578 = vmatpush.bf16.msra.mxu0 %v3339
    %4579 = vmatmul.bf16.gmra.mxu0 %v1531
    %v4580 = vpop.f32.mrf.mxu0
    %v4581 = vadd.f32 %v4568, %v4580
    %v4582 = vpop.f32.mrf.mxu0
    %4583 = vdwg.mxu0
    %4584 = vmatpush.bf16.msra.mxu0 %v3459
    %4585 = vmatpush.bf16.msra.mxu0 %v3451
    %4586 = vmatpush.bf16.msra.mxu0 %v3443
    %4587 = vmatpush.bf16.msra.mxu0 %v3435
    %4588 = vmatpush.bf16.msra.mxu0 %v3427
    %4589 = vmatpush.bf16.msra.mxu0 %v3419
    %4590 = vmatpush.bf16.msra.mxu0 %v3411
    %4591 = vmatpush.bf16.msra.mxu0 %v3403
    %4592 = vmatmul.bf16.gmra.mxu0 %v1532
    %v4593 = vpop.f32.mrf.mxu0
    %v4594 = vadd.f32 %v4581, %v4593
    %v4595 = vpop.f32.mrf.mxu0
    %4596 = vdwg.mxu0
    %4597 = vmatpush.bf16.msra.mxu0 %v3523
    %4598 = vmatpush.bf16.msra.mxu0 %v3515
    %4599 = vmatpush.bf16.msra.mxu0 %v3507
    %4600 = vmatpush.bf16.msra.mxu0 %v3499
    %4601 = vmatpush.bf16.msra.mxu0 %v3491
    %4602 = vmatpush.bf16.msra.mxu0 %v3483
    %4603 = vmatpush.bf16.msra.mxu0 %v3475
    %4604 = vmatpush.bf16.msra.mxu0 %v3467
    %4605 = vmatmul.bf16.gmra.mxu0 %v1533
    %v4606 = vpop.f32.mrf.mxu0
    %v4607 = vadd.f32 %v4594, %v4606
    %v4608 = vpop.f32.mrf.mxu0
    %4609 = vdwg.mxu0
    %4610 = vmatpush.bf16.msra.mxu0 %v3587
    %4611 = vmatpush.bf16.msra.mxu0 %v3579
    %4612 = vmatpush.bf16.msra.mxu0 %v3571
    %4613 = vmatpush.bf16.msra.mxu0 %v3563
    %4614 = vmatpush.bf16.msra.mxu0 %v3555
    %4615 = vmatpush.bf16.msra.mxu0 %v3547
    %4616 = vmatpush.bf16.msra.mxu0 %v3539
    %4617 = vmatpush.bf16.msra.mxu0 %v3531
    %4618 = vmatmul.bf16.gmra.mxu0 %v1534
    %v4619 = vpop.f32.mrf.mxu0
    %v4620 = vadd.f32 %v4607, %v4619
    %v4621 = vpop.f32.mrf.mxu0
    %4622 = vdwg.mxu0
    %4623 = vmatpush.bf16.msra.mxu0 %v3140
    %4624 = vmatpush.bf16.msra.mxu0 %v3132
    %4625 = vmatpush.bf16.msra.mxu0 %v3124
    %4626 = vmatpush.bf16.msra.mxu0 %v3116
    %4627 = vmatpush.bf16.msra.mxu0 %v3108
    %4628 = vmatpush.bf16.msra.mxu0 %v3100
    %4629 = vmatpush.bf16.msra.mxu0 %v3092
    %4630 = vmatpush.bf16.msra.mxu0 %v3084
    %4631 = vmatmul.bf16.gmra.mxu0 %v1527
    %v4632 = vpop.f32.mrf.mxu0
    %v4633 = vadd.f32 %v1325, %v4632
    %v4634 = vpop.f32.mrf.mxu0
    %4635 = vdwg.mxu0
    %4636 = vmatpush.bf16.msra.mxu0 %v3204
    %4637 = vmatpush.bf16.msra.mxu0 %v3196
    %4638 = vmatpush.bf16.msra.mxu0 %v3188
    %4639 = vmatpush.bf16.msra.mxu0 %v3180
    %4640 = vmatpush.bf16.msra.mxu0 %v3172
    %4641 = vmatpush.bf16.msra.mxu0 %v3164
    %4642 = vmatpush.bf16.msra.mxu0 %v3156
    %4643 = vmatpush.bf16.msra.mxu0 %v3148
    %4644 = vmatmul.bf16.gmra.mxu0 %v1528
    %v4645 = vpop.f32.mrf.mxu0
    %v4646 = vadd.f32 %v4633, %v4645
    %v4647 = vpop.f32.mrf.mxu0
    %4648 = vdwg.mxu0
    %4649 = vmatpush.bf16.msra.mxu0 %v3268
    %4650 = vmatpush.bf16.msra.mxu0 %v3260
    %4651 = vmatpush.bf16.msra.mxu0 %v3252
    %4652 = vmatpush.bf16.msra.mxu0 %v3244
    %4653 = vmatpush.bf16.msra.mxu0 %v3236
    %4654 = vmatpush.bf16.msra.mxu0 %v3228
    %4655 = vmatpush.bf16.msra.mxu0 %v3220
    %4656 = vmatpush.bf16.msra.mxu0 %v3212
    %4657 = vmatmul.bf16.gmra.mxu0 %v1529
    %v4658 = vpop.f32.mrf.mxu0
    %v4659 = vadd.f32 %v4646, %v4658
    %v4660 = vpop.f32.mrf.mxu0
    %4661 = vdwg.mxu0
    %4662 = vmatpush.bf16.msra.mxu0 %v3332
    %4663 = vmatpush.bf16.msra.mxu0 %v3324
    %4664 = vmatpush.bf16.msra.mxu0 %v3316
    %4665 = vmatpush.bf16.msra.mxu0 %v3308
    %4666 = vmatpush.bf16.msra.mxu0 %v3300
    %4667 = vmatpush.bf16.msra.mxu0 %v3292
    %4668 = vmatpush.bf16.msra.mxu0 %v3284
    %4669 = vmatpush.bf16.msra.mxu0 %v3276
    %4670 = vmatmul.bf16.gmra.mxu0 %v1530
    %v4671 = vpop.f32.mrf.mxu0
    %v4672 = vadd.f32 %v4659, %v4671
    %v4673 = vpop.f32.mrf.mxu0
    %4674 = vdwg.mxu0
    %4675 = vmatpush.bf16.msra.mxu0 %v3396
    %4676 = vmatpush.bf16.msra.mxu0 %v3388
    %4677 = vmatpush.bf16.msra.mxu0 %v3380
    %4678 = vmatpush.bf16.msra.mxu0 %v3372
    %4679 = vmatpush.bf16.msra.mxu0 %v3364
    %4680 = vmatpush.bf16.msra.mxu0 %v3356
    %4681 = vmatpush.bf16.msra.mxu0 %v3348
    %4682 = vmatpush.bf16.msra.mxu0 %v3340
    %4683 = vmatmul.bf16.gmra.mxu0 %v1531
    %v4684 = vpop.f32.mrf.mxu0
    %v4685 = vadd.f32 %v4672, %v4684
    %v4686 = vpop.f32.mrf.mxu0
    %4687 = vdwg.mxu0
    %4688 = vmatpush.bf16.msra.mxu0 %v3460
    %4689 = vmatpush.bf16.msra.mxu0 %v3452
    %4690 = vmatpush.bf16.msra.mxu0 %v3444
    %4691 = vmatpush.bf16.msra.mxu0 %v3436
    %4692 = vmatpush.bf16.msra.mxu0 %v3428
    %4693 = vmatpush.bf16.msra.mxu0 %v3420
    %4694 = vmatpush.bf16.msra.mxu0 %v3412
    %4695 = vmatpush.bf16.msra.mxu0 %v3404
    %4696 = vmatmul.bf16.gmra.mxu0 %v1532
    %v4697 = vpop.f32.mrf.mxu0
    %v4698 = vadd.f32 %v4685, %v4697
    %v4699 = vpop.f32.mrf.mxu0
    %4700 = vdwg.mxu0
    %4701 = vmatpush.bf16.msra.mxu0 %v3524
    %4702 = vmatpush.bf16.msra.mxu0 %v3516
    %4703 = vmatpush.bf16.msra.mxu0 %v3508
    %4704 = vmatpush.bf16.msra.mxu0 %v3500
    %4705 = vmatpush.bf16.msra.mxu0 %v3492
    %4706 = vmatpush.bf16.msra.mxu0 %v3484
    %4707 = vmatpush.bf16.msra.mxu0 %v3476
    %4708 = vmatpush.bf16.msra.mxu0 %v3468
    %4709 = vmatmul.bf16.gmra.mxu0 %v1533
    %v4710 = vpop.f32.mrf.mxu0
    %v4711 = vadd.f32 %v4698, %v4710
    %v4712 = vpop.f32.mrf.mxu0
    %4713 = vdwg.mxu0
    %4714 = vmatpush.bf16.msra.mxu0 %v3588
    %4715 = vmatpush.bf16.msra.mxu0 %v3580
    %4716 = vmatpush.bf16.msra.mxu0 %v3572
    %4717 = vmatpush.bf16.msra.mxu0 %v3564
    %4718 = vmatpush.bf16.msra.mxu0 %v3556
    %4719 = vmatpush.bf16.msra.mxu0 %v3548
    %4720 = vmatpush.bf16.msra.mxu0 %v3540
    %4721 = vmatpush.bf16.msra.mxu0 %v3532
    %4722 = vmatmul.bf16.gmra.mxu0 %v1534
    %v4723 = vpop.f32.mrf.mxu0
    %v4724 = vadd.f32 %v4711, %v4723
    %v4725 = vpop.f32.mrf.mxu0
    %4726 = vdwg.mxu0
    %4727 = vmatpush.bf16.msra.mxu0 %v3141
    %4728 = vmatpush.bf16.msra.mxu0 %v3133
    %4729 = vmatpush.bf16.msra.mxu0 %v3125
    %4730 = vmatpush.bf16.msra.mxu0 %v3117
    %4731 = vmatpush.bf16.msra.mxu0 %v3109
    %4732 = vmatpush.bf16.msra.mxu0 %v3101
    %4733 = vmatpush.bf16.msra.mxu0 %v3093
    %4734 = vmatpush.bf16.msra.mxu0 %v3085
    %4735 = vmatmul.bf16.gmra.mxu0 %v1527
    %v4736 = vpop.f32.mrf.mxu0
    %v4737 = vadd.f32 %v1326, %v4736
    %v4738 = vpop.f32.mrf.mxu0
    %4739 = vdwg.mxu0
    %4740 = vmatpush.bf16.msra.mxu0 %v3205
    %4741 = vmatpush.bf16.msra.mxu0 %v3197
    %4742 = vmatpush.bf16.msra.mxu0 %v3189
    %4743 = vmatpush.bf16.msra.mxu0 %v3181
    %4744 = vmatpush.bf16.msra.mxu0 %v3173
    %4745 = vmatpush.bf16.msra.mxu0 %v3165
    %4746 = vmatpush.bf16.msra.mxu0 %v3157
    %4747 = vmatpush.bf16.msra.mxu0 %v3149
    %4748 = vmatmul.bf16.gmra.mxu0 %v1528
    %v4749 = vpop.f32.mrf.mxu0
    %v4750 = vadd.f32 %v4737, %v4749
    %v4751 = vpop.f32.mrf.mxu0
    %4752 = vdwg.mxu0
    %4753 = vmatpush.bf16.msra.mxu0 %v3269
    %4754 = vmatpush.bf16.msra.mxu0 %v3261
    %4755 = vmatpush.bf16.msra.mxu0 %v3253
    %4756 = vmatpush.bf16.msra.mxu0 %v3245
    %4757 = vmatpush.bf16.msra.mxu0 %v3237
    %4758 = vmatpush.bf16.msra.mxu0 %v3229
    %4759 = vmatpush.bf16.msra.mxu0 %v3221
    %4760 = vmatpush.bf16.msra.mxu0 %v3213
    %4761 = vmatmul.bf16.gmra.mxu0 %v1529
    %v4762 = vpop.f32.mrf.mxu0
    %v4763 = vadd.f32 %v4750, %v4762
    %v4764 = vpop.f32.mrf.mxu0
    %4765 = vdwg.mxu0
    %4766 = vmatpush.bf16.msra.mxu0 %v3333
    %4767 = vmatpush.bf16.msra.mxu0 %v3325
    %4768 = vmatpush.bf16.msra.mxu0 %v3317
    %4769 = vmatpush.bf16.msra.mxu0 %v3309
    %4770 = vmatpush.bf16.msra.mxu0 %v3301
    %4771 = vmatpush.bf16.msra.mxu0 %v3293
    %4772 = vmatpush.bf16.msra.mxu0 %v3285
    %4773 = vmatpush.bf16.msra.mxu0 %v3277
    %4774 = vmatmul.bf16.gmra.mxu0 %v1530
    %v4775 = vpop.f32.mrf.mxu0
    %v4776 = vadd.f32 %v4763, %v4775
    %v4777 = vpop.f32.mrf.mxu0
    %4778 = vdwg.mxu0
    %4779 = vmatpush.bf16.msra.mxu0 %v3397
    %4780 = vmatpush.bf16.msra.mxu0 %v3389
    %4781 = vmatpush.bf16.msra.mxu0 %v3381
    %4782 = vmatpush.bf16.msra.mxu0 %v3373
    %4783 = vmatpush.bf16.msra.mxu0 %v3365
    %4784 = vmatpush.bf16.msra.mxu0 %v3357
    %4785 = vmatpush.bf16.msra.mxu0 %v3349
    %4786 = vmatpush.bf16.msra.mxu0 %v3341
    %4787 = vmatmul.bf16.gmra.mxu0 %v1531
    %v4788 = vpop.f32.mrf.mxu0
    %v4789 = vadd.f32 %v4776, %v4788
    %v4790 = vpop.f32.mrf.mxu0
    %4791 = vdwg.mxu0
    %4792 = vmatpush.bf16.msra.mxu0 %v3461
    %4793 = vmatpush.bf16.msra.mxu0 %v3453
    %4794 = vmatpush.bf16.msra.mxu0 %v3445
    %4795 = vmatpush.bf16.msra.mxu0 %v3437
    %4796 = vmatpush.bf16.msra.mxu0 %v3429
    %4797 = vmatpush.bf16.msra.mxu0 %v3421
    %4798 = vmatpush.bf16.msra.mxu0 %v3413
    %4799 = vmatpush.bf16.msra.mxu0 %v3405
    %4800 = vmatmul.bf16.gmra.mxu0 %v1532
    %v4801 = vpop.f32.mrf.mxu0
    %v4802 = vadd.f32 %v4789, %v4801
    %v4803 = vpop.f32.mrf.mxu0
    %4804 = vdwg.mxu0
    %4805 = vmatpush.bf16.msra.mxu0 %v3525
    %4806 = vmatpush.bf16.msra.mxu0 %v3517
    %4807 = vmatpush.bf16.msra.mxu0 %v3509
    %4808 = vmatpush.bf16.msra.mxu0 %v3501
    %4809 = vmatpush.bf16.msra.mxu0 %v3493
    %4810 = vmatpush.bf16.msra.mxu0 %v3485
    %4811 = vmatpush.bf16.msra.mxu0 %v3477
    %4812 = vmatpush.bf16.msra.mxu0 %v3469
    %4813 = vmatmul.bf16.gmra.mxu0 %v1533
    %v4814 = vpop.f32.mrf.mxu0
    %v4815 = vadd.f32 %v4802, %v4814
    %v4816 = vpop.f32.mrf.mxu0
    %4817 = vdwg.mxu0
    %4818 = vmatpush.bf16.msra.mxu0 %v3589
    %4819 = vmatpush.bf16.msra.mxu0 %v3581
    %4820 = vmatpush.bf16.msra.mxu0 %v3573
    %4821 = vmatpush.bf16.msra.mxu0 %v3565
    %4822 = vmatpush.bf16.msra.mxu0 %v3557
    %4823 = vmatpush.bf16.msra.mxu0 %v3549
    %4824 = vmatpush.bf16.msra.mxu0 %v3541
    %4825 = vmatpush.bf16.msra.mxu0 %v3533
    %4826 = vmatmul.bf16.gmra.mxu0 %v1534
    %v4827 = vpop.f32.mrf.mxu0
    %v4828 = vadd.f32 %v4815, %v4827
    %v4829 = vpop.f32.mrf.mxu0
    %4830 = vdwg.mxu0
    %4831 = vmatpush.bf16.msra.mxu0 %v3142
    %4832 = vmatpush.bf16.msra.mxu0 %v3134
    %4833 = vmatpush.bf16.msra.mxu0 %v3126
    %4834 = vmatpush.bf16.msra.mxu0 %v3118
    %4835 = vmatpush.bf16.msra.mxu0 %v3110
    %4836 = vmatpush.bf16.msra.mxu0 %v3102
    %4837 = vmatpush.bf16.msra.mxu0 %v3094
    %4838 = vmatpush.bf16.msra.mxu0 %v3086
    %4839 = vmatmul.bf16.gmra.mxu0 %v1527
    %v4840 = vpop.f32.mrf.mxu0
    %v4841 = vadd.f32 %v1327, %v4840
    %v4842 = vpop.f32.mrf.mxu0
    %4843 = vdwg.mxu0
    %4844 = vmatpush.bf16.msra.mxu0 %v3206
    %4845 = vmatpush.bf16.msra.mxu0 %v3198
    %4846 = vmatpush.bf16.msra.mxu0 %v3190
    %4847 = vmatpush.bf16.msra.mxu0 %v3182
    %4848 = vmatpush.bf16.msra.mxu0 %v3174
    %4849 = vmatpush.bf16.msra.mxu0 %v3166
    %4850 = vmatpush.bf16.msra.mxu0 %v3158
    %4851 = vmatpush.bf16.msra.mxu0 %v3150
    %4852 = vmatmul.bf16.gmra.mxu0 %v1528
    %v4853 = vpop.f32.mrf.mxu0
    %v4854 = vadd.f32 %v4841, %v4853
    %v4855 = vpop.f32.mrf.mxu0
    %4856 = vdwg.mxu0
    %4857 = vmatpush.bf16.msra.mxu0 %v3270
    %4858 = vmatpush.bf16.msra.mxu0 %v3262
    %4859 = vmatpush.bf16.msra.mxu0 %v3254
    %4860 = vmatpush.bf16.msra.mxu0 %v3246
    %4861 = vmatpush.bf16.msra.mxu0 %v3238
    %4862 = vmatpush.bf16.msra.mxu0 %v3230
    %4863 = vmatpush.bf16.msra.mxu0 %v3222
    %4864 = vmatpush.bf16.msra.mxu0 %v3214
    %4865 = vmatmul.bf16.gmra.mxu0 %v1529
    %v4866 = vpop.f32.mrf.mxu0
    %v4867 = vadd.f32 %v4854, %v4866
    %v4868 = vpop.f32.mrf.mxu0
    %4869 = vdwg.mxu0
    %4870 = vmatpush.bf16.msra.mxu0 %v3334
    %4871 = vmatpush.bf16.msra.mxu0 %v3326
    %4872 = vmatpush.bf16.msra.mxu0 %v3318
    %4873 = vmatpush.bf16.msra.mxu0 %v3310
    %4874 = vmatpush.bf16.msra.mxu0 %v3302
    %4875 = vmatpush.bf16.msra.mxu0 %v3294
    %4876 = vmatpush.bf16.msra.mxu0 %v3286
    %4877 = vmatpush.bf16.msra.mxu0 %v3278
    %4878 = vmatmul.bf16.gmra.mxu0 %v1530
    %v4879 = vpop.f32.mrf.mxu0
    %v4880 = vadd.f32 %v4867, %v4879
    %v4881 = vpop.f32.mrf.mxu0
    %4882 = vdwg.mxu0
    %4883 = vmatpush.bf16.msra.mxu0 %v3398
    %4884 = vmatpush.bf16.msra.mxu0 %v3390
    %4885 = vmatpush.bf16.msra.mxu0 %v3382
    %4886 = vmatpush.bf16.msra.mxu0 %v3374
    %4887 = vmatpush.bf16.msra.mxu0 %v3366
    %4888 = vmatpush.bf16.msra.mxu0 %v3358
    %4889 = vmatpush.bf16.msra.mxu0 %v3350
    %4890 = vmatpush.bf16.msra.mxu0 %v3342
    %4891 = vmatmul.bf16.gmra.mxu0 %v1531
    %v4892 = vpop.f32.mrf.mxu0
    %v4893 = vadd.f32 %v4880, %v4892
    %v4894 = vpop.f32.mrf.mxu0
    %4895 = vdwg.mxu0
    %4896 = vmatpush.bf16.msra.mxu0 %v3462
    %4897 = vmatpush.bf16.msra.mxu0 %v3454
    %4898 = vmatpush.bf16.msra.mxu0 %v3446
    %4899 = vmatpush.bf16.msra.mxu0 %v3438
    %4900 = vmatpush.bf16.msra.mxu0 %v3430
    %4901 = vmatpush.bf16.msra.mxu0 %v3422
    %4902 = vmatpush.bf16.msra.mxu0 %v3414
    %4903 = vmatpush.bf16.msra.mxu0 %v3406
    %4904 = vmatmul.bf16.gmra.mxu0 %v1532
    %v4905 = vpop.f32.mrf.mxu0
    %v4906 = vadd.f32 %v4893, %v4905
    %v4907 = vpop.f32.mrf.mxu0
    %4908 = vdwg.mxu0
    %4909 = vmatpush.bf16.msra.mxu0 %v3526
    %4910 = vmatpush.bf16.msra.mxu0 %v3518
    %4911 = vmatpush.bf16.msra.mxu0 %v3510
    %4912 = vmatpush.bf16.msra.mxu0 %v3502
    %4913 = vmatpush.bf16.msra.mxu0 %v3494
    %4914 = vmatpush.bf16.msra.mxu0 %v3486
    %4915 = vmatpush.bf16.msra.mxu0 %v3478
    %4916 = vmatpush.bf16.msra.mxu0 %v3470
    %4917 = vmatmul.bf16.gmra.mxu0 %v1533
    %v4918 = vpop.f32.mrf.mxu0
    %v4919 = vadd.f32 %v4906, %v4918
    %v4920 = vpop.f32.mrf.mxu0
    %4921 = vdwg.mxu0
    %4922 = vmatpush.bf16.msra.mxu0 %v3590
    %4923 = vmatpush.bf16.msra.mxu0 %v3582
    %4924 = vmatpush.bf16.msra.mxu0 %v3574
    %4925 = vmatpush.bf16.msra.mxu0 %v3566
    %4926 = vmatpush.bf16.msra.mxu0 %v3558
    %4927 = vmatpush.bf16.msra.mxu0 %v3550
    %4928 = vmatpush.bf16.msra.mxu0 %v3542
    %4929 = vmatpush.bf16.msra.mxu0 %v3534
    %4930 = vmatmul.bf16.gmra.mxu0 %v1534
    %v4931 = vpop.f32.mrf.mxu0
    %v4932 = vadd.f32 %v4919, %v4931
    %v4933 = vpop.f32.mrf.mxu0
    %4934 = vdwg.mxu0
    %v4935 = vadd.f32 %v4204, %v4308
    %v4936 = vadd.f32 %v4935, %v4412
    %v4937 = vadd.f32 %v4936, %v4516
    %v4938 = vadd.f32 %v4937, %v4620
    %v4939 = vadd.f32 %v4938, %v4724
    %v4940 = vadd.f32 %v4939, %v4828
    %v4941 = vadd.f32 %v4940, %v4932
    %4942 = vadd.xlane.f32.xlu0 %v4941
    %v4943 = vpop.xlane.xlu0 %4942
    %v4944 = vrcp.pop 1024.0
    %v4945 = vmul.f32 1024.0, %v4944
    %v4946 = vsub.f32 1.0, %v4945
    %v4947 = vmul.f32 %v4944, %v4946
    %v4948 = vadd.f32 %v4944, %v4947
    %vm4949 = vweird.f32 %v4944
    %v4950 = vsel %vm4949, %v4944, %v4948
    %v4951 = vmul.f32 %v4943, %v4950
    %v4952 = vsub.f32 %v4204, %v4951
    %v4953 = vsub.f32 %v4308, %v4951
    %v4954 = vsub.f32 %v4412, %v4951
    %v4955 = vsub.f32 %v4516, %v4951
    %v4956 = vsub.f32 %v4620, %v4951
    %v4957 = vsub.f32 %v4724, %v4951
    %v4958 = vsub.f32 %v4828, %v4951
    %v4959 = vsub.f32 %v4932, %v4951
    %v4960 = vmul.f32 %v4952, %v4952
    %v4961 = vmul.f32 %v4953, %v4953
    %v4962 = vmul.f32 %v4954, %v4954
    %v4963 = vmul.f32 %v4955, %v4955
    %v4964 = vmul.f32 %v4956, %v4956
    %v4965 = vmul.f32 %v4957, %v4957
    %v4966 = vmul.f32 %v4958, %v4958
    %v4967 = vmul.f32 %v4959, %v4959
    %v4968 = vadd.f32 %v4960, %v4961
    %v4969 = vadd.f32 %v4968, %v4962
    %v4970 = vadd.f32 %v4969, %v4963
    %v4971 = vadd.f32 %v4970, %v4964
    %v4972 = vadd.f32 %v4971, %v4965
    %v4973 = vadd.f32 %v4972, %v4966
    %v4974 = vadd.f32 %v4973, %v4967
    %4975 = vadd.xlane.f32.xlu0 %v4974
    %v4976 = vpop.xlane.xlu0 %4975
    %v4977 = vmul.f32 %v4976, %v4950
    %v4978 = vadd.f32 %v4977, 1e-05
    %v4979 = vrsqrt.pop %v4978
    %v4980 = vmul.f32 %v4979, %v4978
    %v4981 = vmul.f32 %v4980, %v4979
    %v4982 = vmul.f32 0.5, %v4981
    %v4983 = vsub.f32 1.5, %v4982
    %v4984 = vmul.f32 %v4979, %v4983
    %vm4985 = vweird.f32 %v4978
    %vm4986 = vweird.f32 %v4979
    %vm4987 = vmor %vm4985, %vm4986
    %v4988 = vsel %vm4987, %v4979, %v4984
    %v4989 = vmul.f32 %v4952, %v4988
    %v4990 = vmul.f32 %v4953, %v4988
    %v4991 = vmul.f32 %v4954, %v4988
    %v4992 = vmul.f32 %v4955, %v4988
    %v4993 = vmul.f32 %v4956, %v4988
    %v4994 = vmul.f32 %v4957, %v4988
    %v4995 = vmul.f32 %v4958, %v4988
    %v4996 = vmul.f32 %v4959, %v4988
    %v4997 = vpack.c.bf16 %v4989, %v4989
    %v4998 = vpack.c.bf16 %v4990, %v4990
    %v4999 = vpack.c.bf16 %v4991, %v4991
    %v5000 = vpack.c.bf16 %v4992, %v4992
    %v5001 = vpack.c.bf16 %v4993, %v4993
    %v5002 = vpack.c.bf16 %v4994, %v4994
    %v5003 = vpack.c.bf16 %v4995, %v4995
    %v5004 = vpack.c.bf16 %v4996, %v4996
    %v5005 = vld [vmem:[#allocation8] sm:$0xf]
    %v5006 = vld [vmem:[#allocation8 + $0x4] sm:$0xf]
    %v5007 = vld [vmem:[#allocation8 + $0x8] sm:$0xf]
    %v5008 = vld [vmem:[#allocation8 + $0xc] sm:$0xf]
    %v5009 = vld [vmem:[#allocation8 + $0x10] sm:$0xf]
    %v5010 = vld [vmem:[#allocation8 + $0x14] sm:$0xf]
    %v5011 = vld [vmem:[#allocation8 + $0x18] sm:$0xf]
    %v5012 = vld [vmem:[#allocation8 + $0x1c] sm:$0xf]
    %v5013 = vld [vmem:[#allocation8 + $0x20] sm:$0xf]
    %v5014 = vld [vmem:[#allocation8 + $0x24] sm:$0xf]
    %v5015 = vld [vmem:[#allocation8 + $0x28] sm:$0xf]
    %v5016 = vld [vmem:[#allocation8 + $0x2c] sm:$0xf]
    %v5017 = vld [vmem:[#allocation8 + $0x30] sm:$0xf]
    %v5018 = vld [vmem:[#allocation8 + $0x34] sm:$0xf]
    %v5019 = vld [vmem:[#allocation8 + $0x38] sm:$0xf]
    %v5020 = vld [vmem:[#allocation8 + $0x3c] sm:$0xf]
    %v5021 = vld [vmem:[#allocation8 + $0x40] sm:$0xf]
    %v5022 = vld [vmem:[#allocation8 + $0x44] sm:$0xf]
    %v5023 = vld [vmem:[#allocation8 + $0x48] sm:$0xf]
    %v5024 = vld [vmem:[#allocation8 + $0x4c] sm:$0xf]
    %v5025 = vld [vmem:[#allocation8 + $0x50] sm:$0xf]
    %v5026 = vld [vmem:[#allocation8 + $0x54] sm:$0xf]
    %v5027 = vld [vmem:[#allocation8 + $0x58] sm:$0xf]
    %v5028 = vld [vmem:[#allocation8 + $0x5c] sm:$0xf]
    %v5029 = vld [vmem:[#allocation8 + $0x60] sm:$0xf]
    %v5030 = vld [vmem:[#allocation8 + $0x64] sm:$0xf]
    %v5031 = vld [vmem:[#allocation8 + $0x68] sm:$0xf]
    %v5032 = vld [vmem:[#allocation8 + $0x6c] sm:$0xf]
    %v5033 = vld [vmem:[#allocation8 + $0x70] sm:$0xf]
    %v5034 = vld [vmem:[#allocation8 + $0x74] sm:$0xf]
    %v5035 = vld [vmem:[#allocation8 + $0x78] sm:$0xf]
    %v5036 = vld [vmem:[#allocation8 + $0x7c] sm:$0xf]
    %v5037 = vld [vmem:[#allocation8 + $0x80] sm:$0xf]
    %v5038 = vld [vmem:[#allocation8 + $0x84] sm:$0xf]
    %v5039 = vld [vmem:[#allocation8 + $0x88] sm:$0xf]
    %v5040 = vld [vmem:[#allocation8 + $0x8c] sm:$0xf]
    %v5041 = vld [vmem:[#allocation8 + $0x90] sm:$0xf]
    %v5042 = vld [vmem:[#allocation8 + $0x94] sm:$0xf]
    %v5043 = vld [vmem:[#allocation8 + $0x98] sm:$0xf]
    %v5044 = vld [vmem:[#allocation8 + $0x9c] sm:$0xf]
    %v5045 = vld [vmem:[#allocation8 + $0xa0] sm:$0xf]
    %v5046 = vld [vmem:[#allocation8 + $0xa4] sm:$0xf]
    %v5047 = vld [vmem:[#allocation8 + $0xa8] sm:$0xf]
    %v5048 = vld [vmem:[#allocation8 + $0xac] sm:$0xf]
    %v5049 = vld [vmem:[#allocation8 + $0xb0] sm:$0xf]
    %v5050 = vld [vmem:[#allocation8 + $0xb4] sm:$0xf]
    %v5051 = vld [vmem:[#allocation8 + $0xb8] sm:$0xf]
    %v5052 = vld [vmem:[#allocation8 + $0xbc] sm:$0xf]
    %v5053 = vld [vmem:[#allocation8 + $0xc0] sm:$0xf]
    %v5054 = vld [vmem:[#allocation8 + $0xc4] sm:$0xf]
    %v5055 = vld [vmem:[#allocation8 + $0xc8] sm:$0xf]
    %v5056 = vld [vmem:[#allocation8 + $0xcc] sm:$0xf]
    %v5057 = vld [vmem:[#allocation8 + $0xd0] sm:$0xf]
    %v5058 = vld [vmem:[#allocation8 + $0xd4] sm:$0xf]
    %v5059 = vld [vmem:[#allocation8 + $0xd8] sm:$0xf]
    %v5060 = vld [vmem:[#allocation8 + $0xdc] sm:$0xf]
    %v5061 = vld [vmem:[#allocation8 + $0xe0] sm:$0xf]
    %v5062 = vld [vmem:[#allocation8 + $0xe4] sm:$0xf]
    %v5063 = vld [vmem:[#allocation8 + $0xe8] sm:$0xf]
    %v5064 = vld [vmem:[#allocation8 + $0xec] sm:$0xf]
    %v5065 = vld [vmem:[#allocation8 + $0xf0] sm:$0xf]
    %v5066 = vld [vmem:[#allocation8 + $0xf4] sm:$0xf]
    %v5067 = vld [vmem:[#allocation8 + $0xf8] sm:$0xf]
    %v5068 = vld [vmem:[#allocation8 + $0xfc] sm:$0xf]
    %v5069 = vld [vmem:[#allocation8 + $0x100] sm:$0xf]
    %v5070 = vld [vmem:[#allocation8 + $0x104] sm:$0xf]
    %v5071 = vld [vmem:[#allocation8 + $0x108] sm:$0xf]
    %v5072 = vld [vmem:[#allocation8 + $0x10c] sm:$0xf]
    %v5073 = vld [vmem:[#allocation8 + $0x110] sm:$0xf]
    %v5074 = vld [vmem:[#allocation8 + $0x114] sm:$0xf]
    %v5075 = vld [vmem:[#allocation8 + $0x118] sm:$0xf]
    %v5076 = vld [vmem:[#allocation8 + $0x11c] sm:$0xf]
    %v5077 = vld [vmem:[#allocation8 + $0x120] sm:$0xf]
    %v5078 = vld [vmem:[#allocation8 + $0x124] sm:$0xf]
    %v5079 = vld [vmem:[#allocation8 + $0x128] sm:$0xf]
    %v5080 = vld [vmem:[#allocation8 + $0x12c] sm:$0xf]
    %v5081 = vld [vmem:[#allocation8 + $0x130] sm:$0xf]
    %v5082 = vld [vmem:[#allocation8 + $0x134] sm:$0xf]
    %v5083 = vld [vmem:[#allocation8 + $0x138] sm:$0xf]
    %v5084 = vld [vmem:[#allocation8 + $0x13c] sm:$0xf]
    %v5085 = vld [vmem:[#allocation8 + $0x140] sm:$0xf]
    %v5086 = vld [vmem:[#allocation8 + $0x144] sm:$0xf]
    %v5087 = vld [vmem:[#allocation8 + $0x148] sm:$0xf]
    %v5088 = vld [vmem:[#allocation8 + $0x14c] sm:$0xf]
    %v5089 = vld [vmem:[#allocation8 + $0x150] sm:$0xf]
    %v5090 = vld [vmem:[#allocation8 + $0x154] sm:$0xf]
    %v5091 = vld [vmem:[#allocation8 + $0x158] sm:$0xf]
    %v5092 = vld [vmem:[#allocation8 + $0x15c] sm:$0xf]
    %v5093 = vld [vmem:[#allocation8 + $0x160] sm:$0xf]
    %v5094 = vld [vmem:[#allocation8 + $0x164] sm:$0xf]
    %v5095 = vld [vmem:[#allocation8 + $0x168] sm:$0xf]
    %v5096 = vld [vmem:[#allocation8 + $0x16c] sm:$0xf]
    %v5097 = vld [vmem:[#allocation8 + $0x170] sm:$0xf]
    %v5098 = vld [vmem:[#allocation8 + $0x174] sm:$0xf]
    %v5099 = vld [vmem:[#allocation8 + $0x178] sm:$0xf]
    %v5100 = vld [vmem:[#allocation8 + $0x17c] sm:$0xf]
    %v5101 = vld [vmem:[#allocation8 + $0x180] sm:$0xf]
    %v5102 = vld [vmem:[#allocation8 + $0x184] sm:$0xf]
    %v5103 = vld [vmem:[#allocation8 + $0x188] sm:$0xf]
    %v5104 = vld [vmem:[#allocation8 + $0x18c] sm:$0xf]
    %v5105 = vld [vmem:[#allocation8 + $0x190] sm:$0xf]
    %v5106 = vld [vmem:[#allocation8 + $0x194] sm:$0xf]
    %v5107 = vld [vmem:[#allocation8 + $0x198] sm:$0xf]
    %v5108 = vld [vmem:[#allocation8 + $0x19c] sm:$0xf]
    %v5109 = vld [vmem:[#allocation8 + $0x1a0] sm:$0xf]
    %v5110 = vld [vmem:[#allocation8 + $0x1a4] sm:$0xf]
    %v5111 = vld [vmem:[#allocation8 + $0x1a8] sm:$0xf]
    %v5112 = vld [vmem:[#allocation8 + $0x1ac] sm:$0xf]
    %v5113 = vld [vmem:[#allocation8 + $0x1b0] sm:$0xf]
    %v5114 = vld [vmem:[#allocation8 + $0x1b4] sm:$0xf]
    %v5115 = vld [vmem:[#allocation8 + $0x1b8] sm:$0xf]
    %v5116 = vld [vmem:[#allocation8 + $0x1bc] sm:$0xf]
    %v5117 = vld [vmem:[#allocation8 + $0x1c0] sm:$0xf]
    %v5118 = vld [vmem:[#allocation8 + $0x1c4] sm:$0xf]
    %v5119 = vld [vmem:[#allocation8 + $0x1c8] sm:$0xf]
    %v5120 = vld [vmem:[#allocation8 + $0x1cc] sm:$0xf]
    %v5121 = vld [vmem:[#allocation8 + $0x1d0] sm:$0xf]
    %v5122 = vld [vmem:[#allocation8 + $0x1d4] sm:$0xf]
    %v5123 = vld [vmem:[#allocation8 + $0x1d8] sm:$0xf]
    %v5124 = vld [vmem:[#allocation8 + $0x1dc] sm:$0xf]
    %v5125 = vld [vmem:[#allocation8 + $0x1e0] sm:$0xf]
    %v5126 = vld [vmem:[#allocation8 + $0x1e4] sm:$0xf]
    %v5127 = vld [vmem:[#allocation8 + $0x1e8] sm:$0xf]
    %v5128 = vld [vmem:[#allocation8 + $0x1ec] sm:$0xf]
    %v5129 = vld [vmem:[#allocation8 + $0x1f0] sm:$0xf]
    %v5130 = vld [vmem:[#allocation8 + $0x1f4] sm:$0xf]
    %v5131 = vld [vmem:[#allocation8 + $0x1f8] sm:$0xf]
    %v5132 = vld [vmem:[#allocation8 + $0x1fc] sm:$0xf]
    %v5133 = vld [vmem:[#allocation10] sm:$0x1]
    %v5135 = vperm.slane %v5133, 0
    %v5265 = vunpack.c.l.b16 %v5005
    %v5266 = vunpack.c.l.b16 %v5006
    %v5267 = vunpack.c.l.b16 %v5007
    %v5268 = vunpack.c.l.b16 %v5008
    %v5269 = vunpack.c.l.b16 %v5009
    %v5270 = vunpack.c.l.b16 %v5010
    %v5271 = vunpack.c.l.b16 %v5011
    %v5272 = vunpack.c.l.b16 %v5012
    %v5273 = vunpack.c.l.b16 %v5013
    %v5274 = vunpack.c.l.b16 %v5014
    %v5275 = vunpack.c.l.b16 %v5015
    %v5276 = vunpack.c.l.b16 %v5016
    %v5277 = vunpack.c.l.b16 %v5017
    %v5278 = vunpack.c.l.b16 %v5018
    %v5279 = vunpack.c.l.b16 %v5019
    %v5280 = vunpack.c.l.b16 %v5020
    %v5281 = vunpack.c.l.b16 %v5021
    %v5282 = vunpack.c.l.b16 %v5022
    %v5283 = vunpack.c.l.b16 %v5023
    %v5284 = vunpack.c.l.b16 %v5024
    %v5285 = vunpack.c.l.b16 %v5025
    %v5286 = vunpack.c.l.b16 %v5026
    %v5287 = vunpack.c.l.b16 %v5027
    %v5288 = vunpack.c.l.b16 %v5028
    %v5289 = vunpack.c.l.b16 %v5029
    %v5290 = vunpack.c.l.b16 %v5030
    %v5291 = vunpack.c.l.b16 %v5031
    %v5292 = vunpack.c.l.b16 %v5032
    %v5293 = vunpack.c.l.b16 %v5033
    %v5294 = vunpack.c.l.b16 %v5034
    %v5295 = vunpack.c.l.b16 %v5035
    %v5296 = vunpack.c.l.b16 %v5036
    %v5297 = vunpack.c.l.b16 %v5037
    %v5298 = vunpack.c.l.b16 %v5038
    %v5299 = vunpack.c.l.b16 %v5039
    %v5300 = vunpack.c.l.b16 %v5040
    %v5301 = vunpack.c.l.b16 %v5041
    %v5302 = vunpack.c.l.b16 %v5042
    %v5303 = vunpack.c.l.b16 %v5043
    %v5304 = vunpack.c.l.b16 %v5044
    %v5305 = vunpack.c.l.b16 %v5045
    %v5306 = vunpack.c.l.b16 %v5046
    %v5307 = vunpack.c.l.b16 %v5047
    %v5308 = vunpack.c.l.b16 %v5048
    %v5309 = vunpack.c.l.b16 %v5049
    %v5310 = vunpack.c.l.b16 %v5050
    %v5311 = vunpack.c.l.b16 %v5051
    %v5312 = vunpack.c.l.b16 %v5052
    %v5313 = vunpack.c.l.b16 %v5053
    %v5314 = vunpack.c.l.b16 %v5054
    %v5315 = vunpack.c.l.b16 %v5055
    %v5316 = vunpack.c.l.b16 %v5056
    %v5317 = vunpack.c.l.b16 %v5057
    %v5318 = vunpack.c.l.b16 %v5058
    %v5319 = vunpack.c.l.b16 %v5059
    %v5320 = vunpack.c.l.b16 %v5060
    %v5321 = vunpack.c.l.b16 %v5061
    %v5322 = vunpack.c.l.b16 %v5062
    %v5323 = vunpack.c.l.b16 %v5063
    %v5324 = vunpack.c.l.b16 %v5064
    %v5325 = vunpack.c.l.b16 %v5065
    %v5326 = vunpack.c.l.b16 %v5066
    %v5327 = vunpack.c.l.b16 %v5067
    %v5328 = vunpack.c.l.b16 %v5068
    %v5329 = vunpack.c.l.b16 %v5069
    %v5330 = vunpack.c.l.b16 %v5070
    %v5331 = vunpack.c.l.b16 %v5071
    %v5332 = vunpack.c.l.b16 %v5072
    %v5333 = vunpack.c.l.b16 %v5073
    %v5334 = vunpack.c.l.b16 %v5074
    %v5335 = vunpack.c.l.b16 %v5075
    %v5336 = vunpack.c.l.b16 %v5076
    %v5337 = vunpack.c.l.b16 %v5077
    %v5338 = vunpack.c.l.b16 %v5078
    %v5339 = vunpack.c.l.b16 %v5079
    %v5340 = vunpack.c.l.b16 %v5080
    %v5341 = vunpack.c.l.b16 %v5081
    %v5342 = vunpack.c.l.b16 %v5082
    %v5343 = vunpack.c.l.b16 %v5083
    %v5344 = vunpack.c.l.b16 %v5084
    %v5345 = vunpack.c.l.b16 %v5085
    %v5346 = vunpack.c.l.b16 %v5086
    %v5347 = vunpack.c.l.b16 %v5087
    %v5348 = vunpack.c.l.b16 %v5088
    %v5349 = vunpack.c.l.b16 %v5089
    %v5350 = vunpack.c.l.b16 %v5090
    %v5351 = vunpack.c.l.b16 %v5091
    %v5352 = vunpack.c.l.b16 %v5092
    %v5353 = vunpack.c.l.b16 %v5093
    %v5354 = vunpack.c.l.b16 %v5094
    %v5355 = vunpack.c.l.b16 %v5095
    %v5356 = vunpack.c.l.b16 %v5096
    %v5357 = vunpack.c.l.b16 %v5097
    %v5358 = vunpack.c.l.b16 %v5098
    %v5359 = vunpack.c.l.b16 %v5099
    %v5360 = vunpack.c.l.b16 %v5100
    %v5361 = vunpack.c.l.b16 %v5101
    %v5362 = vunpack.c.l.b16 %v5102
    %v5363 = vunpack.c.l.b16 %v5103
    %v5364 = vunpack.c.l.b16 %v5104
    %v5365 = vunpack.c.l.b16 %v5105
    %v5366 = vunpack.c.l.b16 %v5106
    %v5367 = vunpack.c.l.b16 %v5107
    %v5368 = vunpack.c.l.b16 %v5108
    %v5369 = vunpack.c.l.b16 %v5109
    %v5370 = vunpack.c.l.b16 %v5110
    %v5371 = vunpack.c.l.b16 %v5111
    %v5372 = vunpack.c.l.b16 %v5112
    %v5373 = vunpack.c.l.b16 %v5113
    %v5374 = vunpack.c.l.b16 %v5114
    %v5375 = vunpack.c.l.b16 %v5115
    %v5376 = vunpack.c.l.b16 %v5116
    %v5377 = vunpack.c.l.b16 %v5117
    %v5378 = vunpack.c.l.b16 %v5118
    %v5379 = vunpack.c.l.b16 %v5119
    %v5380 = vunpack.c.l.b16 %v5120
    %v5381 = vunpack.c.l.b16 %v5121
    %v5382 = vunpack.c.l.b16 %v5122
    %v5383 = vunpack.c.l.b16 %v5123
    %v5384 = vunpack.c.l.b16 %v5124
    %v5385 = vunpack.c.l.b16 %v5125
    %v5386 = vunpack.c.l.b16 %v5126
    %v5387 = vunpack.c.l.b16 %v5127
    %v5388 = vunpack.c.l.b16 %v5128
    %v5389 = vunpack.c.l.b16 %v5129
    %v5390 = vunpack.c.l.b16 %v5130
    %v5391 = vunpack.c.l.b16 %v5131
    %v5392 = vunpack.c.l.b16 %v5132
    %v5393 = vpack.c.b16 %v5266, %v5265
    %v5394 = vpack.c.b16 %v5268, %v5267
    %v5395 = vpack.c.b16 %v5270, %v5269
    %v5396 = vpack.c.b16 %v5272, %v5271
    %v5397 = vpack.c.b16 %v5274, %v5273
    %v5398 = vpack.c.b16 %v5276, %v5275
    %v5399 = vpack.c.b16 %v5278, %v5277
    %v5400 = vpack.c.b16 %v5280, %v5279
    %v5401 = vpack.c.b16 %v5282, %v5281
    %v5402 = vpack.c.b16 %v5284, %v5283
    %v5403 = vpack.c.b16 %v5286, %v5285
    %v5404 = vpack.c.b16 %v5288, %v5287
    %v5405 = vpack.c.b16 %v5290, %v5289
    %v5406 = vpack.c.b16 %v5292, %v5291
    %v5407 = vpack.c.b16 %v5294, %v5293
    %v5408 = vpack.c.b16 %v5296, %v5295
    %v5409 = vpack.c.b16 %v5298, %v5297
    %v5410 = vpack.c.b16 %v5300, %v5299
    %v5411 = vpack.c.b16 %v5302, %v5301
    %v5412 = vpack.c.b16 %v5304, %v5303
    %v5413 = vpack.c.b16 %v5306, %v5305
    %v5414 = vpack.c.b16 %v5308, %v5307
    %v5415 = vpack.c.b16 %v5310, %v5309
    %v5416 = vpack.c.b16 %v5312, %v5311
    %v5417 = vpack.c.b16 %v5314, %v5313
    %v5418 = vpack.c.b16 %v5316, %v5315
    %v5419 = vpack.c.b16 %v5318, %v5317
    %v5420 = vpack.c.b16 %v5320, %v5319
    %v5421 = vpack.c.b16 %v5322, %v5321
    %v5422 = vpack.c.b16 %v5324, %v5323
    %v5423 = vpack.c.b16 %v5326, %v5325
    %v5424 = vpack.c.b16 %v5328, %v5327
    %v5425 = vpack.c.b16 %v5330, %v5329
    %v5426 = vpack.c.b16 %v5332, %v5331
    %v5427 = vpack.c.b16 %v5334, %v5333
    %v5428 = vpack.c.b16 %v5336, %v5335
    %v5429 = vpack.c.b16 %v5338, %v5337
    %v5430 = vpack.c.b16 %v5340, %v5339
    %v5431 = vpack.c.b16 %v5342, %v5341
    %v5432 = vpack.c.b16 %v5344, %v5343
    %v5433 = vpack.c.b16 %v5346, %v5345
    %v5434 = vpack.c.b16 %v5348, %v5347
    %v5435 = vpack.c.b16 %v5350, %v5349
    %v5436 = vpack.c.b16 %v5352, %v5351
    %v5437 = vpack.c.b16 %v5354, %v5353
    %v5438 = vpack.c.b16 %v5356, %v5355
    %v5439 = vpack.c.b16 %v5358, %v5357
    %v5440 = vpack.c.b16 %v5360, %v5359
    %v5441 = vpack.c.b16 %v5362, %v5361
    %v5442 = vpack.c.b16 %v5364, %v5363
    %v5443 = vpack.c.b16 %v5366, %v5365
    %v5444 = vpack.c.b16 %v5368, %v5367
    %v5445 = vpack.c.b16 %v5370, %v5369
    %v5446 = vpack.c.b16 %v5372, %v5371
    %v5447 = vpack.c.b16 %v5374, %v5373
    %v5448 = vpack.c.b16 %v5376, %v5375
    %v5449 = vpack.c.b16 %v5378, %v5377
    %v5450 = vpack.c.b16 %v5380, %v5379
    %v5451 = vpack.c.b16 %v5382, %v5381
    %v5452 = vpack.c.b16 %v5384, %v5383
    %v5453 = vpack.c.b16 %v5386, %v5385
    %v5454 = vpack.c.b16 %v5388, %v5387
    %v5455 = vpack.c.b16 %v5390, %v5389
    %v5456 = vpack.c.b16 %v5392, %v5391
    %5521 = vmatpush.bf16.msra.mxu0 %v5400
    %5522 = vmatpush.bf16.msra.mxu0 %v5399
    %5523 = vmatpush.bf16.msra.mxu0 %v5398
    %5524 = vmatpush.bf16.msra.mxu0 %v5397
    %5525 = vmatpush.bf16.msra.mxu0 %v5396
    %5526 = vmatpush.bf16.msra.mxu0 %v5395
    %5527 = vmatpush.bf16.msra.mxu0 %v5394
    %5528 = vmatpush.bf16.msra.mxu0 %v5393
    %5529 = vmatmul.bf16.gmra.mxu0 %v4997
    %v5530 = vpop.f32.mrf.mxu0
    %v5531 = vadd.f32 %v5135, %v5530
    %v5532 = vpop.f32.mrf.mxu0
    %5533 = vdwg.mxu0
    %5534 = vmatpush.bf16.msra.mxu0 %v5408
    %5535 = vmatpush.bf16.msra.mxu0 %v5407
    %5536 = vmatpush.bf16.msra.mxu0 %v5406
    %5537 = vmatpush.bf16.msra.mxu0 %v5405
    %5538 = vmatpush.bf16.msra.mxu0 %v5404
    %5539 = vmatpush.bf16.msra.mxu0 %v5403
    %5540 = vmatpush.bf16.msra.mxu0 %v5402
    %5541 = vmatpush.bf16.msra.mxu0 %v5401
    %5542 = vmatmul.bf16.gmra.mxu0 %v4998
    %v5543 = vpop.f32.mrf.mxu0
    %v5544 = vadd.f32 %v5531, %v5543
    %v5545 = vpop.f32.mrf.mxu0
    %5546 = vdwg.mxu0
    %5547 = vmatpush.bf16.msra.mxu0 %v5416
    %5548 = vmatpush.bf16.msra.mxu0 %v5415
    %5549 = vmatpush.bf16.msra.mxu0 %v5414
    %5550 = vmatpush.bf16.msra.mxu0 %v5413
    %5551 = vmatpush.bf16.msra.mxu0 %v5412
    %5552 = vmatpush.bf16.msra.mxu0 %v5411
    %5553 = vmatpush.bf16.msra.mxu0 %v5410
    %5554 = vmatpush.bf16.msra.mxu0 %v5409
    %5555 = vmatmul.bf16.gmra.mxu0 %v4999
    %v5556 = vpop.f32.mrf.mxu0
    %v5557 = vadd.f32 %v5544, %v5556
    %v5558 = vpop.f32.mrf.mxu0
    %5559 = vdwg.mxu0
    %5560 = vmatpush.bf16.msra.mxu0 %v5424
    %5561 = vmatpush.bf16.msra.mxu0 %v5423
    %5562 = vmatpush.bf16.msra.mxu0 %v5422
    %5563 = vmatpush.bf16.msra.mxu0 %v5421
    %5564 = vmatpush.bf16.msra.mxu0 %v5420
    %5565 = vmatpush.bf16.msra.mxu0 %v5419
    %5566 = vmatpush.bf16.msra.mxu0 %v5418
    %5567 = vmatpush.bf16.msra.mxu0 %v5417
    %5568 = vmatmul.bf16.gmra.mxu0 %v5000
    %v5569 = vpop.f32.mrf.mxu0
    %v5570 = vadd.f32 %v5557, %v5569
    %v5571 = vpop.f32.mrf.mxu0
    %5572 = vdwg.mxu0
    %5573 = vmatpush.bf16.msra.mxu0 %v5432
    %5574 = vmatpush.bf16.msra.mxu0 %v5431
    %5575 = vmatpush.bf16.msra.mxu0 %v5430
    %5576 = vmatpush.bf16.msra.mxu0 %v5429
    %5577 = vmatpush.bf16.msra.mxu0 %v5428
    %5578 = vmatpush.bf16.msra.mxu0 %v5427
    %5579 = vmatpush.bf16.msra.mxu0 %v5426
    %5580 = vmatpush.bf16.msra.mxu0 %v5425
    %5581 = vmatmul.bf16.gmra.mxu0 %v5001
    %v5582 = vpop.f32.mrf.mxu0
    %v5583 = vadd.f32 %v5570, %v5582
    %v5584 = vpop.f32.mrf.mxu0
    %5585 = vdwg.mxu0
    %5586 = vmatpush.bf16.msra.mxu0 %v5440
    %5587 = vmatpush.bf16.msra.mxu0 %v5439
    %5588 = vmatpush.bf16.msra.mxu0 %v5438
    %5589 = vmatpush.bf16.msra.mxu0 %v5437
    %5590 = vmatpush.bf16.msra.mxu0 %v5436
    %5591 = vmatpush.bf16.msra.mxu0 %v5435
    %5592 = vmatpush.bf16.msra.mxu0 %v5434
    %5593 = vmatpush.bf16.msra.mxu0 %v5433
    %5594 = vmatmul.bf16.gmra.mxu0 %v5002
    %v5595 = vpop.f32.mrf.mxu0
    %v5596 = vadd.f32 %v5583, %v5595
    %v5597 = vpop.f32.mrf.mxu0
    %5598 = vdwg.mxu0
    %5599 = vmatpush.bf16.msra.mxu0 %v5448
    %5600 = vmatpush.bf16.msra.mxu0 %v5447
    %5601 = vmatpush.bf16.msra.mxu0 %v5446
    %5602 = vmatpush.bf16.msra.mxu0 %v5445
    %5603 = vmatpush.bf16.msra.mxu0 %v5444
    %5604 = vmatpush.bf16.msra.mxu0 %v5443
    %5605 = vmatpush.bf16.msra.mxu0 %v5442
    %5606 = vmatpush.bf16.msra.mxu0 %v5441
    %5607 = vmatmul.bf16.gmra.mxu0 %v5003
    %v5608 = vpop.f32.mrf.mxu0
    %v5609 = vadd.f32 %v5596, %v5608
    %v5610 = vpop.f32.mrf.mxu0
    %5611 = vdwg.mxu0
    %5612 = vmatpush.bf16.msra.mxu0 %v5456
    %5613 = vmatpush.bf16.msra.mxu0 %v5455
    %5614 = vmatpush.bf16.msra.mxu0 %v5454
    %5615 = vmatpush.bf16.msra.mxu0 %v5453
    %5616 = vmatpush.bf16.msra.mxu0 %v5452
    %5617 = vmatpush.bf16.msra.mxu0 %v5451
    %5618 = vmatpush.bf16.msra.mxu0 %v5450
    %5619 = vmatpush.bf16.msra.mxu0 %v5449
    %5620 = vmatmul.bf16.gmra.mxu0 %v5004
    %v5621 = vpop.f32.mrf.mxu0
    %v5622 = vadd.f32 %v5609, %v5621
    %v5623 = vpop.f32.mrf.mxu0
    %5624 = vdwg.mxu0
    %5625 = vst [vmem:[#allocation11] sm:$0xff] %v5622
    // Predicated region
    $region42: #{classifier_forward.1} parent=1 // pred_check
      _
    $region43: #{classifier_forward.1} parent=1 // pred_check_branch
      %5627 = sbr.rel (0) target = $region45
    $region44: #{classifier_forward.1} parent=1 // pred_region
      %5629 = vsyncadd [#allocation4], 96
      %s5630 = sshll.u32 [#allocation11], 4
      %s5631 = int_to_ptr.vmem [resolvable:$true] %s5630
      %s5632 = sshll.u32 %s5, 4
      %s5633 = int_to_ptr.hbm [resolvable:$true] %s5632
      %5638 = dma.vmem_to_hbm [thread:$0]  %s5631, 32, %s5633, [#allocation4], 32, 32, 2
    $region45: #{classifier_forward.1} parent=1 // pred_fallthru
      _
    // Predicated region
    $region46: #{classifier_forward.1} parent=1 // pred_check
      _
    $region47: #{classifier_forward.1} parent=1 // pred_check_branch
      %5640 = sbr.rel (0) target = $region49
    $region48: #{classifier_forward.1} parent=1 // pred_region
      %5642 = dma.done [#allocation4], 128
    $region49: #{classifier_forward.1} parent=1 // pred_fallthru
      _
    %5643 = vsyncpa [#allocation3], 1
    %5644 = vsyncpa [#allocation6], 1
    %5645 = vsyncpa [#allocation9], 1
    %5646 = vsyncpa [#allocation4], 1

</llo_original>
